<compile_context>
chip_gen: v7x
topology: tpu7x:2x2x1
jax: 0.10.0
libtpu: 0.0.40
codegen_flags: <defaults>
</compile_context>

<pallas_src>
import jax
import jax.numpy as jnp
from jax import lax
from jax.experimental import pallas as pl
from jax.experimental.pallas import tpu as pltpu


def self_attn_kernel(xq_ref, xkv_ref, wq_ref, bq_ref, wk_ref, bk_ref,
                     wv_ref, bv_ref, gamma_ref, o_ref):
    # xq_ref : (1, C, TQ) query tile of x (channels-first, spatial on lanes)
    # xkv_ref: (1, C, N)  full spatial row of x (keys/values), resident per batch
    xq_f32 = xq_ref[0]                              # (C, TQ) f32 for the residual
    xq = xq_f32.astype(jnp.bfloat16)                # (C, TQ) bf16 MXU operand
    xkv = xkv_ref[0].astype(jnp.bfloat16)           # (C, N)  bf16 MXU operand

    c0 = (((0,), (0,)), ((), ()))   # contract leading (channel) axes
    c1 = (((1,), (1,)), ((), ()))   # contract trailing (spatial) axes

    # 1x1 convolutions == channel matmuls; results stay (C_out, spatial) so the
    # big spatial dim stays on lanes (no lane-sparse Ck=C/8 minor dim).
    q = lax.dot_general(wq_ref[...], xq, c0,
                        preferred_element_type=jnp.float32) + bq_ref[...]   # (Ck, TQ)
    k = lax.dot_general(wk_ref[...], xkv, c0,
                        preferred_element_type=jnp.float32) + bk_ref[...]   # (Ck, N)
    v = lax.dot_general(wv_ref[...], xkv, c0,
                        preferred_element_type=jnp.float32) + bv_ref[...]   # (C, N)

    # energy[nq, m] = sum_ck q[ck, nq] * k[ck, m]   == torch.bmm(Q^T, K)
    # dot_general contracts the Ck axis directly -- no materialized transpose.
    energy = lax.dot_general(q.astype(jnp.bfloat16), k.astype(jnp.bfloat16),
                             c0, preferred_element_type=jnp.float32)        # (TQ, N)

    # softmax over keys (dim=-1), f32 math; approx reciprocal -> EUP vrcp slot.
    e_max = jnp.max(energy, axis=-1, keepdims=True)
    p = jnp.exp(energy - e_max)
    attention = p * pl.reciprocal(jnp.sum(p, axis=-1, keepdims=True), approx=True)

    # out[c, nq] = sum_m v[c, m] * attention[nq, m]  == torch.bmm(V, A^T)
    out = lax.dot_general(v.astype(jnp.bfloat16), attention.astype(jnp.bfloat16),
                          c1, preferred_element_type=jnp.float32)           # (C, TQ)

    o_ref[0] = gamma_ref[0, 0] * out + xq_f32


def self_attn(x, wq, bq, wk, bk, wv, bv, gamma):
    """x: (B, C, W, H) float32 NCHW, like the PyTorch module."""
    B, C, W, H = x.shape
    N = W * H
    Ck = wq.shape[1]

    # Channels-first flatten, identical to x.view(B, C, W*H).  No transposes.
    x_cn = x.reshape(B, C, N).astype(jnp.float32)

    # Query-tile size: keep the output lane dim a multiple of 128 when possible.
    if N % 256 == 0:
        tq = 256
    elif N % 128 == 0:
        tq = 128
    else:
        tq = N
    num_q = N // tq

    wq_b = wq.astype(jnp.bfloat16)
    wk_b = wk.astype(jnp.bfloat16)
    wv_b = wv.astype(jnp.bfloat16)
    bq_2d = bq.reshape(Ck, 1).astype(jnp.float32)
    bk_2d = bk.reshape(Ck, 1).astype(jnp.float32)
    bv_2d = bv.reshape(C, 1).astype(jnp.float32)
    gamma_2d = jnp.asarray(gamma, jnp.float32).reshape(1, 1)

    out_cn = pl.pallas_call(
        self_attn_kernel,
        out_shape=jax.ShapeDtypeStruct((B, C, N), jnp.float32),
        grid_spec=pltpu.PrefetchScalarGridSpec(
            num_scalar_prefetch=0,
            grid=(B, num_q),
            in_specs=[
                pl.BlockSpec((1, C, tq), lambda b, qi: (b, 0, qi)),   # x query tile
                pl.BlockSpec((1, C, N),  lambda b, qi: (b, 0, 0)),    # x full (K/V), resident per batch
                pl.BlockSpec((C, Ck),    lambda b, qi: (0, 0)),       # Wq (bf16)
                pl.BlockSpec((Ck, 1),    lambda b, qi: (0, 0)),       # bq
                pl.BlockSpec((C, Ck),    lambda b, qi: (0, 0)),       # Wk (bf16)
                pl.BlockSpec((Ck, 1),    lambda b, qi: (0, 0)),       # bk
                pl.BlockSpec((C, C),     lambda b, qi: (0, 0)),       # Wv (bf16)
                pl.BlockSpec((C, 1),     lambda b, qi: (0, 0)),       # bv
                pl.BlockSpec(memory_space=pltpu.MemorySpace.SMEM),    # gamma scalar
            ],
            out_specs=pl.BlockSpec((1, C, tq), lambda b, qi: (b, 0, qi)),
        ),
        compiler_params=pltpu.CompilerParams(
            dimension_semantics=("parallel", "parallel"),
            vmem_limit_bytes=48 * 1024 * 1024,
        ),
    )(x_cn, x_cn, wq_b, bq_2d, wk_b, bk_2d, wv_b, bv_2d, gamma_2d)

    # (B, C, N) -> NCHW, same as torch's .view(B, C, W, H)
    return out_cn.reshape(B, C, W, H)


def self_attn_ref(x, wq, bq, wk, bk, wv, bv, gamma):
    """Pure-JAX f32 reference mirroring the PyTorch forward."""
    B, C, W, H = x.shape
    N = W * H
    xf = x.reshape(B, C, N)                                         # (B, C, N)
    pq = jnp.einsum("oc,bcn->bon", wq.T, xf) + bq[None, :, None]    # (B, Ck, N)
    pk = jnp.einsum("oc,bcn->bon", wk.T, xf) + bk[None, :, None]    # (B, Ck, N)
    pv = jnp.einsum("oc,bcn->bon", wv.T, xf) + bv[None, :, None]    # (B, C, N)
    energy = jnp.einsum("bcn,bcm->bnm", pq, pk)                     # (B, N, N)
    attn = jax.nn.softmax(energy, axis=-1)
    out = jnp.einsum("bcm,bnm->bcn", pv, attn)                      # (B, C, N)
    out = out.reshape(B, C, W, H)
    return gamma[0, 0] * out + x


if __name__ == "__main__":
    B, C, W, H = 2, 32, 32, 32        # in_dim = 32 -> query/key channels = 4; N = 1024
    Ck = C // 8

    key = jax.random.PRNGKey(0)
    kx, kq, kbq, kk, kbk, kv, kbv = jax.random.split(key, 7)

    x = jax.random.normal(kx, (B, C, W, H), dtype=jnp.float32)

    # Conv2d 1x1 weights stored as (C_in, C_out).
    wq = jax.random.normal(kq,  (C, Ck), dtype=jnp.float32) * 0.1
    bq = jax.random.normal(kbq, (Ck,),   dtype=jnp.float32) * 0.1
    wk = jax.random.normal(kk,  (C, Ck), dtype=jnp.float32) * 0.1
    bk = jax.random.normal(kbk, (Ck,),   dtype=jnp.float32) * 0.1
    wv = jax.random.normal(kv,  (C, C),  dtype=jnp.float32) * 0.1
    bv = jax.random.normal(kbv, (C,),    dtype=jnp.float32) * 0.1
    # Module init is gamma = 0 (output == input); use a nonzero value so the
    # attention path actually affects the output in this synthetic run.
    gamma = jnp.full((1, 1), 0.5, dtype=jnp.float32)

    out = self_attn(x, wq, bq, wk, bk, wv, bv, gamma)
    out = jax.block_until_ready(out)

    ref = self_attn_ref(x, wq, bq, wk, bk, wv, bv, gamma)
    assert out.shape == (B, C, W, H)
    # bf16 MXU operands + approx reciprocal -> loosened tolerance vs f32 ref.
    assert jnp.allclose(out, ref, rtol=2e-2, atol=2e-2), \
        float(jnp.max(jnp.abs(out - ref)))

    print("KERNEL_OK")
</pallas_src>

<mosaic_0001>
module attributes {stable_mosaic.version = 11 : i64} {
  func.func @self_attn_kernel(%arg0: i32, %arg1: i32, %arg2: memref<1x32x256xf32, #tpu.memory_space<vmem>>, %arg3: memref<1x32x1024xf32, #tpu.memory_space<vmem>>, %arg4: memref<32x4xbf16, #tpu.memory_space<vmem>>, %arg5: memref<4x1xf32, #tpu.memory_space<vmem>>, %arg6: memref<32x4xbf16, #tpu.memory_space<vmem>>, %arg7: memref<4x1xf32, #tpu.memory_space<vmem>>, %arg8: memref<32x32xbf16, #tpu.memory_space<vmem>>, %arg9: memref<32x1xf32, #tpu.memory_space<vmem>>, %arg10: memref<1x1xf32, #tpu.memory_space<smem>>, %arg11: memref<1x32x256xf32, #tpu.memory_space<vmem>>) attributes {dimension_semantics = [#tpu.dimension_semantics<parallel>, #tpu.dimension_semantics<parallel>], iteration_bounds = array<i64: 2, 4>, scalar_prefetch = 0 : i64, scratch_operands = 0 : i64, tpu.core_type = #tpu.core_type<tc>, window_params = [{transform_indices = @transform_0, window_bounds = array<i64: 1, 32, 256>}, {transform_indices = @transform_1, window_bounds = array<i64: 1, 32, 1024>}, {pipeline_mode = #tpu.pipeline_mode<synchronous>, transform_indices = @transform_2, window_bounds = array<i64: 32, 4>}, {pipeline_mode = #tpu.pipeline_mode<synchronous>, transform_indices = @transform_3, window_bounds = array<i64: 4, 1>}, {pipeline_mode = #tpu.pipeline_mode<synchronous>, transform_indices = @transform_4, window_bounds = array<i64: 32, 4>}, {pipeline_mode = #tpu.pipeline_mode<synchronous>, transform_indices = @transform_5, window_bounds = array<i64: 4, 1>}, {pipeline_mode = #tpu.pipeline_mode<synchronous>, transform_indices = @transform_6, window_bounds = array<i64: 32, 32>}, {pipeline_mode = #tpu.pipeline_mode<synchronous>, transform_indices = @transform_7, window_bounds = array<i64: 32, 1>}, {transform_indices = @transform_8, window_bounds = array<i64: 1, 1>}, {transform_indices = @transform_9, window_bounds = array<i64: 1, 32, 256>}]} {
    %c0 = arith.constant 0 : index
    %c0_0 = arith.constant 0 : index
    %c0_1 = arith.constant 0 : index
    %0 = vector.load %arg2[%c0, %c0_0, %c0_1] : memref<1x32x256xf32, #tpu.memory_space<vmem>>, vector<1x32x256xf32>
    %1 = vector.shape_cast %0 : vector<1x32x256xf32> to vector<32x256xf32>
    %2 = arith.truncf %1 : vector<32x256xf32> to vector<32x256xbf16>
    %c0_2 = arith.constant 0 : index
    %c0_3 = arith.constant 0 : index
    %c0_4 = arith.constant 0 : index
    %3 = vector.load %arg3[%c0_2, %c0_3, %c0_4] : memref<1x32x1024xf32, #tpu.memory_space<vmem>>, vector<1x32x1024xf32>
    %4 = vector.shape_cast %3 : vector<1x32x1024xf32> to vector<32x1024xf32>
    %5 = arith.truncf %4 : vector<32x1024xf32> to vector<32x1024xbf16>
    %c0_5 = arith.constant 0 : index
    %c0_6 = arith.constant 0 : index
    %6 = vector.load %arg4[%c0_5, %c0_6] : memref<32x4xbf16, #tpu.memory_space<vmem>>, vector<32x4xbf16>
    %cst = arith.constant dense<0.000000e+00> : vector<4x256xf32>
    %7 = tpu.matmul %6, %2, %cst {dimension_numbers = #tpu.dot_dimension_numbers<[0], [0], [1], [1], [0, 1, 1, 1], [], []>} : vector<32x4xbf16>, vector<32x256xbf16>, vector<4x256xf32> -> vector<4x256xf32>
    %c0_7 = arith.constant 0 : index
    %c0_8 = arith.constant 0 : index
    %8 = vector.load %arg5[%c0_7, %c0_8] : memref<4x1xf32, #tpu.memory_space<vmem>>, vector<4x1xf32>
    %9 = vector.broadcast %8 : vector<4x1xf32> to vector<4x256xf32>
    %10 = arith.addf %7, %9 : vector<4x256xf32>
    %c0_9 = arith.constant 0 : index
    %c0_10 = arith.constant 0 : index
    %11 = vector.load %arg6[%c0_9, %c0_10] : memref<32x4xbf16, #tpu.memory_space<vmem>>, vector<32x4xbf16>
    %cst_11 = arith.constant dense<0.000000e+00> : vector<4x1024xf32>
    %12 = tpu.matmul %11, %5, %cst_11 {dimension_numbers = #tpu.dot_dimension_numbers<[0], [0], [1], [1], [0, 1, 1, 1], [], []>} : vector<32x4xbf16>, vector<32x1024xbf16>, vector<4x1024xf32> -> vector<4x1024xf32>
    %c0_12 = arith.constant 0 : index
    %c0_13 = arith.constant 0 : index
    %13 = vector.load %arg7[%c0_12, %c0_13] : memref<4x1xf32, #tpu.memory_space<vmem>>, vector<4x1xf32>
    %14 = vector.broadcast %13 : vector<4x1xf32> to vector<4x1024xf32>
    %15 = arith.addf %12, %14 : vector<4x1024xf32>
    %c0_14 = arith.constant 0 : index
    %c0_15 = arith.constant 0 : index
    %16 = vector.load %arg8[%c0_14, %c0_15] : memref<32x32xbf16, #tpu.memory_space<vmem>>, vector<32x32xbf16>
    %cst_16 = arith.constant dense<0.000000e+00> : vector<32x1024xf32>
    %17 = tpu.matmul %16, %5, %cst_16 {dimension_numbers = #tpu.dot_dimension_numbers<[0], [0], [1], [1], [0, 1, 1, 1], [], []>} : vector<32x32xbf16>, vector<32x1024xbf16>, vector<32x1024xf32> -> vector<32x1024xf32>
    %c0_17 = arith.constant 0 : index
    %c0_18 = arith.constant 0 : index
    %18 = vector.load %arg9[%c0_17, %c0_18] : memref<32x1xf32, #tpu.memory_space<vmem>>, vector<32x1xf32>
    %19 = vector.broadcast %18 : vector<32x1xf32> to vector<32x1024xf32>
    %20 = arith.addf %17, %19 : vector<32x1024xf32>
    %21 = arith.truncf %10 : vector<4x256xf32> to vector<4x256xbf16>
    %22 = arith.truncf %15 : vector<4x1024xf32> to vector<4x1024xbf16>
    %cst_19 = arith.constant dense<0.000000e+00> : vector<256x1024xf32>
    %23 = tpu.matmul %21, %22, %cst_19 {dimension_numbers = #tpu.dot_dimension_numbers<[0], [0], [1], [1], [0, 1, 1, 1], [], []>} : vector<4x256xbf16>, vector<4x1024xbf16>, vector<256x1024xf32> -> vector<256x1024xf32>
    %cst_20 = arith.constant dense<0xFF800000> : vector<256xf32>
    %24 = vector.multi_reduction <maximumf>, %23, %cst_20 [1] : vector<256x1024xf32> to vector<256xf32>
    %25 = vector.shape_cast %24 : vector<256xf32> to vector<256x1xf32>
    %26 = vector.broadcast %25 : vector<256x1xf32> to vector<256x1024xf32>
    %27 = arith.subf %23, %26 : vector<256x1024xf32>
    %28 = math.exp %27 : vector<256x1024xf32>
    %cst_21 = arith.constant dense<0.000000e+00> : vector<256xf32>
    %29 = vector.multi_reduction <add>, %28, %cst_21 [1] : vector<256x1024xf32> to vector<256xf32>
    %30 = vector.shape_cast %29 : vector<256xf32> to vector<256x1xf32>
    %31 = tpu.reciprocal %30 {approx = true} : vector<256x1xf32> -> vector<256x1xf32>
    %32 = vector.broadcast %31 : vector<256x1xf32> to vector<256x1024xf32>
    %33 = arith.mulf %28, %32 : vector<256x1024xf32>
    %34 = arith.truncf %20 : vector<32x1024xf32> to vector<32x1024xbf16>
    %35 = arith.truncf %33 : vector<256x1024xf32> to vector<256x1024xbf16>
    %cst_22 = arith.constant dense<0.000000e+00> : vector<32x256xf32>
    %36 = tpu.matmul %34, %35, %cst_22 {dimension_numbers = #tpu.dot_dimension_numbers<[1], [1], [0], [0], [0, 0, 1, 0], [], []>} : vector<32x1024xbf16>, vector<256x1024xbf16>, vector<32x256xf32> -> vector<32x256xf32>
    %c0_23 = arith.constant 0 : index
    %c0_24 = arith.constant 0 : index
    %37 = memref.load %arg10[%c0_23, %c0_24] : memref<1x1xf32, #tpu.memory_space<smem>>
    %38 = vector.broadcast %37 : f32 to vector<32x256xf32>
    %39 = arith.mulf %38, %36 : vector<32x256xf32>
    %40 = arith.addf %39, %1 : vector<32x256xf32>
    %c0_25 = arith.constant 0 : index
    %c0_26 = arith.constant 0 : index
    %c0_27 = arith.constant 0 : index
    %41 = vector.load %arg11[%c0_25, %c0_26, %c0_27] : memref<1x32x256xf32, #tpu.memory_space<vmem>>, vector<1x32x256xf32>
    %42 = vector.shape_cast %41 : vector<1x32x256xf32> to vector<32x256xf32>
    %43 = vector.shape_cast %40 : vector<32x256xf32> to vector<1x32x256xf32>
    tpu.vector_store %arg11[%c0_25, %c0_26, %c0_27], %43 {strides = array<i32>} : memref<1x32x256xf32, #tpu.memory_space<vmem>>, vector<1x32x256xf32>,
    return
  }
  func.func @transform_0(%arg0: i32, %arg1: i32) -> (i32, i32, i32) {
    %c0_i32 = arith.constant 0 : i32
    %c0_i32_0 = arith.constant 0 : i32
    return %arg0, %c0_i32, %arg1 : i32, i32, i32
  }
  func.func @transform_1(%arg0: i32, %arg1: i32) -> (i32, i32, i32) {
    %c0_i32 = arith.constant 0 : i32
    %c0_i32_0 = arith.constant 0 : i32
    %c0_i32_1 = arith.constant 0 : i32
    return %arg0, %c0_i32, %c0_i32_0 : i32, i32, i32
  }
  func.func @transform_2(%arg0: i32, %arg1: i32) -> (i32, i32) {
    %c0_i32 = arith.constant 0 : i32
    %c0_i32_0 = arith.constant 0 : i32
    %c0_i32_1 = arith.constant 0 : i32
    return %c0_i32, %c0_i32_0 : i32, i32
  }
  func.func @transform_3(%arg0: i32, %arg1: i32) -> (i32, i32) {
    %c0_i32 = arith.constant 0 : i32
    %c0_i32_0 = arith.constant 0 : i32
    %c0_i32_1 = arith.constant 0 : i32
    return %c0_i32, %c0_i32_0 : i32, i32
  }
  func.func @transform_4(%arg0: i32, %arg1: i32) -> (i32, i32) {
    %c0_i32 = arith.constant 0 : i32
    %c0_i32_0 = arith.constant 0 : i32
    %c0_i32_1 = arith.constant 0 : i32
    return %c0_i32, %c0_i32_0 : i32, i32
  }
  func.func @transform_5(%arg0: i32, %arg1: i32) -> (i32, i32) {
    %c0_i32 = arith.constant 0 : i32
    %c0_i32_0 = arith.constant 0 : i32
    %c0_i32_1 = arith.constant 0 : i32
    return %c0_i32, %c0_i32_0 : i32, i32
  }
  func.func @transform_6(%arg0: i32, %arg1: i32) -> (i32, i32) {
    %c0_i32 = arith.constant 0 : i32
    %c0_i32_0 = arith.constant 0 : i32
    %c0_i32_1 = arith.constant 0 : i32
    return %c0_i32, %c0_i32_0 : i32, i32
  }
  func.func @transform_7(%arg0: i32, %arg1: i32) -> (i32, i32) {
    %c0_i32 = arith.constant 0 : i32
    %c0_i32_0 = arith.constant 0 : i32
    %c0_i32_1 = arith.constant 0 : i32
    return %c0_i32, %c0_i32_0 : i32, i32
  }
  func.func @transform_8(%arg0: i32, %arg1: i32) -> (i32, i32) {
    %c0_i32 = arith.constant 0 : i32
    %c0_i32_0 = arith.constant 0 : i32
    %c0_i32_1 = arith.constant 0 : i32
    return %c0_i32, %c0_i32_0 : i32, i32
  }
  func.func @transform_9(%arg0: i32, %arg1: i32) -> (i32, i32, i32) {
    %c0_i32 = arith.constant 0 : i32
    %c0_i32_0 = arith.constant 0 : i32
    return %arg0, %c0_i32, %arg1 : i32, i32, i32
  }
}

</mosaic_0001>

<llo_original>
// kernel: tpu_custom_call.1
$region0: #{tpu_custom_call.1}
  #allocation0 [shape = 'u32[]', space=smem, size = 0x4, offset = 0x4, fixed_abs, tag = 'smem constant byte address 0x4 - core index']
  #allocation1 [shape = 'u32[144,128]{1,0:T(1,128)}', space=vmem, size = 0x12000, scoped, tag = 'internal scratch']
  #allocation2 [shape = 'f32[1,1]{1,0:T(1,128)S(6)}', space=smem, size = 0x200, scoped, tag = 'scoped memory for tpu_custom_call.1']
  %s0 = inlined_call_operand.hbm [shape: f32[2,32,1024], index: 0, kind: input, shape index: {}]
  %s1 = inlined_call_operand.hbm [shape: f32[2,32,1024], index: 1, kind: input, shape index: {}]
  %s2 = inlined_call_operand.vmem [shape: bf16[32,4], index: 2, kind: input, shape index: {}]
  %s3 = inlined_call_operand.vmem [shape: f32[4,1], index: 3, kind: input, shape index: {}]
  %s4 = inlined_call_operand.vmem [shape: bf16[32,4], index: 4, kind: input, shape index: {}]
  %s5 = inlined_call_operand.vmem [shape: f32[4,1], index: 5, kind: input, shape index: {}]
  %s6 = inlined_call_operand.vmem [shape: bf16[32,32], index: 6, kind: input, shape index: {}]
  %s7 = inlined_call_operand.vmem [shape: f32[32,1], index: 7, kind: input, shape index: {}]
  %s8 = inlined_call_operand.<no memory space> [shape: f32[1,1], index: 8, kind: input, shape index: {}]
  %s9 = inlined_call_operand.hbm [shape: f32[2,32,1024], index: 9, kind: output, shape index: {}]
  %s10 = sld [smem:[#allocation0]]
  $region77: #{tpu_custom_call.1} parent=0
    _
  %s12 = ssub.s32 1, %s10
  %s13 = scalar_select 0, %s12, %s10
  %14 = sst [smem:[#allocation2]] %s8
  $region1: #{tpu_custom_call.1} parent=0
    #allocation3 [shape = 'u8[65536]{0}', space=vmem, size = 0x10000, scoped, tag = 'input window, operand 0']
    #allocation4 [shape = 's32[2]{0}', space=sflag, size = 0x8, scoped, tag = 'scoped memory for tpu_custom_call.1']
    #allocation5 [shape = 's32[2]{0}', space=sflag, size = 0x8, scoped, tag = 'scoped memory for tpu_custom_call.1']
    #allocation6 [shape = 'u8[262144]{0}', space=vmem, size = 0x40000, scoped, tag = 'input window, operand 1']
    #allocation7 [shape = 's32[2]{0}', space=sflag, size = 0x8, scoped, tag = 'scoped memory for tpu_custom_call.1']
    #allocation8 [shape = 'u8[65536]{0}', space=vmem, size = 0x10000, scoped, tag = 'output window, operand 0']
    %15 = vsyncpa [#allocation4], 0
    %s16 = scalar_lea.sflag [#allocation4], 1
    %17 = vsyncpa %s16, 0
    %18 = vsyncpa [#allocation7], 0
    %s19 = scalar_lea.sflag [#allocation7], 1
    %20 = vsyncpa %s19, 0
    %21 = vsyncpa [#allocation5], 0
    %s22 = scalar_lea.sflag [#allocation5], 1
    %23 = vsyncpa %s22, 0
    loop: start=0, step=1, limit=10
    $region2: #{tpu_custom_call.1} parent=1 // loop_pre_header
      _
    $region3: #{tpu_custom_call.1} parent=1 // loop_header
      %s25 = sphi 0, %s29
      %p26 = scmp.ge.s32.totalorder %s25, 10
      %s32 = sphi 0, %s44
      %s33 = sphi 0, %s40
      %s34 = sphi 0, %s32
      %s35 = sphi 0, %s33
      %s36 = sphi 0, %s34
      %s37 = sphi 0, %s35
      %s49 = sphi 0, %s51
      %s52 = sphi 0, %s49
      %s53 = sphi 0, %s52
      %s69 = sphi 0, %s53
      %s75 = sphi 0, %s77
      %s78 = sphi 0, %s75
      %s79 = sphi 0, %s78
      %s95 = sphi 0, %s79
      %s99 = sphi 0, %s99
      %s101 = sphi 0, %s99
      %s102 = sphi 0, %s101
      %s116 = sphi 0, %s102
      %s120 = sphi 0, %s120
      %s122 = sphi 0, %s120
      %s123 = sphi 0, %s122
      %s137 = sphi 0, %s123
      %s141 = sphi 0, %s141
      %s143 = sphi 0, %s141
      %s144 = sphi 0, %s143
      %s158 = sphi 0, %s144
      %s162 = sphi 0, %s162
      %s164 = sphi 0, %s162
      %s165 = sphi 0, %s164
      %s179 = sphi 0, %s165
      %s183 = sphi 0, %s183
      %s185 = sphi 0, %s183
      %s186 = sphi 0, %s185
      %s200 = sphi 0, %s186
      %s204 = sphi 0, %s204
      %s206 = sphi 0, %s204
      %s207 = sphi 0, %s206
      %s221 = sphi 0, %s207
      %s225 = sphi 0, %s225
      %s227 = sphi 0, %s225
      %s228 = sphi 0, %s227
      %s242 = sphi 0, %s228
      %s250 = sphi 0, %s252
      %s253 = sphi 0, %s250
      %s254 = sphi 0, %s253
      %s270 = sphi 0, %s254
    $region4: #{tpu_custom_call.1} parent=1 // loop_header_branch
      %28 = sbr.rel (%p26) target = $region8
    $region5: #{tpu_custom_call.1} parent=1 // loop_body
      %s30 = ssub.s32 %s25, 1
      %s31 = ssub.s32 %s25, 2
      %s38 = sadd.s32 1, %s33
      %p39 = scmp.ge.s32.totalorder %s38, 4
      %s40 = scalar_select %p39, 0, %s38
      %s41 = sadd.s32 1, %s32
      %s42 = scalar_select %p39, %s41, %s32
      %p43 = scmp.ge.s32.totalorder %s42, 2
      %s44 = scalar_select %p43, 0, %s42
      %s45 = ssub.s32 %s32, %s44
      %s46 = ssub.s32 %s33, %s40
      %s47 = sor.u32 %s45, %s46
      %p48 = scmp.eq.s32.totalorder %s47, 0
      %s50 = sadd.s32 %s49, 1
      %s51 = scalar_select %p48, %s49, %s50
      %p54 = pneg %p48
      %p55 = scmp.eq.s32.totalorder %s25, 7
      %p56 = por %p54, %p55
      %p57 = scmp.ne.s32.totalorder %s49, %s52
      %p58 = scmp.eq.s32.totalorder %s25, 0
      %p59 = por %p57, %p58
      %p60 = scmp.ne.s32.totalorder %s49, %s52
      %p61 = scmp.eq.s32.totalorder %s30, 7
      %p62 = por %p60, %p61
      %p63 = scmp.ne.s32.totalorder %s52, %s53
      %p64 = scmp.eq.s32.totalorder %s30, 0
      %p65 = por %p63, %p64
      %p66 = scmp.ne.s32.totalorder %s52, %s53
      %p67 = scmp.eq.s32.totalorder %s31, 7
      %p68 = por %p66, %p67
      %p70 = scmp.ne.s32.totalorder %s53, %s69
      %p71 = scmp.eq.s32.totalorder %s31, 0
      %p72 = por %p70, %p71
      %s73 = ssub.s32 %s32, %s44
      %p74 = scmp.eq.s32.totalorder %s73, 0
      %s76 = sadd.s32 %s75, 1
      %s77 = scalar_select %p74, %s75, %s76
      %p80 = pneg %p74
      %p81 = scmp.eq.s32.totalorder %s25, 7
      %p82 = por %p80, %p81
      %p83 = scmp.ne.s32.totalorder %s75, %s78
      %p84 = scmp.eq.s32.totalorder %s25, 0
      %p85 = por %p83, %p84
      %p86 = scmp.ne.s32.totalorder %s75, %s78
      %p87 = scmp.eq.s32.totalorder %s30, 7
      %p88 = por %p86, %p87
      %p89 = scmp.ne.s32.totalorder %s78, %s79
      %p90 = scmp.eq.s32.totalorder %s30, 0
      %p91 = por %p89, %p90
      %p92 = scmp.ne.s32.totalorder %s78, %s79
      %p93 = scmp.eq.s32.totalorder %s31, 7
      %p94 = por %p92, %p93
      %p96 = scmp.ne.s32.totalorder %s79, %s95
      %p97 = scmp.eq.s32.totalorder %s31, 0
      %p98 = por %p96, %p97
      %s100 = sadd.s32 %s99, 1
      %p103 = scmp.eq.s32.totalorder %s25, 7
      %p104 = scmp.ne.s32.totalorder %s99, %s101
      %p105 = scmp.eq.s32.totalorder %s25, 0
      %p106 = por %p104, %p105
      %p107 = scmp.ne.s32.totalorder %s99, %s101
      %p108 = scmp.eq.s32.totalorder %s30, 7
      %p109 = por %p107, %p108
      %p110 = scmp.ne.s32.totalorder %s101, %s102
      %p111 = scmp.eq.s32.totalorder %s30, 0
      %p112 = por %p110, %p111
      %p113 = scmp.ne.s32.totalorder %s101, %s102
      %p114 = scmp.eq.s32.totalorder %s31, 7
      %p115 = por %p113, %p114
      %p117 = scmp.ne.s32.totalorder %s102, %s116
      %p118 = scmp.eq.s32.totalorder %s31, 0
      %p119 = por %p117, %p118
      %s121 = sadd.s32 %s120, 1
      %p124 = scmp.eq.s32.totalorder %s25, 7
      %p125 = scmp.ne.s32.totalorder %s120, %s122
      %p126 = scmp.eq.s32.totalorder %s25, 0
      %p127 = por %p125, %p126
      %p128 = scmp.ne.s32.totalorder %s120, %s122
      %p129 = scmp.eq.s32.totalorder %s30, 7
      %p130 = por %p128, %p129
      %p131 = scmp.ne.s32.totalorder %s122, %s123
      %p132 = scmp.eq.s32.totalorder %s30, 0
      %p133 = por %p131, %p132
      %p134 = scmp.ne.s32.totalorder %s122, %s123
      %p135 = scmp.eq.s32.totalorder %s31, 7
      %p136 = por %p134, %p135
      %p138 = scmp.ne.s32.totalorder %s123, %s137
      %p139 = scmp.eq.s32.totalorder %s31, 0
      %p140 = por %p138, %p139
      %s142 = sadd.s32 %s141, 1
      %p145 = scmp.eq.s32.totalorder %s25, 7
      %p146 = scmp.ne.s32.totalorder %s141, %s143
      %p147 = scmp.eq.s32.totalorder %s25, 0
      %p148 = por %p146, %p147
      %p149 = scmp.ne.s32.totalorder %s141, %s143
      %p150 = scmp.eq.s32.totalorder %s30, 7
      %p151 = por %p149, %p150
      %p152 = scmp.ne.s32.totalorder %s143, %s144
      %p153 = scmp.eq.s32.totalorder %s30, 0
      %p154 = por %p152, %p153
      %p155 = scmp.ne.s32.totalorder %s143, %s144
      %p156 = scmp.eq.s32.totalorder %s31, 7
      %p157 = por %p155, %p156
      %p159 = scmp.ne.s32.totalorder %s144, %s158
      %p160 = scmp.eq.s32.totalorder %s31, 0
      %p161 = por %p159, %p160
      %s163 = sadd.s32 %s162, 1
      %p166 = scmp.eq.s32.totalorder %s25, 7
      %p167 = scmp.ne.s32.totalorder %s162, %s164
      %p168 = scmp.eq.s32.totalorder %s25, 0
      %p169 = por %p167, %p168
      %p170 = scmp.ne.s32.totalorder %s162, %s164
      %p171 = scmp.eq.s32.totalorder %s30, 7
      %p172 = por %p170, %p171
      %p173 = scmp.ne.s32.totalorder %s164, %s165
      %p174 = scmp.eq.s32.totalorder %s30, 0
      %p175 = por %p173, %p174
      %p176 = scmp.ne.s32.totalorder %s164, %s165
      %p177 = scmp.eq.s32.totalorder %s31, 7
      %p178 = por %p176, %p177
      %p180 = scmp.ne.s32.totalorder %s165, %s179
      %p181 = scmp.eq.s32.totalorder %s31, 0
      %p182 = por %p180, %p181
      %s184 = sadd.s32 %s183, 1
      %p187 = scmp.eq.s32.totalorder %s25, 7
      %p188 = scmp.ne.s32.totalorder %s183, %s185
      %p189 = scmp.eq.s32.totalorder %s25, 0
      %p190 = por %p188, %p189
      %p191 = scmp.ne.s32.totalorder %s183, %s185
      %p192 = scmp.eq.s32.totalorder %s30, 7
      %p193 = por %p191, %p192
      %p194 = scmp.ne.s32.totalorder %s185, %s186
      %p195 = scmp.eq.s32.totalorder %s30, 0
      %p196 = por %p194, %p195
      %p197 = scmp.ne.s32.totalorder %s185, %s186
      %p198 = scmp.eq.s32.totalorder %s31, 7
      %p199 = por %p197, %p198
      %p201 = scmp.ne.s32.totalorder %s186, %s200
      %p202 = scmp.eq.s32.totalorder %s31, 0
      %p203 = por %p201, %p202
      %s205 = sadd.s32 %s204, 1
      %p208 = scmp.eq.s32.totalorder %s25, 7
      %p209 = scmp.ne.s32.totalorder %s204, %s206
      %p210 = scmp.eq.s32.totalorder %s25, 0
      %p211 = por %p209, %p210
      %p212 = scmp.ne.s32.totalorder %s204, %s206
      %p213 = scmp.eq.s32.totalorder %s30, 7
      %p214 = por %p212, %p213
      %p215 = scmp.ne.s32.totalorder %s206, %s207
      %p216 = scmp.eq.s32.totalorder %s30, 0
      %p217 = por %p215, %p216
      %p218 = scmp.ne.s32.totalorder %s206, %s207
      %p219 = scmp.eq.s32.totalorder %s31, 7
      %p220 = por %p218, %p219
      %p222 = scmp.ne.s32.totalorder %s207, %s221
      %p223 = scmp.eq.s32.totalorder %s31, 0
      %p224 = por %p222, %p223
      %s226 = sadd.s32 %s225, 1
      %p229 = scmp.eq.s32.totalorder %s25, 7
      %p230 = scmp.ne.s32.totalorder %s225, %s227
      %p231 = scmp.eq.s32.totalorder %s25, 0
      %p232 = por %p230, %p231
      %p233 = scmp.ne.s32.totalorder %s225, %s227
      %p234 = scmp.eq.s32.totalorder %s30, 7
      %p235 = por %p233, %p234
      %p236 = scmp.ne.s32.totalorder %s227, %s228
      %p237 = scmp.eq.s32.totalorder %s30, 0
      %p238 = por %p236, %p237
      %p239 = scmp.ne.s32.totalorder %s227, %s228
      %p240 = scmp.eq.s32.totalorder %s31, 7
      %p241 = por %p239, %p240
      %p243 = scmp.ne.s32.totalorder %s228, %s242
      %p244 = scmp.eq.s32.totalorder %s31, 0
      %p245 = por %p243, %p244
      %s246 = ssub.s32 %s32, %s44
      %s247 = ssub.s32 %s33, %s40
      %s248 = sor.u32 %s246, %s247
      %p249 = scmp.eq.s32.totalorder %s248, 0
      %s251 = sadd.s32 %s250, 1
      %s252 = scalar_select %p249, %s250, %s251
      %p255 = pneg %p249
      %p256 = scmp.eq.s32.totalorder %s25, 7
      %p257 = por %p255, %p256
      %p258 = scmp.ne.s32.totalorder %s250, %s253
      %p259 = scmp.eq.s32.totalorder %s25, 0
      %p260 = por %p258, %p259
      %p261 = scmp.ne.s32.totalorder %s250, %s253
      %p262 = scmp.eq.s32.totalorder %s30, 7
      %p263 = por %p261, %p262
      %p264 = scmp.ne.s32.totalorder %s253, %s254
      %p265 = scmp.eq.s32.totalorder %s30, 0
      %p266 = por %p264, %p265
      %p267 = scmp.ne.s32.totalorder %s253, %s254
      %p268 = scmp.eq.s32.totalorder %s31, 7
      %p269 = por %p267, %p268
      %p271 = scmp.ne.s32.totalorder %s254, %s270
      %p272 = scmp.eq.s32.totalorder %s31, 0
      %p273 = por %p271, %p272
      %p274 = scmp.le.s32.totalorder 1, %s25
      %p275 = scmp.lt.s32.totalorder %s25, 9
      %p276 = pnand %p274, %p275
      %p277 = pneg %p276
      // Predicated region
      $region9: #{tpu_custom_call.1} parent=5 // pred_check
        _
      $region10: #{tpu_custom_call.1} parent=5 // pred_check_branch
        %279 = sbr.rel (%p276) target = $region12
      $region11: #{tpu_custom_call.1} parent=5 // pred_region
        %s280 = ssub.s32 %s25, 1
        // Predicated region
        $region13: #{tpu_custom_call.1} parent=11 // pred_check
          %p281 = pneg %p112
        $region14: #{tpu_custom_call.1} parent=11 // pred_check_branch
          %283 = sbr.rel (%p281) target = $region16
        $region15: #{tpu_custom_call.1} parent=11 // pred_region
          _
        $region16: #{tpu_custom_call.1} parent=11 // pred_fallthru
          _
        // Predicated region
        $region17: #{tpu_custom_call.1} parent=11 // pred_check
          %p284 = pneg %p133
        $region18: #{tpu_custom_call.1} parent=11 // pred_check_branch
          %286 = sbr.rel (%p284) target = $region20
        $region19: #{tpu_custom_call.1} parent=11 // pred_region
          _
        $region20: #{tpu_custom_call.1} parent=11 // pred_fallthru
          _
        // Predicated region
        $region21: #{tpu_custom_call.1} parent=11 // pred_check
          %p287 = pneg %p154
        $region22: #{tpu_custom_call.1} parent=11 // pred_check_branch
          %289 = sbr.rel (%p287) target = $region24
        $region23: #{tpu_custom_call.1} parent=11 // pred_region
          _
        $region24: #{tpu_custom_call.1} parent=11 // pred_fallthru
          _
        // Predicated region
        $region25: #{tpu_custom_call.1} parent=11 // pred_check
          %p290 = pneg %p175
        $region26: #{tpu_custom_call.1} parent=11 // pred_check_branch
          %292 = sbr.rel (%p290) target = $region28
        $region27: #{tpu_custom_call.1} parent=11 // pred_region
          _
        $region28: #{tpu_custom_call.1} parent=11 // pred_fallthru
          _
        // Predicated region
        $region29: #{tpu_custom_call.1} parent=11 // pred_check
          %p293 = pneg %p196
        $region30: #{tpu_custom_call.1} parent=11 // pred_check_branch
          %295 = sbr.rel (%p293) target = $region32
        $region31: #{tpu_custom_call.1} parent=11 // pred_region
          _
        $region32: #{tpu_custom_call.1} parent=11 // pred_fallthru
          _
        // Predicated region
        $region33: #{tpu_custom_call.1} parent=11 // pred_check
          %p296 = pneg %p217
        $region34: #{tpu_custom_call.1} parent=11 // pred_check_branch
          %298 = sbr.rel (%p296) target = $region36
        $region35: #{tpu_custom_call.1} parent=11 // pred_region
          _
        $region36: #{tpu_custom_call.1} parent=11 // pred_fallthru
          _
        // Predicated region
        $region37: #{tpu_custom_call.1} parent=11 // pred_check
          %p299 = pneg %p238
        $region38: #{tpu_custom_call.1} parent=11 // pred_check_branch
          %301 = sbr.rel (%p299) target = $region40
        $region39: #{tpu_custom_call.1} parent=11 // pred_region
          _
        $region40: #{tpu_custom_call.1} parent=11 // pred_fallthru
          _
      $region12: #{tpu_custom_call.1} parent=5 // pred_fallthru
        _
      %p302 = scmp.lt.s32.totalorder %s25, 8
      // Predicated region
      $region41: #{tpu_custom_call.1} parent=5 // pred_check
        %p303 = pneg %p302
      $region42: #{tpu_custom_call.1} parent=5 // pred_check_branch
        %305 = sbr.rel (%p303) target = $region44
      $region43: #{tpu_custom_call.1} parent=5 // pred_region
        // Predicated region
        $region45: #{tpu_custom_call.1} parent=43 // pred_check
          %p306 = pneg %p59
        $region46: #{tpu_custom_call.1} parent=43 // pred_check_branch
          %308 = sbr.rel (%p306) target = $region48
        $region47: #{tpu_custom_call.1} parent=43 // pred_region
          %s309 = sand.u32 %s49, 1
          %s310 = scalar_lea.sflag [#allocation4], %s309
          %s311 = sand.u32 %s49, 1
          %s312 = smul.addr %s311, 64
          %s313 = scalar_lea.vmem [#allocation3], %s312
          %s314 = smul.u32 2, %s33
          %s316 = ssub.s32 1024, 1024
          %317 = vsyncadd %s310, %s316
          %s318 = smul.addr %s32, 32
          %s319 = sadd.s32 %s314, %s318
          %s320 = smul.addr %s319, 128
          %s321 = scalar_lea.hbm %s0, %s320
          %s322 = sshll.u32 %s313, 4
          %s323 = int_to_ptr.vmem [resolvable:$true] %s322
          %328 = dma.hbm_to_vmem [thread:$0]  %s321, 1024, %s323, %s310, 1024, 256, 16
        $region48: #{tpu_custom_call.1} parent=43 // pred_fallthru
          _
        // Predicated region
        $region49: #{tpu_custom_call.1} parent=43 // pred_check
          %p329 = pneg %p85
        $region50: #{tpu_custom_call.1} parent=43 // pred_check_branch
          %331 = sbr.rel (%p329) target = $region52
        $region51: #{tpu_custom_call.1} parent=43 // pred_region
          %s332 = sand.u32 %s75, 1
          %s333 = scalar_lea.sflag [#allocation7], %s332
          %s334 = sand.u32 %s75, 1
          %s335 = smul.addr %s334, 256
          %s336 = scalar_lea.vmem [#allocation6], %s335
          %s338 = ssub.s32 4096, 4096
          %339 = vsyncadd %s333, %s338
          %s340 = smul.addr %s32, 32
          %s341 = smul.addr %s340, 128
          %s342 = scalar_lea.hbm %s1, %s341
          %s343 = sshll.u32 %s336, 4
          %s344 = int_to_ptr.vmem [resolvable:$true] %s343
          %349 = dma.hbm_to_vmem [thread:$0]  %s342, 4096, %s344, %s333, 1024, 1024, 64
        $region52: #{tpu_custom_call.1} parent=43 // pred_fallthru
          _
      $region44: #{tpu_custom_call.1} parent=5 // pred_fallthru
        _
      %p350 = scmp.le.s32.totalorder 1, %s25
      %p351 = scmp.lt.s32.totalorder %s25, 9
      %p352 = pnand %p350, %p351
      %p353 = pneg %p352
      // Predicated region
      $region53: #{tpu_custom_call.1} parent=5 // pred_check
        _
      $region54: #{tpu_custom_call.1} parent=5 // pred_check_branch
        %355 = sbr.rel (%p352) target = $region56
      $region55: #{tpu_custom_call.1} parent=5 // pred_region
        %s356 = ssub.s32 %s25, 1
        %s357 = sand.u32 %s52, 1
        %s358 = scalar_lea.sflag [#allocation4], %s357
        %s359 = sand.u32 %s52, 1
        %s360 = smul.addr %s359, 64
        %s361 = scalar_lea.vmem [#allocation3], %s360
        // Predicated region
        $region57: #{tpu_custom_call.1} parent=55 // pred_check
          %p362 = pneg %p65
        $region58: #{tpu_custom_call.1} parent=55 // pred_check_branch
          %364 = sbr.rel (%p362) target = $region60
        $region59: #{tpu_custom_call.1} parent=55 // pred_region
          %365 = dma.done %s358, 1024
        $region60: #{tpu_custom_call.1} parent=55 // pred_fallthru
          _
        %s366 = sand.u32 %s78, 1
        %s367 = scalar_lea.sflag [#allocation7], %s366
        %s368 = sand.u32 %s78, 1
        %s369 = smul.addr %s368, 256
        %s370 = scalar_lea.vmem [#allocation6], %s369
        // Predicated region
        $region61: #{tpu_custom_call.1} parent=55 // pred_check
          %p371 = pneg %p91
        $region62: #{tpu_custom_call.1} parent=55 // pred_check_branch
          %373 = sbr.rel (%p371) target = $region64
        $region63: #{tpu_custom_call.1} parent=55 // pred_region
          %374 = dma.done %s367, 4096
        $region64: #{tpu_custom_call.1} parent=55 // pred_fallthru
          _
        %s375 = sand.u32 %s52, 1
        %s376 = scalar_lea.sflag [#allocation4], %s375
        %s377 = sand.u32 %s52, 1
        %s378 = smul.addr %s377, 64
        %s379 = scalar_lea.vmem [#allocation3], %s378
        %p380 = pneg %p65
        %p381 = pneg %p62
        %s382 = sand.u32 %s78, 1
        %s383 = scalar_lea.sflag [#allocation7], %s382
        %s384 = sand.u32 %s78, 1
        %s385 = smul.addr %s384, 256
        %s386 = scalar_lea.vmem [#allocation6], %s385
        %p387 = pneg %p91
        %p388 = pneg %p88
        %p389 = pneg %p112
        %p390 = pneg %p109
        %p391 = pneg %p133
        %p392 = pneg %p130
        %p393 = pneg %p154
        %p394 = pneg %p151
        %p395 = pneg %p175
        %p396 = pneg %p172
        %p397 = pneg %p196
        %p398 = pneg %p193
        %p399 = pneg %p217
        %p400 = pneg %p214
        %p401 = pneg %p238
        %p402 = pneg %p235
        %p403 = pneg %p266
        %p404 = pneg %p263
        %s405 = sand.u32 %s253, 1
        %s406 = scalar_lea.sflag [#allocation5], %s405
        %s407 = sand.u32 %s253, 1
        %s408 = smul.addr %s407, 64
        %s409 = scalar_lea.vmem [#allocation8], %s408
        %s410 = smul.u32 2, %s35
        %s411 = smul.u32 2, %s35
        %v413 = vld [vmem:[%s361] sm:$0xff]
        %v414 = vld [vmem:[%s361 + $0x8] sm:$0xff]
        %v415 = vld [vmem:[%s361 + $0x10] sm:$0xff]
        %v416 = vld [vmem:[%s361 + $0x18] sm:$0xff]
        %v417 = vld [vmem:[%s361 + $0x20] sm:$0xff]
        %v418 = vld [vmem:[%s361 + $0x28] sm:$0xff]
        %v419 = vld [vmem:[%s361 + $0x30] sm:$0xff]
        %v420 = vld [vmem:[%s361 + $0x38] sm:$0xff]
        %v421 = vpack.c.bf16 %v415, %v413
        %v422 = vpack.c.bf16 %v416, %v414
        %v423 = vpack.c.bf16 %v419, %v417
        %v424 = vpack.c.bf16 %v420, %v418
        %v425 = vld [vmem:[%s370] sm:$0xff]
        %v426 = vld [vmem:[%s370 + $0x8] sm:$0xff]
        %v427 = vld [vmem:[%s370 + $0x10] sm:$0xff]
        %v428 = vld [vmem:[%s370 + $0x18] sm:$0xff]
        %v429 = vld [vmem:[%s370 + $0x20] sm:$0xff]
        %v430 = vld [vmem:[%s370 + $0x28] sm:$0xff]
        %v431 = vld [vmem:[%s370 + $0x30] sm:$0xff]
        %v432 = vld [vmem:[%s370 + $0x38] sm:$0xff]
        %v433 = vld [vmem:[%s370 + $0x40] sm:$0xff]
        %v434 = vld [vmem:[%s370 + $0x48] sm:$0xff]
        %v435 = vld [vmem:[%s370 + $0x50] sm:$0xff]
        %v436 = vld [vmem:[%s370 + $0x58] sm:$0xff]
        %v437 = vld [vmem:[%s370 + $0x60] sm:$0xff]
        %v438 = vld [vmem:[%s370 + $0x68] sm:$0xff]
        %v439 = vld [vmem:[%s370 + $0x70] sm:$0xff]
        %v440 = vld [vmem:[%s370 + $0x78] sm:$0xff]
        %v441 = vld [vmem:[%s370 + $0x80] sm:$0xff]
        %v442 = vld [vmem:[%s370 + $0x88] sm:$0xff]
        %v443 = vld [vmem:[%s370 + $0x90] sm:$0xff]
        %v444 = vld [vmem:[%s370 + $0x98] sm:$0xff]
        %v445 = vld [vmem:[%s370 + $0xa0] sm:$0xff]
        %v446 = vld [vmem:[%s370 + $0xa8] sm:$0xff]
        %v447 = vld [vmem:[%s370 + $0xb0] sm:$0xff]
        %v448 = vld [vmem:[%s370 + $0xb8] sm:$0xff]
        %v449 = vld [vmem:[%s370 + $0xc0] sm:$0xff]
        %v450 = vld [vmem:[%s370 + $0xc8] sm:$0xff]
        %v451 = vld [vmem:[%s370 + $0xd0] sm:$0xff]
        %v452 = vld [vmem:[%s370 + $0xd8] sm:$0xff]
        %v453 = vld [vmem:[%s370 + $0xe0] sm:$0xff]
        %v454 = vld [vmem:[%s370 + $0xe8] sm:$0xff]
        %v455 = vld [vmem:[%s370 + $0xf0] sm:$0xff]
        %v456 = vld [vmem:[%s370 + $0xf8] sm:$0xff]
        %v457 = vpack.c.bf16 %v433, %v425
        %v458 = vpack.c.bf16 %v434, %v426
        %v459 = vpack.c.bf16 %v435, %v427
        %v460 = vpack.c.bf16 %v436, %v428
        %v461 = vpack.c.bf16 %v437, %v429
        %v462 = vpack.c.bf16 %v438, %v430
        %v463 = vpack.c.bf16 %v439, %v431
        %v464 = vpack.c.bf16 %v440, %v432
        %v465 = vpack.c.bf16 %v449, %v441
        %v466 = vpack.c.bf16 %v450, %v442
        %v467 = vpack.c.bf16 %v451, %v443
        %v468 = vpack.c.bf16 %v452, %v444
        %v469 = vpack.c.bf16 %v453, %v445
        %v470 = vpack.c.bf16 %v454, %v446
        %v471 = vpack.c.bf16 %v455, %v447
        %v472 = vpack.c.bf16 %v456, %v448
        %v473 = vld [vmem:[%s2] sm:$0xf]
        %v474 = vld [vmem:[%s2 + $0x4] sm:$0xf]
        %v475 = vld [vmem:[%s2 + $0x8] sm:$0xf]
        %v476 = vld [vmem:[%s2 + $0xc] sm:$0xf]
        %v477 = vld [vmem:[%s3] sm:$0xf]
        %479 = vset.pattern.permute.xlu0 0
        %480 = vperm.xlu0 %479, %v477
        %v481 = vpop.permute.xlu0 %480
        %v487 = vunpack.c.l.b16 %v473
        %v488 = vunpack.c.l.b16 %v474
        %v489 = vunpack.c.l.b16 %v475
        %v490 = vunpack.c.l.b16 %v476
        %v491 = vpack.c.b16 %v488, %v487
        %v492 = vpack.c.b16 %v490, %v489
        %495 = vxpose.xlu0.c.b16.start [1/8] %v491, 128
        %496 = vxpose.xlu0.c.b16.cont [2/8] %v492, 128
        %497 = vxpose.xlu0.c.b16.cont [3/8] 0, 128
        %498 = vxpose.xlu0.c.b16.cont [4/8] 0, 128
        %499 = vxpose.xlu0.c.b16.cont [5/8] 0, 128
        %500 = vxpose.xlu0.c.b16.cont [6/8] 0, 128
        %501 = vxpose.xlu0.c.b16.cont [7/8] 0, 128
        %502 = vxpose.xlu0.c.b16.end [8/8] 0, 128
        %v503 = vpop.trf.xlu0
        %v504 = vpop.trf.xlu0
        %v505 = vpop.trf.xlu0
        %v506 = vpop.trf.xlu0
        %v507 = vpop.trf.xlu0
        %v508 = vpop.trf.xlu0
        %v509 = vpop.trf.xlu0
        %v510 = vpop.trf.xlu0
        %vm511 = vcmask 261120
        %v513 = vsel %vm511, %v503, 0
        %515 = vmatprep.subr.bf16.mxu0 %v422
        %516 = vmatpush1.bf16.msra.mxu0 %v421
        %517 = vmatprep.subr.bf16.mxu0 %v424
        %518 = vmatpush1.bf16.msra.mxu0 %v423
        %519 = vmatprep.subr.bf16.mxu0 0
        %520 = vmatpush1.bf16.msra.mxu0 0
        %521 = vmatprep.subr.bf16.mxu0 0
        %522 = vmatpush1.bf16.msra.mxu0 0
        %523 = vmatprep.subr.bf16.mxu0 0
        %524 = vmatpush1.bf16.msra.mxu0 0
        %525 = vmatprep.subr.bf16.mxu0 0
        %526 = vmatpush1.bf16.msra.mxu0 0
        %527 = vmatprep.subr.bf16.mxu0 0
        %528 = vmatpush1.bf16.msra.mxu0 0
        %529 = vmatprep.subr.bf16.mxu0 0
        %530 = vmatpush1.bf16.msra.mxu0 0
        %531 = vmatprep.subr.bf16.mxu0 0
        %532 = vmatpush1.bf16.msra.mxu0 0
        %533 = vmatprep.subr.bf16.mxu0 0
        %534 = vmatpush1.bf16.msra.mxu0 0
        %535 = vmatprep.subr.bf16.mxu0 0
        %536 = vmatpush1.bf16.msra.mxu0 0
        %537 = vmatprep.subr.bf16.mxu0 0
        %538 = vmatpush1.bf16.msra.mxu0 0
        %539 = vmatprep.subr.bf16.mxu0 0
        %540 = vmatpush1.bf16.msra.mxu0 0
        %541 = vmatprep.subr.bf16.mxu0 0
        %542 = vmatpush1.bf16.msra.mxu0 0
        %543 = vmatprep.subr.bf16.mxu0 0
        %544 = vmatpush1.bf16.msra.mxu0 0
        %545 = vmatprep.subr.bf16.mxu0 0
        %546 = vmatpush1.bf16.msra.mxu0 0
        %547 = vmatprep.mubr.bf16.mxu0 0
        %548 = vmatmul.mubr.bf16.gmra.mrb[0].mxu0 %v513
        %v549 = vpop.f32.mrb[0].mxu0
        %v550 = vadd.f32 %v481, %v549
        %v551 = vpop.f32.mrb[0].mxu0
        %v552 = vadd.f32 %v481, %v551
        %v553 = vpop.f32.mrb[0].mxu0
        %v554 = vpop.f32.mrb[0].mxu0
        %555 = vdwg.mxu0
        %v556 = vld [vmem:[%s4] sm:$0xf]
        %v557 = vld [vmem:[%s4 + $0x4] sm:$0xf]
        %v558 = vld [vmem:[%s4 + $0x8] sm:$0xf]
        %v559 = vld [vmem:[%s4 + $0xc] sm:$0xf]
        %v560 = vld [vmem:[%s5] sm:$0xf]
        %562 = vset.pattern.permute.xlu0 0
        %563 = vperm.xlu0 %562, %v560
        %v564 = vpop.permute.xlu0 %563
        %v570 = vunpack.c.l.b16 %v556
        %v571 = vunpack.c.l.b16 %v557
        %v572 = vunpack.c.l.b16 %v558
        %v573 = vunpack.c.l.b16 %v559
        %v574 = vpack.c.b16 %v571, %v570
        %v575 = vpack.c.b16 %v573, %v572
        %578 = vxpose.xlu0.c.b16.start [1/8] %v574, 128
        %579 = vxpose.xlu0.c.b16.cont [2/8] %v575, 128
        %580 = vxpose.xlu0.c.b16.cont [3/8] 0, 128
        %581 = vxpose.xlu0.c.b16.cont [4/8] 0, 128
        %582 = vxpose.xlu0.c.b16.cont [5/8] 0, 128
        %583 = vxpose.xlu0.c.b16.cont [6/8] 0, 128
        %584 = vxpose.xlu0.c.b16.cont [7/8] 0, 128
        %585 = vxpose.xlu0.c.b16.end [8/8] 0, 128
        %v586 = vpop.trf.xlu0
        %v587 = vpop.trf.xlu0
        %v588 = vpop.trf.xlu0
        %v589 = vpop.trf.xlu0
        %v590 = vpop.trf.xlu0
        %v591 = vpop.trf.xlu0
        %v592 = vpop.trf.xlu0
        %v593 = vpop.trf.xlu0
        %v595 = vsel %vm511, %v586, 0
        %597 = vmatprep.subr.bf16.mxu0 %v458
        %598 = vmatpush1.bf16.msra.mxu0 %v457
        %599 = vmatprep.subr.bf16.mxu0 %v466
        %600 = vmatpush1.bf16.msra.mxu0 %v465
        %601 = vmatprep.subr.bf16.mxu0 0
        %602 = vmatpush1.bf16.msra.mxu0 0
        %603 = vmatprep.subr.bf16.mxu0 0
        %604 = vmatpush1.bf16.msra.mxu0 0
        %605 = vmatprep.subr.bf16.mxu0 0
        %606 = vmatpush1.bf16.msra.mxu0 0
        %607 = vmatprep.subr.bf16.mxu0 0
        %608 = vmatpush1.bf16.msra.mxu0 0
        %609 = vmatprep.subr.bf16.mxu0 0
        %610 = vmatpush1.bf16.msra.mxu0 0
        %611 = vmatprep.subr.bf16.mxu0 0
        %612 = vmatpush1.bf16.msra.mxu0 0
        %613 = vmatprep.subr.bf16.mxu0 0
        %614 = vmatpush1.bf16.msra.mxu0 0
        %615 = vmatprep.subr.bf16.mxu0 0
        %616 = vmatpush1.bf16.msra.mxu0 0
        %617 = vmatprep.subr.bf16.mxu0 0
        %618 = vmatpush1.bf16.msra.mxu0 0
        %619 = vmatprep.subr.bf16.mxu0 0
        %620 = vmatpush1.bf16.msra.mxu0 0
        %621 = vmatprep.subr.bf16.mxu0 0
        %622 = vmatpush1.bf16.msra.mxu0 0
        %623 = vmatprep.subr.bf16.mxu0 0
        %624 = vmatpush1.bf16.msra.mxu0 0
        %625 = vmatprep.subr.bf16.mxu0 0
        %626 = vmatpush1.bf16.msra.mxu0 0
        %627 = vmatprep.subr.bf16.mxu0 0
        %628 = vmatpush1.bf16.msra.mxu0 0
        %629 = vmatprep.mubr.bf16.mxu0 0
        %630 = vmatmul.mubr.bf16.gmra.mrb[0].mxu0 %v595
        %v631 = vpop.f32.mrb[0].mxu0
        %v632 = vadd.f32 %v564, %v631
        %v633 = vpop.f32.mrb[0].mxu0
        %v634 = vadd.f32 %v564, %v633
        %v635 = vpop.f32.mrb[0].mxu0
        %v636 = vpop.f32.mrb[0].mxu0
        %637 = vdwg.mxu0
        %638 = vmatprep.subr.bf16.mxu0 %v460
        %639 = vmatpush1.bf16.msra.mxu0 %v459
        %640 = vmatprep.subr.bf16.mxu0 %v468
        %641 = vmatpush1.bf16.msra.mxu0 %v467
        %642 = vmatprep.subr.bf16.mxu0 0
        %643 = vmatpush1.bf16.msra.mxu0 0
        %644 = vmatprep.subr.bf16.mxu0 0
        %645 = vmatpush1.bf16.msra.mxu0 0
        %646 = vmatprep.subr.bf16.mxu0 0
        %647 = vmatpush1.bf16.msra.mxu0 0
        %648 = vmatprep.subr.bf16.mxu0 0
        %649 = vmatpush1.bf16.msra.mxu0 0
        %650 = vmatprep.subr.bf16.mxu0 0
        %651 = vmatpush1.bf16.msra.mxu0 0
        %652 = vmatprep.subr.bf16.mxu0 0
        %653 = vmatpush1.bf16.msra.mxu0 0
        %654 = vmatprep.subr.bf16.mxu0 0
        %655 = vmatpush1.bf16.msra.mxu0 0
        %656 = vmatprep.subr.bf16.mxu0 0
        %657 = vmatpush1.bf16.msra.mxu0 0
        %658 = vmatprep.subr.bf16.mxu0 0
        %659 = vmatpush1.bf16.msra.mxu0 0
        %660 = vmatprep.subr.bf16.mxu0 0
        %661 = vmatpush1.bf16.msra.mxu0 0
        %662 = vmatprep.subr.bf16.mxu0 0
        %663 = vmatpush1.bf16.msra.mxu0 0
        %664 = vmatprep.subr.bf16.mxu0 0
        %665 = vmatpush1.bf16.msra.mxu0 0
        %666 = vmatprep.subr.bf16.mxu0 0
        %667 = vmatpush1.bf16.msra.mxu0 0
        %668 = vmatprep.subr.bf16.mxu0 0
        %669 = vmatpush1.bf16.msra.mxu0 0
        %670 = vmatprep.mubr.bf16.mxu0 0
        %671 = vmatmul.mubr.bf16.gmra.mrb[0].mxu0 %v595
        %v672 = vpop.f32.mrb[0].mxu0
        %v673 = vadd.f32 %v564, %v672
        %v674 = vpop.f32.mrb[0].mxu0
        %v675 = vadd.f32 %v564, %v674
        %v676 = vpop.f32.mrb[0].mxu0
        %v677 = vpop.f32.mrb[0].mxu0
        %678 = vdwg.mxu0
        %679 = vmatprep.subr.bf16.mxu0 %v462
        %680 = vmatpush1.bf16.msra.mxu0 %v461
        %681 = vmatprep.subr.bf16.mxu0 %v470
        %682 = vmatpush1.bf16.msra.mxu0 %v469
        %683 = vmatprep.subr.bf16.mxu0 0
        %684 = vmatpush1.bf16.msra.mxu0 0
        %685 = vmatprep.subr.bf16.mxu0 0
        %686 = vmatpush1.bf16.msra.mxu0 0
        %687 = vmatprep.subr.bf16.mxu0 0
        %688 = vmatpush1.bf16.msra.mxu0 0
        %689 = vmatprep.subr.bf16.mxu0 0
        %690 = vmatpush1.bf16.msra.mxu0 0
        %691 = vmatprep.subr.bf16.mxu0 0
        %692 = vmatpush1.bf16.msra.mxu0 0
        %693 = vmatprep.subr.bf16.mxu0 0
        %694 = vmatpush1.bf16.msra.mxu0 0
        %695 = vmatprep.subr.bf16.mxu0 0
        %696 = vmatpush1.bf16.msra.mxu0 0
        %697 = vmatprep.subr.bf16.mxu0 0
        %698 = vmatpush1.bf16.msra.mxu0 0
        %699 = vmatprep.subr.bf16.mxu0 0
        %700 = vmatpush1.bf16.msra.mxu0 0
        %701 = vmatprep.subr.bf16.mxu0 0
        %702 = vmatpush1.bf16.msra.mxu0 0
        %703 = vmatprep.subr.bf16.mxu0 0
        %704 = vmatpush1.bf16.msra.mxu0 0
        %705 = vmatprep.subr.bf16.mxu0 0
        %706 = vmatpush1.bf16.msra.mxu0 0
        %707 = vmatprep.subr.bf16.mxu0 0
        %708 = vmatpush1.bf16.msra.mxu0 0
        %709 = vmatprep.subr.bf16.mxu0 0
        %710 = vmatpush1.bf16.msra.mxu0 0
        %711 = vmatprep.mubr.bf16.mxu0 0
        %712 = vmatmul.mubr.bf16.gmra.mrb[0].mxu0 %v595
        %v713 = vpop.f32.mrb[0].mxu0
        %v714 = vadd.f32 %v564, %v713
        %v715 = vpop.f32.mrb[0].mxu0
        %v716 = vadd.f32 %v564, %v715
        %v717 = vpop.f32.mrb[0].mxu0
        %v718 = vpop.f32.mrb[0].mxu0
        %719 = vdwg.mxu0
        %720 = vmatprep.subr.bf16.mxu0 %v464
        %721 = vmatpush1.bf16.msra.mxu0 %v463
        %722 = vmatprep.subr.bf16.mxu0 %v472
        %723 = vmatpush1.bf16.msra.mxu0 %v471
        %724 = vmatprep.subr.bf16.mxu0 0
        %725 = vmatpush1.bf16.msra.mxu0 0
        %726 = vmatprep.subr.bf16.mxu0 0
        %727 = vmatpush1.bf16.msra.mxu0 0
        %728 = vmatprep.subr.bf16.mxu0 0
        %729 = vmatpush1.bf16.msra.mxu0 0
        %730 = vmatprep.subr.bf16.mxu0 0
        %731 = vmatpush1.bf16.msra.mxu0 0
        %732 = vmatprep.subr.bf16.mxu0 0
        %733 = vmatpush1.bf16.msra.mxu0 0
        %734 = vmatprep.subr.bf16.mxu0 0
        %735 = vmatpush1.bf16.msra.mxu0 0
        %736 = vmatprep.subr.bf16.mxu0 0
        %737 = vmatpush1.bf16.msra.mxu0 0
        %738 = vmatprep.subr.bf16.mxu0 0
        %739 = vmatpush1.bf16.msra.mxu0 0
        %740 = vmatprep.subr.bf16.mxu0 0
        %741 = vmatpush1.bf16.msra.mxu0 0
        %742 = vmatprep.subr.bf16.mxu0 0
        %743 = vmatpush1.bf16.msra.mxu0 0
        %744 = vmatprep.subr.bf16.mxu0 0
        %745 = vmatpush1.bf16.msra.mxu0 0
        %746 = vmatprep.subr.bf16.mxu0 0
        %747 = vmatpush1.bf16.msra.mxu0 0
        %748 = vmatprep.subr.bf16.mxu0 0
        %749 = vmatpush1.bf16.msra.mxu0 0
        %750 = vmatprep.subr.bf16.mxu0 0
        %751 = vmatpush1.bf16.msra.mxu0 0
        %752 = vmatprep.mubr.bf16.mxu0 0
        %753 = vmatmul.mubr.bf16.gmra.mrb[0].mxu0 %v595
        %v754 = vpop.f32.mrb[0].mxu0
        %v755 = vadd.f32 %v564, %v754
        %v756 = vpop.f32.mrb[0].mxu0
        %v757 = vadd.f32 %v564, %v756
        %v758 = vpop.f32.mrb[0].mxu0
        %v759 = vpop.f32.mrb[0].mxu0
        %760 = vdwg.mxu0
        %v761 = vld [vmem:[%s6] sm:$0xf]
        %v762 = vld [vmem:[%s6 + $0x4] sm:$0xf]
        %v763 = vld [vmem:[%s6 + $0x8] sm:$0xf]
        %v764 = vld [vmem:[%s6 + $0xc] sm:$0xf]
        %v765 = vld [vmem:[%s7] sm:$0xff]
        %v766 = vld [vmem:[%s7 + $0x8] sm:$0xff]
        %v767 = vld [vmem:[%s7 + $0x10] sm:$0xff]
        %v768 = vld [vmem:[%s7 + $0x18] sm:$0xff]
        %770 = vset.pattern.permute.xlu0 0
        %771 = vperm.xlu0 %770, %v765
        %v772 = vpop.permute.xlu0 %771
        %775 = vset.pattern.permute.xlu0 0
        %776 = vperm.xlu0 %775, %v766
        %v777 = vpop.permute.xlu0 %776
        %780 = vset.pattern.permute.xlu0 0
        %781 = vperm.xlu0 %780, %v767
        %v782 = vpop.permute.xlu0 %781
        %785 = vset.pattern.permute.xlu0 0
        %786 = vperm.xlu0 %785, %v768
        %v787 = vpop.permute.xlu0 %786
        %v793 = vunpack.c.l.b16 %v761
        %v794 = vunpack.c.l.b16 %v762
        %v795 = vunpack.c.l.b16 %v763
        %v796 = vunpack.c.l.b16 %v764
        %v797 = vpack.c.b16 %v794, %v793
        %v798 = vpack.c.b16 %v796, %v795
        %801 = vxpose.xlu0.c.b16.start [1/8] %v797, 128
        %802 = vxpose.xlu0.c.b16.cont [2/8] %v798, 128
        %803 = vxpose.xlu0.c.b16.cont [3/8] 0, 128
        %804 = vxpose.xlu0.c.b16.cont [4/8] 0, 128
        %805 = vxpose.xlu0.c.b16.cont [5/8] 0, 128
        %806 = vxpose.xlu0.c.b16.cont [6/8] 0, 128
        %807 = vxpose.xlu0.c.b16.cont [7/8] 0, 128
        %808 = vxpose.xlu0.c.b16.end [8/8] 0, 128
        %v809 = vpop.trf.xlu0
        %v810 = vpop.trf.xlu0
        %v811 = vpop.trf.xlu0
        %v812 = vpop.trf.xlu0
        %v813 = vpop.trf.xlu0
        %v814 = vpop.trf.xlu0
        %v815 = vpop.trf.xlu0
        %v816 = vpop.trf.xlu0
        %v818 = vsel %vm511, %v809, 0
        %v821 = vsel %vm511, %v810, 0
        %823 = vmatprep.subr.bf16.mxu0 %v458
        %824 = vmatpush1.bf16.msra.mxu0 %v457
        %825 = vmatprep.subr.bf16.mxu0 %v466
        %826 = vmatpush1.bf16.msra.mxu0 %v465
        %827 = vmatprep.subr.bf16.mxu0 0
        %828 = vmatpush1.bf16.msra.mxu0 0
        %829 = vmatprep.subr.bf16.mxu0 0
        %830 = vmatpush1.bf16.msra.mxu0 0
        %831 = vmatprep.subr.bf16.mxu0 0
        %832 = vmatpush1.bf16.msra.mxu0 0
        %833 = vmatprep.subr.bf16.mxu0 0
        %834 = vmatpush1.bf16.msra.mxu0 0
        %835 = vmatprep.subr.bf16.mxu0 0
        %836 = vmatpush1.bf16.msra.mxu0 0
        %837 = vmatprep.subr.bf16.mxu0 0
        %838 = vmatpush1.bf16.msra.mxu0 0
        %839 = vmatprep.subr.bf16.mxu0 0
        %840 = vmatpush1.bf16.msra.mxu0 0
        %841 = vmatprep.subr.bf16.mxu0 0
        %842 = vmatpush1.bf16.msra.mxu0 0
        %843 = vmatprep.subr.bf16.mxu0 0
        %844 = vmatpush1.bf16.msra.mxu0 0
        %845 = vmatprep.subr.bf16.mxu0 0
        %846 = vmatpush1.bf16.msra.mxu0 0
        %847 = vmatprep.subr.bf16.mxu0 0
        %848 = vmatpush1.bf16.msra.mxu0 0
        %849 = vmatprep.subr.bf16.mxu0 0
        %850 = vmatpush1.bf16.msra.mxu0 0
        %851 = vmatprep.subr.bf16.mxu0 0
        %852 = vmatpush1.bf16.msra.mxu0 0
        %853 = vmatprep.subr.bf16.mxu0 0
        %854 = vmatpush1.bf16.msra.mxu0 0
        %855 = vmatprep.mubr.bf16.mxu0 0
        %856 = vmatmul.mubr.bf16.gmra.mrb[0].mxu0 %v818
        %v857 = vpop.f32.mrb[0].mxu0
        %v858 = vadd.f32 %v772, %v857
        %v859 = vpop.f32.mrb[0].mxu0
        %v860 = vadd.f32 %v772, %v859
        %v861 = vpop.f32.mrb[0].mxu0
        %v862 = vadd.f32 %v777, %v861
        %v863 = vpop.f32.mrb[0].mxu0
        %v864 = vadd.f32 %v777, %v863
        %865 = vmatprep.mubr.bf16.mxu0 0
        %866 = vmatmul.mubr.bf16.gmra.mrb[0].mxu0 %v821
        %v867 = vpop.f32.mrb[0].mxu0
        %v868 = vadd.f32 %v782, %v867
        %v869 = vpop.f32.mrb[0].mxu0
        %v870 = vadd.f32 %v782, %v869
        %v871 = vpop.f32.mrb[0].mxu0
        %v872 = vadd.f32 %v787, %v871
        %v873 = vpop.f32.mrb[0].mxu0
        %v874 = vadd.f32 %v787, %v873
        %875 = vdwg.mxu0
        %876 = vmatprep.subr.bf16.mxu0 %v460
        %877 = vmatpush1.bf16.msra.mxu0 %v459
        %878 = vmatprep.subr.bf16.mxu0 %v468
        %879 = vmatpush1.bf16.msra.mxu0 %v467
        %880 = vmatprep.subr.bf16.mxu0 0
        %881 = vmatpush1.bf16.msra.mxu0 0
        %882 = vmatprep.subr.bf16.mxu0 0
        %883 = vmatpush1.bf16.msra.mxu0 0
        %884 = vmatprep.subr.bf16.mxu0 0
        %885 = vmatpush1.bf16.msra.mxu0 0
        %886 = vmatprep.subr.bf16.mxu0 0
        %887 = vmatpush1.bf16.msra.mxu0 0
        %888 = vmatprep.subr.bf16.mxu0 0
        %889 = vmatpush1.bf16.msra.mxu0 0
        %890 = vmatprep.subr.bf16.mxu0 0
        %891 = vmatpush1.bf16.msra.mxu0 0
        %892 = vmatprep.subr.bf16.mxu0 0
        %893 = vmatpush1.bf16.msra.mxu0 0
        %894 = vmatprep.subr.bf16.mxu0 0
        %895 = vmatpush1.bf16.msra.mxu0 0
        %896 = vmatprep.subr.bf16.mxu0 0
        %897 = vmatpush1.bf16.msra.mxu0 0
        %898 = vmatprep.subr.bf16.mxu0 0
        %899 = vmatpush1.bf16.msra.mxu0 0
        %900 = vmatprep.subr.bf16.mxu0 0
        %901 = vmatpush1.bf16.msra.mxu0 0
        %902 = vmatprep.subr.bf16.mxu0 0
        %903 = vmatpush1.bf16.msra.mxu0 0
        %904 = vmatprep.subr.bf16.mxu0 0
        %905 = vmatpush1.bf16.msra.mxu0 0
        %906 = vmatprep.subr.bf16.mxu0 0
        %907 = vmatpush1.bf16.msra.mxu0 0
        %908 = vmatprep.mubr.bf16.mxu0 0
        %909 = vmatmul.mubr.bf16.gmra.mrb[0].mxu0 %v818
        %v910 = vpop.f32.mrb[0].mxu0
        %v911 = vadd.f32 %v772, %v910
        %v912 = vpop.f32.mrb[0].mxu0
        %v913 = vadd.f32 %v772, %v912
        %v914 = vpop.f32.mrb[0].mxu0
        %v915 = vadd.f32 %v777, %v914
        %v916 = vpop.f32.mrb[0].mxu0
        %v917 = vadd.f32 %v777, %v916
        %918 = vmatprep.mubr.bf16.mxu0 0
        %919 = vmatmul.mubr.bf16.gmra.mrb[0].mxu0 %v821
        %v920 = vpop.f32.mrb[0].mxu0
        %v921 = vadd.f32 %v782, %v920
        %v922 = vpop.f32.mrb[0].mxu0
        %v923 = vadd.f32 %v782, %v922
        %v924 = vpop.f32.mrb[0].mxu0
        %v925 = vadd.f32 %v787, %v924
        %v926 = vpop.f32.mrb[0].mxu0
        %v927 = vadd.f32 %v787, %v926
        %928 = vdwg.mxu0
        %929 = vmatprep.subr.bf16.mxu0 %v462
        %930 = vmatpush1.bf16.msra.mxu0 %v461
        %931 = vmatprep.subr.bf16.mxu0 %v470
        %932 = vmatpush1.bf16.msra.mxu0 %v469
        %933 = vmatprep.subr.bf16.mxu0 0
        %934 = vmatpush1.bf16.msra.mxu0 0
        %935 = vmatprep.subr.bf16.mxu0 0
        %936 = vmatpush1.bf16.msra.mxu0 0
        %937 = vmatprep.subr.bf16.mxu0 0
        %938 = vmatpush1.bf16.msra.mxu0 0
        %939 = vmatprep.subr.bf16.mxu0 0
        %940 = vmatpush1.bf16.msra.mxu0 0
        %941 = vmatprep.subr.bf16.mxu0 0
        %942 = vmatpush1.bf16.msra.mxu0 0
        %943 = vmatprep.subr.bf16.mxu0 0
        %944 = vmatpush1.bf16.msra.mxu0 0
        %945 = vmatprep.subr.bf16.mxu0 0
        %946 = vmatpush1.bf16.msra.mxu0 0
        %947 = vmatprep.subr.bf16.mxu0 0
        %948 = vmatpush1.bf16.msra.mxu0 0
        %949 = vmatprep.subr.bf16.mxu0 0
        %950 = vmatpush1.bf16.msra.mxu0 0
        %951 = vmatprep.subr.bf16.mxu0 0
        %952 = vmatpush1.bf16.msra.mxu0 0
        %953 = vmatprep.subr.bf16.mxu0 0
        %954 = vmatpush1.bf16.msra.mxu0 0
        %955 = vmatprep.subr.bf16.mxu0 0
        %956 = vmatpush1.bf16.msra.mxu0 0
        %957 = vmatprep.subr.bf16.mxu0 0
        %958 = vmatpush1.bf16.msra.mxu0 0
        %959 = vmatprep.subr.bf16.mxu0 0
        %960 = vmatpush1.bf16.msra.mxu0 0
        %961 = vmatprep.mubr.bf16.mxu0 0
        %962 = vmatmul.mubr.bf16.gmra.mrb[0].mxu0 %v818
        %v963 = vpop.f32.mrb[0].mxu0
        %v964 = vadd.f32 %v772, %v963
        %v965 = vpop.f32.mrb[0].mxu0
        %v966 = vadd.f32 %v772, %v965
        %v967 = vpop.f32.mrb[0].mxu0
        %v968 = vadd.f32 %v777, %v967
        %v969 = vpop.f32.mrb[0].mxu0
        %v970 = vadd.f32 %v777, %v969
        %971 = vmatprep.mubr.bf16.mxu0 0
        %972 = vmatmul.mubr.bf16.gmra.mrb[0].mxu0 %v821
        %v973 = vpop.f32.mrb[0].mxu0
        %v974 = vadd.f32 %v782, %v973
        %v975 = vpop.f32.mrb[0].mxu0
        %v976 = vadd.f32 %v782, %v975
        %v977 = vpop.f32.mrb[0].mxu0
        %v978 = vadd.f32 %v787, %v977
        %v979 = vpop.f32.mrb[0].mxu0
        %v980 = vadd.f32 %v787, %v979
        %981 = vdwg.mxu0
        %982 = vmatprep.subr.bf16.mxu0 %v464
        %983 = vmatpush1.bf16.msra.mxu0 %v463
        %984 = vmatprep.subr.bf16.mxu0 %v472
        %985 = vmatpush1.bf16.msra.mxu0 %v471
        %986 = vmatprep.subr.bf16.mxu0 0
        %987 = vmatpush1.bf16.msra.mxu0 0
        %988 = vmatprep.subr.bf16.mxu0 0
        %989 = vmatpush1.bf16.msra.mxu0 0
        %990 = vmatprep.subr.bf16.mxu0 0
        %991 = vmatpush1.bf16.msra.mxu0 0
        %992 = vmatprep.subr.bf16.mxu0 0
        %993 = vmatpush1.bf16.msra.mxu0 0
        %994 = vmatprep.subr.bf16.mxu0 0
        %995 = vmatpush1.bf16.msra.mxu0 0
        %996 = vmatprep.subr.bf16.mxu0 0
        %997 = vmatpush1.bf16.msra.mxu0 0
        %998 = vmatprep.subr.bf16.mxu0 0
        %999 = vmatpush1.bf16.msra.mxu0 0
        %1000 = vmatprep.subr.bf16.mxu0 0
        %1001 = vmatpush1.bf16.msra.mxu0 0
        %1002 = vmatprep.subr.bf16.mxu0 0
        %1003 = vmatpush1.bf16.msra.mxu0 0
        %1004 = vmatprep.subr.bf16.mxu0 0
        %1005 = vmatpush1.bf16.msra.mxu0 0
        %1006 = vmatprep.subr.bf16.mxu0 0
        %1007 = vmatpush1.bf16.msra.mxu0 0
        %1008 = vmatprep.subr.bf16.mxu0 0
        %1009 = vmatpush1.bf16.msra.mxu0 0
        %1010 = vmatprep.subr.bf16.mxu0 0
        %1011 = vmatpush1.bf16.msra.mxu0 0
        %1012 = vmatprep.subr.bf16.mxu0 0
        %1013 = vmatpush1.bf16.msra.mxu0 0
        %1014 = vmatprep.mubr.bf16.mxu0 0
        %1015 = vmatmul.mubr.bf16.gmra.mrb[0].mxu0 %v818
        %v1016 = vpop.f32.mrb[0].mxu0
        %v1017 = vadd.f32 %v772, %v1016
        %v1018 = vpop.f32.mrb[0].mxu0
        %v1019 = vadd.f32 %v772, %v1018
        %v1020 = vpop.f32.mrb[0].mxu0
        %v1021 = vadd.f32 %v777, %v1020
        %v1022 = vpop.f32.mrb[0].mxu0
        %v1023 = vadd.f32 %v777, %v1022
        %1024 = vmatprep.mubr.bf16.mxu0 0
        %1025 = vmatmul.mubr.bf16.gmra.mrb[0].mxu0 %v821
        %v1026 = vpop.f32.mrb[0].mxu0
        %v1027 = vadd.f32 %v782, %v1026
        %v1028 = vpop.f32.mrb[0].mxu0
        %v1029 = vadd.f32 %v782, %v1028
        %v1030 = vpop.f32.mrb[0].mxu0
        %v1031 = vadd.f32 %v787, %v1030
        %v1032 = vpop.f32.mrb[0].mxu0
        %v1033 = vadd.f32 %v787, %v1032
        %1034 = vdwg.mxu0
        %v1035 = vpack.c.bf16 %v550, %v550
        %v1036 = vpack.c.bf16 %v552, %v552
        %v1037 = vpack.c.bf16 %v632, %v632
        %v1038 = vpack.c.bf16 %v634, %v634
        %v1039 = vpack.c.bf16 %v673, %v673
        %v1040 = vpack.c.bf16 %v675, %v675
        %v1041 = vpack.c.bf16 %v714, %v714
        %v1042 = vpack.c.bf16 %v716, %v716
        %v1043 = vpack.c.bf16 %v755, %v755
        %v1044 = vpack.c.bf16 %v757, %v757
        %1045 = vxpose.xlu0.c.b16.start [1/8] %v1035, 128
        %1046 = vxpose.xlu0.c.b16.cont [2/8] 0, 128
        %1047 = vxpose.xlu0.c.b16.cont [3/8] 0, 128
        %1048 = vxpose.xlu0.c.b16.cont [4/8] 0, 128
        %1049 = vxpose.xlu0.c.b16.cont [5/8] 0, 128
        %1050 = vxpose.xlu0.c.b16.cont [6/8] 0, 128
        %1051 = vxpose.xlu0.c.b16.cont [7/8] 0, 128
        %1052 = vxpose.xlu0.c.b16.end [8/8] 0, 128
        %v1053 = vpop.trf.xlu0
        %v1054 = vpop.trf.xlu0
        %v1055 = vpop.trf.xlu0
        %v1056 = vpop.trf.xlu0
        %v1057 = vpop.trf.xlu0
        %v1058 = vpop.trf.xlu0
        %v1059 = vpop.trf.xlu0
        %v1060 = vpop.trf.xlu0
        %1061 = vxpose.xlu0.c.b16.start [1/8] %v1036, 128
        %1062 = vxpose.xlu0.c.b16.cont [2/8] 0, 128
        %1063 = vxpose.xlu0.c.b16.cont [3/8] 0, 128
        %1064 = vxpose.xlu0.c.b16.cont [4/8] 0, 128
        %1065 = vxpose.xlu0.c.b16.cont [5/8] 0, 128
        %1066 = vxpose.xlu0.c.b16.cont [6/8] 0, 128
        %1067 = vxpose.xlu0.c.b16.cont [7/8] 0, 128
        %1068 = vxpose.xlu0.c.b16.end [8/8] 0, 128
        %v1069 = vpop.trf.xlu0
        %v1070 = vpop.trf.xlu0
        %v1071 = vpop.trf.xlu0
        %v1072 = vpop.trf.xlu0
        %v1073 = vpop.trf.xlu0
        %v1074 = vpop.trf.xlu0
        %v1075 = vpop.trf.xlu0
        %v1076 = vpop.trf.xlu0
        %vm1077 = vcmask 31744
        %v1079 = vsel %vm1077, %v1053, 0
        %v1082 = vsel %vm1077, %v1054, 0
        %v1085 = vsel %vm1077, %v1055, 0
        %v1088 = vsel %vm1077, %v1056, 0
        %v1091 = vsel %vm1077, %v1057, 0
        %v1094 = vsel %vm1077, %v1058, 0
        %v1097 = vsel %vm1077, %v1059, 0
        %v1100 = vsel %vm1077, %v1060, 0
        %v1103 = vsel %vm1077, %v1069, 0
        %v1106 = vsel %vm1077, %v1070, 0
        %v1109 = vsel %vm1077, %v1071, 0
        %v1112 = vsel %vm1077, %v1072, 0
        %v1115 = vsel %vm1077, %v1073, 0
        %v1118 = vsel %vm1077, %v1074, 0
        %v1121 = vsel %vm1077, %v1075, 0
        %v1124 = vsel %vm1077, %v1076, 0
        %vm1126 = vcmask 1041408
        %v1128 = vsel %vm1126, %v1037, 0
        %v1131 = vsel %vm1126, %v1038, 0
        %v1134 = vsel %vm1126, %v1039, 0
        %v1137 = vsel %vm1126, %v1040, 0
        %v1140 = vsel %vm1126, %v1041, 0
        %v1143 = vsel %vm1126, %v1042, 0
        %v1146 = vsel %vm1126, %v1043, 0
        %v1149 = vsel %vm1126, %v1044, 0
        %1151 = vmatprep.subr.bf16.mxu0 %v1131
        %1152 = vmatpush1.bf16.msra.mxu0 %v1128
        %1153 = vmatprep.subr.bf16.mxu0 0
        %1154 = vmatpush1.bf16.msra.mxu0 0
        %1155 = vmatprep.subr.bf16.mxu0 0
        %1156 = vmatpush1.bf16.msra.mxu0 0
        %1157 = vmatprep.subr.bf16.mxu0 0
        %1158 = vmatpush1.bf16.msra.mxu0 0
        %1159 = vmatprep.subr.bf16.mxu0 0
        %1160 = vmatpush1.bf16.msra.mxu0 0
        %1161 = vmatprep.subr.bf16.mxu0 0
        %1162 = vmatpush1.bf16.msra.mxu0 0
        %1163 = vmatprep.subr.bf16.mxu0 0
        %1164 = vmatpush1.bf16.msra.mxu0 0
        %1165 = vmatprep.subr.bf16.mxu0 0
        %1166 = vmatpush1.bf16.msra.mxu0 0
        %1167 = vmatprep.subr.bf16.mxu0 0
        %1168 = vmatpush1.bf16.msra.mxu0 0
        %1169 = vmatprep.subr.bf16.mxu0 0
        %1170 = vmatpush1.bf16.msra.mxu0 0
        %1171 = vmatprep.subr.bf16.mxu0 0
        %1172 = vmatpush1.bf16.msra.mxu0 0
        %1173 = vmatprep.subr.bf16.mxu0 0
        %1174 = vmatpush1.bf16.msra.mxu0 0
        %1175 = vmatprep.subr.bf16.mxu0 0
        %1176 = vmatpush1.bf16.msra.mxu0 0
        %1177 = vmatprep.subr.bf16.mxu0 0
        %1178 = vmatpush1.bf16.msra.mxu0 0
        %1179 = vmatprep.subr.bf16.mxu0 0
        %1180 = vmatpush1.bf16.msra.mxu0 0
        %1181 = vmatprep.subr.bf16.mxu0 0
        %1182 = vmatpush1.bf16.msra.mxu0 0
        %1183 = vmatprep.mubr.bf16.mxu0 0
        %1184 = vmatmul.mubr.bf16.gmra.mrb[0].mxu0 %v1079
        %v1185 = vpop.f32.mrb[0].mxu0
        %v1186 = vadd.f32 0.0, %v1185
        %v1187 = vpop.f32.mrb[0].mxu0
        %v1188 = vadd.f32 0.0, %v1187
        %v1189 = vpop.f32.mrb[0].mxu0
        %v1190 = vadd.f32 0.0, %v1189
        %v1191 = vpop.f32.mrb[0].mxu0
        %v1192 = vadd.f32 0.0, %v1191
        %1193 = vmatprep.mubr.bf16.mxu0 0
        %1194 = vmatmul.mubr.bf16.gmra.mrb[0].mxu0 %v1082
        %v1195 = vpop.f32.mrb[0].mxu0
        %v1196 = vadd.f32 0.0, %v1195
        %v1197 = vpop.f32.mrb[0].mxu0
        %v1198 = vadd.f32 0.0, %v1197
        %v1199 = vpop.f32.mrb[0].mxu0
        %v1200 = vadd.f32 0.0, %v1199
        %v1201 = vpop.f32.mrb[0].mxu0
        %v1202 = vadd.f32 0.0, %v1201
        %1203 = vmatprep.mubr.bf16.mxu0 0
        %1204 = vmatmul.mubr.bf16.gmra.mrb[0].mxu0 %v1085
        %v1205 = vpop.f32.mrb[0].mxu0
        %v1206 = vadd.f32 0.0, %v1205
        %v1207 = vpop.f32.mrb[0].mxu0
        %v1208 = vadd.f32 0.0, %v1207
        %v1209 = vpop.f32.mrb[0].mxu0
        %v1210 = vadd.f32 0.0, %v1209
        %v1211 = vpop.f32.mrb[0].mxu0
        %v1212 = vadd.f32 0.0, %v1211
        %1213 = vmatprep.mubr.bf16.mxu0 0
        %1214 = vmatmul.mubr.bf16.gmra.mrb[0].mxu0 %v1088
        %v1215 = vpop.f32.mrb[0].mxu0
        %v1216 = vadd.f32 0.0, %v1215
        %v1217 = vpop.f32.mrb[0].mxu0
        %v1218 = vadd.f32 0.0, %v1217
        %v1219 = vpop.f32.mrb[0].mxu0
        %v1220 = vadd.f32 0.0, %v1219
        %v1221 = vpop.f32.mrb[0].mxu0
        %v1222 = vadd.f32 0.0, %v1221
        %1223 = vmatprep.mubr.bf16.mxu0 0
        %1224 = vmatmul.mubr.bf16.gmra.mrb[0].mxu0 %v1091
        %v1225 = vpop.f32.mrb[0].mxu0
        %v1226 = vadd.f32 0.0, %v1225
        %v1227 = vpop.f32.mrb[0].mxu0
        %v1228 = vadd.f32 0.0, %v1227
        %v1229 = vpop.f32.mrb[0].mxu0
        %v1230 = vadd.f32 0.0, %v1229
        %v1231 = vpop.f32.mrb[0].mxu0
        %v1232 = vadd.f32 0.0, %v1231
        %1233 = vmatprep.mubr.bf16.mxu0 0
        %1234 = vmatmul.mubr.bf16.gmra.mrb[0].mxu0 %v1094
        %v1235 = vpop.f32.mrb[0].mxu0
        %v1236 = vadd.f32 0.0, %v1235
        %v1237 = vpop.f32.mrb[0].mxu0
        %v1238 = vadd.f32 0.0, %v1237
        %v1239 = vpop.f32.mrb[0].mxu0
        %v1240 = vadd.f32 0.0, %v1239
        %v1241 = vpop.f32.mrb[0].mxu0
        %v1242 = vadd.f32 0.0, %v1241
        %1243 = vmatprep.mubr.bf16.mxu0 0
        %1244 = vmatmul.mubr.bf16.gmra.mrb[0].mxu0 %v1097
        %v1245 = vpop.f32.mrb[0].mxu0
        %v1246 = vadd.f32 0.0, %v1245
        %v1247 = vpop.f32.mrb[0].mxu0
        %v1248 = vadd.f32 0.0, %v1247
        %v1249 = vpop.f32.mrb[0].mxu0
        %v1250 = vadd.f32 0.0, %v1249
        %v1251 = vpop.f32.mrb[0].mxu0
        %v1252 = vadd.f32 0.0, %v1251
        %1253 = vmatprep.mubr.bf16.mxu0 0
        %1254 = vmatmul.mubr.bf16.gmra.mrb[0].mxu0 %v1100
        %v1255 = vpop.f32.mrb[0].mxu0
        %v1256 = vadd.f32 0.0, %v1255
        %v1257 = vpop.f32.mrb[0].mxu0
        %v1258 = vadd.f32 0.0, %v1257
        %v1259 = vpop.f32.mrb[0].mxu0
        %v1260 = vadd.f32 0.0, %v1259
        %v1261 = vpop.f32.mrb[0].mxu0
        %v1262 = vadd.f32 0.0, %v1261
        %1263 = vmatprep.mubr.bf16.mxu0 0
        %1264 = vmatmul.mubr.bf16.gmra.mrb[0].mxu0 %v1103
        %v1265 = vpop.f32.mrb[0].mxu0
        %v1266 = vadd.f32 0.0, %v1265
        %v1267 = vpop.f32.mrb[0].mxu0
        %v1268 = vadd.f32 0.0, %v1267
        %v1269 = vpop.f32.mrb[0].mxu0
        %v1270 = vadd.f32 0.0, %v1269
        %v1271 = vpop.f32.mrb[0].mxu0
        %v1272 = vadd.f32 0.0, %v1271
        %1273 = vmatprep.mubr.bf16.mxu0 0
        %1274 = vmatmul.mubr.bf16.gmra.mrb[0].mxu0 %v1106
        %v1275 = vpop.f32.mrb[0].mxu0
        %v1276 = vadd.f32 0.0, %v1275
        %v1277 = vpop.f32.mrb[0].mxu0
        %v1278 = vadd.f32 0.0, %v1277
        %v1279 = vpop.f32.mrb[0].mxu0
        %v1280 = vadd.f32 0.0, %v1279
        %v1281 = vpop.f32.mrb[0].mxu0
        %v1282 = vadd.f32 0.0, %v1281
        %1283 = vmatprep.mubr.bf16.mxu0 0
        %1284 = vmatmul.mubr.bf16.gmra.mrb[0].mxu0 %v1109
        %v1285 = vpop.f32.mrb[0].mxu0
        %v1286 = vadd.f32 0.0, %v1285
        %v1287 = vpop.f32.mrb[0].mxu0
        %v1288 = vadd.f32 0.0, %v1287
        %v1289 = vpop.f32.mrb[0].mxu0
        %v1290 = vadd.f32 0.0, %v1289
        %v1291 = vpop.f32.mrb[0].mxu0
        %v1292 = vadd.f32 0.0, %v1291
        %1293 = vmatprep.mubr.bf16.mxu0 0
        %1294 = vmatmul.mubr.bf16.gmra.mrb[0].mxu0 %v1112
        %v1295 = vpop.f32.mrb[0].mxu0
        %v1296 = vadd.f32 0.0, %v1295
        %v1297 = vpop.f32.mrb[0].mxu0
        %v1298 = vadd.f32 0.0, %v1297
        %v1299 = vpop.f32.mrb[0].mxu0
        %v1300 = vadd.f32 0.0, %v1299
        %v1301 = vpop.f32.mrb[0].mxu0
        %v1302 = vadd.f32 0.0, %v1301
        %1303 = vmatprep.mubr.bf16.mxu0 0
        %1304 = vmatmul.mubr.bf16.gmra.mrb[0].mxu0 %v1115
        %v1305 = vpop.f32.mrb[0].mxu0
        %v1306 = vadd.f32 0.0, %v1305
        %v1307 = vpop.f32.mrb[0].mxu0
        %v1308 = vadd.f32 0.0, %v1307
        %v1309 = vpop.f32.mrb[0].mxu0
        %v1310 = vadd.f32 0.0, %v1309
        %v1311 = vpop.f32.mrb[0].mxu0
        %v1312 = vadd.f32 0.0, %v1311
        %1313 = vmatprep.mubr.bf16.mxu0 0
        %1314 = vmatmul.mubr.bf16.gmra.mrb[0].mxu0 %v1118
        %v1315 = vpop.f32.mrb[0].mxu0
        %v1316 = vadd.f32 0.0, %v1315
        %v1317 = vpop.f32.mrb[0].mxu0
        %v1318 = vadd.f32 0.0, %v1317
        %v1319 = vpop.f32.mrb[0].mxu0
        %v1320 = vadd.f32 0.0, %v1319
        %v1321 = vpop.f32.mrb[0].mxu0
        %v1322 = vadd.f32 0.0, %v1321
        %1323 = vmatprep.mubr.bf16.mxu0 0
        %1324 = vmatmul.mubr.bf16.gmra.mrb[0].mxu0 %v1121
        %v1325 = vpop.f32.mrb[0].mxu0
        %v1326 = vadd.f32 0.0, %v1325
        %v1327 = vpop.f32.mrb[0].mxu0
        %v1328 = vadd.f32 0.0, %v1327
        %v1329 = vpop.f32.mrb[0].mxu0
        %v1330 = vadd.f32 0.0, %v1329
        %v1331 = vpop.f32.mrb[0].mxu0
        %v1332 = vadd.f32 0.0, %v1331
        %1333 = vmatprep.mubr.bf16.mxu0 0
        %1334 = vmatmul.mubr.bf16.gmra.mrb[0].mxu0 %v1124
        %v1335 = vpop.f32.mrb[0].mxu0
        %v1336 = vadd.f32 0.0, %v1335
        %v1337 = vpop.f32.mrb[0].mxu0
        %v1338 = vadd.f32 0.0, %v1337
        %v1339 = vpop.f32.mrb[0].mxu0
        %v1340 = vadd.f32 0.0, %v1339
        %v1341 = vpop.f32.mrb[0].mxu0
        %v1342 = vadd.f32 0.0, %v1341
        %1343 = vdwg.mxu0
        %1344 = vmatprep.subr.bf16.mxu0 %v1137
        %1345 = vmatpush1.bf16.msra.mxu0 %v1134
        %1346 = vmatprep.subr.bf16.mxu0 0
        %1347 = vmatpush1.bf16.msra.mxu0 0
        %1348 = vmatprep.subr.bf16.mxu0 0
        %1349 = vmatpush1.bf16.msra.mxu0 0
        %1350 = vmatprep.subr.bf16.mxu0 0
        %1351 = vmatpush1.bf16.msra.mxu0 0
        %1352 = vmatprep.subr.bf16.mxu0 0
        %1353 = vmatpush1.bf16.msra.mxu0 0
        %1354 = vmatprep.subr.bf16.mxu0 0
        %1355 = vmatpush1.bf16.msra.mxu0 0
        %1356 = vmatprep.subr.bf16.mxu0 0
        %1357 = vmatpush1.bf16.msra.mxu0 0
        %1358 = vmatprep.subr.bf16.mxu0 0
        %1359 = vmatpush1.bf16.msra.mxu0 0
        %1360 = vmatprep.subr.bf16.mxu0 0
        %1361 = vmatpush1.bf16.msra.mxu0 0
        %1362 = vmatprep.subr.bf16.mxu0 0
        %1363 = vmatpush1.bf16.msra.mxu0 0
        %1364 = vmatprep.subr.bf16.mxu0 0
        %1365 = vmatpush1.bf16.msra.mxu0 0
        %1366 = vmatprep.subr.bf16.mxu0 0
        %1367 = vmatpush1.bf16.msra.mxu0 0
        %1368 = vmatprep.subr.bf16.mxu0 0
        %1369 = vmatpush1.bf16.msra.mxu0 0
        %1370 = vmatprep.subr.bf16.mxu0 0
        %1371 = vmatpush1.bf16.msra.mxu0 0
        %1372 = vmatprep.subr.bf16.mxu0 0
        %1373 = vmatpush1.bf16.msra.mxu0 0
        %1374 = vmatprep.subr.bf16.mxu0 0
        %1375 = vmatpush1.bf16.msra.mxu0 0
        %1376 = vmatprep.mubr.bf16.mxu0 0
        %1377 = vmatmul.mubr.bf16.gmra.mrb[0].mxu0 %v1079
        %v1378 = vpop.f32.mrb[0].mxu0
        %v1379 = vadd.f32 0.0, %v1378
        %v1380 = vpop.f32.mrb[0].mxu0
        %v1381 = vadd.f32 0.0, %v1380
        %v1382 = vpop.f32.mrb[0].mxu0
        %v1383 = vadd.f32 0.0, %v1382
        %v1384 = vpop.f32.mrb[0].mxu0
        %v1385 = vadd.f32 0.0, %v1384
        %1386 = vmatprep.mubr.bf16.mxu0 0
        %1387 = vmatmul.mubr.bf16.gmra.mrb[0].mxu0 %v1082
        %v1388 = vpop.f32.mrb[0].mxu0
        %v1389 = vadd.f32 0.0, %v1388
        %v1390 = vpop.f32.mrb[0].mxu0
        %v1391 = vadd.f32 0.0, %v1390
        %v1392 = vpop.f32.mrb[0].mxu0
        %v1393 = vadd.f32 0.0, %v1392
        %v1394 = vpop.f32.mrb[0].mxu0
        %v1395 = vadd.f32 0.0, %v1394
        %1396 = vmatprep.mubr.bf16.mxu0 0
        %1397 = vmatmul.mubr.bf16.gmra.mrb[0].mxu0 %v1085
        %v1398 = vpop.f32.mrb[0].mxu0
        %v1399 = vadd.f32 0.0, %v1398
        %v1400 = vpop.f32.mrb[0].mxu0
        %v1401 = vadd.f32 0.0, %v1400
        %v1402 = vpop.f32.mrb[0].mxu0
        %v1403 = vadd.f32 0.0, %v1402
        %v1404 = vpop.f32.mrb[0].mxu0
        %v1405 = vadd.f32 0.0, %v1404
        %1406 = vmatprep.mubr.bf16.mxu0 0
        %1407 = vmatmul.mubr.bf16.gmra.mrb[0].mxu0 %v1088
        %v1408 = vpop.f32.mrb[0].mxu0
        %v1409 = vadd.f32 0.0, %v1408
        %v1410 = vpop.f32.mrb[0].mxu0
        %v1411 = vadd.f32 0.0, %v1410
        %v1412 = vpop.f32.mrb[0].mxu0
        %v1413 = vadd.f32 0.0, %v1412
        %v1414 = vpop.f32.mrb[0].mxu0
        %v1415 = vadd.f32 0.0, %v1414
        %1416 = vmatprep.mubr.bf16.mxu0 0
        %1417 = vmatmul.mubr.bf16.gmra.mrb[0].mxu0 %v1091
        %v1418 = vpop.f32.mrb[0].mxu0
        %v1419 = vadd.f32 0.0, %v1418
        %v1420 = vpop.f32.mrb[0].mxu0
        %v1421 = vadd.f32 0.0, %v1420
        %v1422 = vpop.f32.mrb[0].mxu0
        %v1423 = vadd.f32 0.0, %v1422
        %v1424 = vpop.f32.mrb[0].mxu0
        %v1425 = vadd.f32 0.0, %v1424
        %1426 = vmatprep.mubr.bf16.mxu0 0
        %1427 = vmatmul.mubr.bf16.gmra.mrb[0].mxu0 %v1094
        %v1428 = vpop.f32.mrb[0].mxu0
        %v1429 = vadd.f32 0.0, %v1428
        %v1430 = vpop.f32.mrb[0].mxu0
        %v1431 = vadd.f32 0.0, %v1430
        %v1432 = vpop.f32.mrb[0].mxu0
        %v1433 = vadd.f32 0.0, %v1432
        %v1434 = vpop.f32.mrb[0].mxu0
        %v1435 = vadd.f32 0.0, %v1434
        %1436 = vmatprep.mubr.bf16.mxu0 0
        %1437 = vmatmul.mubr.bf16.gmra.mrb[0].mxu0 %v1097
        %v1438 = vpop.f32.mrb[0].mxu0
        %v1439 = vadd.f32 0.0, %v1438
        %v1440 = vpop.f32.mrb[0].mxu0
        %v1441 = vadd.f32 0.0, %v1440
        %v1442 = vpop.f32.mrb[0].mxu0
        %v1443 = vadd.f32 0.0, %v1442
        %v1444 = vpop.f32.mrb[0].mxu0
        %v1445 = vadd.f32 0.0, %v1444
        %1446 = vmatprep.mubr.bf16.mxu0 0
        %1447 = vmatmul.mubr.bf16.gmra.mrb[0].mxu0 %v1100
        %v1448 = vpop.f32.mrb[0].mxu0
        %v1449 = vadd.f32 0.0, %v1448
        %v1450 = vpop.f32.mrb[0].mxu0
        %v1451 = vadd.f32 0.0, %v1450
        %v1452 = vpop.f32.mrb[0].mxu0
        %v1453 = vadd.f32 0.0, %v1452
        %v1454 = vpop.f32.mrb[0].mxu0
        %v1455 = vadd.f32 0.0, %v1454
        %1456 = vmatprep.mubr.bf16.mxu0 0
        %1457 = vmatmul.mubr.bf16.gmra.mrb[0].mxu0 %v1103
        %v1458 = vpop.f32.mrb[0].mxu0
        %v1459 = vadd.f32 0.0, %v1458
        %v1460 = vpop.f32.mrb[0].mxu0
        %v1461 = vadd.f32 0.0, %v1460
        %v1462 = vpop.f32.mrb[0].mxu0
        %v1463 = vadd.f32 0.0, %v1462
        %v1464 = vpop.f32.mrb[0].mxu0
        %v1465 = vadd.f32 0.0, %v1464
        %1466 = vmatprep.mubr.bf16.mxu0 0
        %1467 = vmatmul.mubr.bf16.gmra.mrb[0].mxu0 %v1106
        %v1468 = vpop.f32.mrb[0].mxu0
        %v1469 = vadd.f32 0.0, %v1468
        %v1470 = vpop.f32.mrb[0].mxu0
        %v1471 = vadd.f32 0.0, %v1470
        %v1472 = vpop.f32.mrb[0].mxu0
        %v1473 = vadd.f32 0.0, %v1472
        %v1474 = vpop.f32.mrb[0].mxu0
        %v1475 = vadd.f32 0.0, %v1474
        %1476 = vmatprep.mubr.bf16.mxu0 0
        %1477 = vmatmul.mubr.bf16.gmra.mrb[0].mxu0 %v1109
        %v1478 = vpop.f32.mrb[0].mxu0
        %v1479 = vadd.f32 0.0, %v1478
        %v1480 = vpop.f32.mrb[0].mxu0
        %v1481 = vadd.f32 0.0, %v1480
        %v1482 = vpop.f32.mrb[0].mxu0
        %v1483 = vadd.f32 0.0, %v1482
        %v1484 = vpop.f32.mrb[0].mxu0
        %v1485 = vadd.f32 0.0, %v1484
        %1486 = vmatprep.mubr.bf16.mxu0 0
        %1487 = vmatmul.mubr.bf16.gmra.mrb[0].mxu0 %v1112
        %v1488 = vpop.f32.mrb[0].mxu0
        %v1489 = vadd.f32 0.0, %v1488
        %v1490 = vpop.f32.mrb[0].mxu0
        %v1491 = vadd.f32 0.0, %v1490
        %v1492 = vpop.f32.mrb[0].mxu0
        %v1493 = vadd.f32 0.0, %v1492
        %v1494 = vpop.f32.mrb[0].mxu0
        %v1495 = vadd.f32 0.0, %v1494
        %1496 = vmatprep.mubr.bf16.mxu0 0
        %1497 = vmatmul.mubr.bf16.gmra.mrb[0].mxu0 %v1115
        %v1498 = vpop.f32.mrb[0].mxu0
        %v1499 = vadd.f32 0.0, %v1498
        %v1500 = vpop.f32.mrb[0].mxu0
        %v1501 = vadd.f32 0.0, %v1500
        %v1502 = vpop.f32.mrb[0].mxu0
        %v1503 = vadd.f32 0.0, %v1502
        %v1504 = vpop.f32.mrb[0].mxu0
        %v1505 = vadd.f32 0.0, %v1504
        %1506 = vmatprep.mubr.bf16.mxu0 0
        %1507 = vmatmul.mubr.bf16.gmra.mrb[0].mxu0 %v1118
        %v1508 = vpop.f32.mrb[0].mxu0
        %v1509 = vadd.f32 0.0, %v1508
        %v1510 = vpop.f32.mrb[0].mxu0
        %v1511 = vadd.f32 0.0, %v1510
        %v1512 = vpop.f32.mrb[0].mxu0
        %v1513 = vadd.f32 0.0, %v1512
        %v1514 = vpop.f32.mrb[0].mxu0
        %v1515 = vadd.f32 0.0, %v1514
        %1516 = vmatprep.mubr.bf16.mxu0 0
        %1517 = vmatmul.mubr.bf16.gmra.mrb[0].mxu0 %v1121
        %v1518 = vpop.f32.mrb[0].mxu0
        %v1519 = vadd.f32 0.0, %v1518
        %v1520 = vpop.f32.mrb[0].mxu0
        %v1521 = vadd.f32 0.0, %v1520
        %v1522 = vpop.f32.mrb[0].mxu0
        %v1523 = vadd.f32 0.0, %v1522
        %v1524 = vpop.f32.mrb[0].mxu0
        %v1525 = vadd.f32 0.0, %v1524
        %1526 = vmatprep.mubr.bf16.mxu0 0
        %1527 = vmatmul.mubr.bf16.gmra.mrb[0].mxu0 %v1124
        %v1528 = vpop.f32.mrb[0].mxu0
        %v1529 = vadd.f32 0.0, %v1528
        %v1530 = vpop.f32.mrb[0].mxu0
        %v1531 = vadd.f32 0.0, %v1530
        %v1532 = vpop.f32.mrb[0].mxu0
        %v1533 = vadd.f32 0.0, %v1532
        %v1534 = vpop.f32.mrb[0].mxu0
        %v1535 = vadd.f32 0.0, %v1534
        %1536 = vdwg.mxu0
        %1537 = vmatprep.subr.bf16.mxu0 %v1143
        %1538 = vmatpush1.bf16.msra.mxu0 %v1140
        %1539 = vmatprep.subr.bf16.mxu0 0
        %1540 = vmatpush1.bf16.msra.mxu0 0
        %1541 = vmatprep.subr.bf16.mxu0 0
        %1542 = vmatpush1.bf16.msra.mxu0 0
        %1543 = vmatprep.subr.bf16.mxu0 0
        %1544 = vmatpush1.bf16.msra.mxu0 0
        %1545 = vmatprep.subr.bf16.mxu0 0
        %1546 = vmatpush1.bf16.msra.mxu0 0
        %1547 = vmatprep.subr.bf16.mxu0 0
        %1548 = vmatpush1.bf16.msra.mxu0 0
        %1549 = vmatprep.subr.bf16.mxu0 0
        %1550 = vmatpush1.bf16.msra.mxu0 0
        %1551 = vmatprep.subr.bf16.mxu0 0
        %1552 = vmatpush1.bf16.msra.mxu0 0
        %1553 = vmatprep.subr.bf16.mxu0 0
        %1554 = vmatpush1.bf16.msra.mxu0 0
        %1555 = vmatprep.subr.bf16.mxu0 0
        %1556 = vmatpush1.bf16.msra.mxu0 0
        %1557 = vmatprep.subr.bf16.mxu0 0
        %1558 = vmatpush1.bf16.msra.mxu0 0
        %1559 = vmatprep.subr.bf16.mxu0 0
        %1560 = vmatpush1.bf16.msra.mxu0 0
        %1561 = vmatprep.subr.bf16.mxu0 0
        %1562 = vmatpush1.bf16.msra.mxu0 0
        %1563 = vmatprep.subr.bf16.mxu0 0
        %1564 = vmatpush1.bf16.msra.mxu0 0
        %1565 = vmatprep.subr.bf16.mxu0 0
        %1566 = vmatpush1.bf16.msra.mxu0 0
        %1567 = vmatprep.subr.bf16.mxu0 0
        %1568 = vmatpush1.bf16.msra.mxu0 0
        %1569 = vmatprep.mubr.bf16.mxu0 0
        %1570 = vmatmul.mubr.bf16.gmra.mrb[0].mxu0 %v1079
        %v1571 = vpop.f32.mrb[0].mxu0
        %v1572 = vadd.f32 0.0, %v1571
        %v1573 = vpop.f32.mrb[0].mxu0
        %v1574 = vadd.f32 0.0, %v1573
        %v1575 = vpop.f32.mrb[0].mxu0
        %v1576 = vadd.f32 0.0, %v1575
        %v1577 = vpop.f32.mrb[0].mxu0
        %v1578 = vadd.f32 0.0, %v1577
        %1579 = vmatprep.mubr.bf16.mxu0 0
        %1580 = vmatmul.mubr.bf16.gmra.mrb[0].mxu0 %v1082
        %v1581 = vpop.f32.mrb[0].mxu0
        %v1582 = vadd.f32 0.0, %v1581
        %v1583 = vpop.f32.mrb[0].mxu0
        %v1584 = vadd.f32 0.0, %v1583
        %v1585 = vpop.f32.mrb[0].mxu0
        %v1586 = vadd.f32 0.0, %v1585
        %v1587 = vpop.f32.mrb[0].mxu0
        %v1588 = vadd.f32 0.0, %v1587
        %1589 = vmatprep.mubr.bf16.mxu0 0
        %1590 = vmatmul.mubr.bf16.gmra.mrb[0].mxu0 %v1085
        %v1591 = vpop.f32.mrb[0].mxu0
        %v1592 = vadd.f32 0.0, %v1591
        %v1593 = vpop.f32.mrb[0].mxu0
        %v1594 = vadd.f32 0.0, %v1593
        %v1595 = vpop.f32.mrb[0].mxu0
        %v1596 = vadd.f32 0.0, %v1595
        %v1597 = vpop.f32.mrb[0].mxu0
        %v1598 = vadd.f32 0.0, %v1597
        %1599 = vmatprep.mubr.bf16.mxu0 0
        %1600 = vmatmul.mubr.bf16.gmra.mrb[0].mxu0 %v1088
        %v1601 = vpop.f32.mrb[0].mxu0
        %v1602 = vadd.f32 0.0, %v1601
        %v1603 = vpop.f32.mrb[0].mxu0
        %v1604 = vadd.f32 0.0, %v1603
        %v1605 = vpop.f32.mrb[0].mxu0
        %v1606 = vadd.f32 0.0, %v1605
        %v1607 = vpop.f32.mrb[0].mxu0
        %v1608 = vadd.f32 0.0, %v1607
        %1609 = vmatprep.mubr.bf16.mxu0 0
        %1610 = vmatmul.mubr.bf16.gmra.mrb[0].mxu0 %v1091
        %v1611 = vpop.f32.mrb[0].mxu0
        %v1612 = vadd.f32 0.0, %v1611
        %v1613 = vpop.f32.mrb[0].mxu0
        %v1614 = vadd.f32 0.0, %v1613
        %v1615 = vpop.f32.mrb[0].mxu0
        %v1616 = vadd.f32 0.0, %v1615
        %v1617 = vpop.f32.mrb[0].mxu0
        %v1618 = vadd.f32 0.0, %v1617
        %1619 = vmatprep.mubr.bf16.mxu0 0
        %1620 = vmatmul.mubr.bf16.gmra.mrb[0].mxu0 %v1094
        %v1621 = vpop.f32.mrb[0].mxu0
        %v1622 = vadd.f32 0.0, %v1621
        %v1623 = vpop.f32.mrb[0].mxu0
        %v1624 = vadd.f32 0.0, %v1623
        %v1625 = vpop.f32.mrb[0].mxu0
        %v1626 = vadd.f32 0.0, %v1625
        %v1627 = vpop.f32.mrb[0].mxu0
        %v1628 = vadd.f32 0.0, %v1627
        %1629 = vmatprep.mubr.bf16.mxu0 0
        %1630 = vmatmul.mubr.bf16.gmra.mrb[0].mxu0 %v1097
        %v1631 = vpop.f32.mrb[0].mxu0
        %v1632 = vadd.f32 0.0, %v1631
        %v1633 = vpop.f32.mrb[0].mxu0
        %v1634 = vadd.f32 0.0, %v1633
        %v1635 = vpop.f32.mrb[0].mxu0
        %v1636 = vadd.f32 0.0, %v1635
        %v1637 = vpop.f32.mrb[0].mxu0
        %v1638 = vadd.f32 0.0, %v1637
        %1639 = vmatprep.mubr.bf16.mxu0 0
        %1640 = vmatmul.mubr.bf16.gmra.mrb[0].mxu0 %v1100
        %v1641 = vpop.f32.mrb[0].mxu0
        %v1642 = vadd.f32 0.0, %v1641
        %v1643 = vpop.f32.mrb[0].mxu0
        %v1644 = vadd.f32 0.0, %v1643
        %v1645 = vpop.f32.mrb[0].mxu0
        %v1646 = vadd.f32 0.0, %v1645
        %v1647 = vpop.f32.mrb[0].mxu0
        %v1648 = vadd.f32 0.0, %v1647
        %1649 = vmatprep.mubr.bf16.mxu0 0
        %1650 = vmatmul.mubr.bf16.gmra.mrb[0].mxu0 %v1103
        %v1651 = vpop.f32.mrb[0].mxu0
        %v1652 = vadd.f32 0.0, %v1651
        %v1653 = vpop.f32.mrb[0].mxu0
        %v1654 = vadd.f32 0.0, %v1653
        %v1655 = vpop.f32.mrb[0].mxu0
        %v1656 = vadd.f32 0.0, %v1655
        %v1657 = vpop.f32.mrb[0].mxu0
        %v1658 = vadd.f32 0.0, %v1657
        %1659 = vmatprep.mubr.bf16.mxu0 0
        %1660 = vmatmul.mubr.bf16.gmra.mrb[0].mxu0 %v1106
        %v1661 = vpop.f32.mrb[0].mxu0
        %v1662 = vadd.f32 0.0, %v1661
        %v1663 = vpop.f32.mrb[0].mxu0
        %v1664 = vadd.f32 0.0, %v1663
        %v1665 = vpop.f32.mrb[0].mxu0
        %v1666 = vadd.f32 0.0, %v1665
        %v1667 = vpop.f32.mrb[0].mxu0
        %v1668 = vadd.f32 0.0, %v1667
        %1669 = vmatprep.mubr.bf16.mxu0 0
        %1670 = vmatmul.mubr.bf16.gmra.mrb[0].mxu0 %v1109
        %v1671 = vpop.f32.mrb[0].mxu0
        %v1672 = vadd.f32 0.0, %v1671
        %v1673 = vpop.f32.mrb[0].mxu0
        %v1674 = vadd.f32 0.0, %v1673
        %v1675 = vpop.f32.mrb[0].mxu0
        %v1676 = vadd.f32 0.0, %v1675
        %v1677 = vpop.f32.mrb[0].mxu0
        %v1678 = vadd.f32 0.0, %v1677
        %1679 = vmatprep.mubr.bf16.mxu0 0
        %1680 = vmatmul.mubr.bf16.gmra.mrb[0].mxu0 %v1112
        %v1681 = vpop.f32.mrb[0].mxu0
        %v1682 = vadd.f32 0.0, %v1681
        %v1683 = vpop.f32.mrb[0].mxu0
        %v1684 = vadd.f32 0.0, %v1683
        %v1685 = vpop.f32.mrb[0].mxu0
        %v1686 = vadd.f32 0.0, %v1685
        %v1687 = vpop.f32.mrb[0].mxu0
        %v1688 = vadd.f32 0.0, %v1687
        %1689 = vmatprep.mubr.bf16.mxu0 0
        %1690 = vmatmul.mubr.bf16.gmra.mrb[0].mxu0 %v1115
        %v1691 = vpop.f32.mrb[0].mxu0
        %v1692 = vadd.f32 0.0, %v1691
        %v1693 = vpop.f32.mrb[0].mxu0
        %v1694 = vadd.f32 0.0, %v1693
        %v1695 = vpop.f32.mrb[0].mxu0
        %v1696 = vadd.f32 0.0, %v1695
        %v1697 = vpop.f32.mrb[0].mxu0
        %v1698 = vadd.f32 0.0, %v1697
        %1699 = vmatprep.mubr.bf16.mxu0 0
        %1700 = vmatmul.mubr.bf16.gmra.mrb[0].mxu0 %v1118
        %v1701 = vpop.f32.mrb[0].mxu0
        %v1702 = vadd.f32 0.0, %v1701
        %v1703 = vpop.f32.mrb[0].mxu0
        %v1704 = vadd.f32 0.0, %v1703
        %v1705 = vpop.f32.mrb[0].mxu0
        %v1706 = vadd.f32 0.0, %v1705
        %v1707 = vpop.f32.mrb[0].mxu0
        %v1708 = vadd.f32 0.0, %v1707
        %1709 = vmatprep.mubr.bf16.mxu0 0
        %1710 = vmatmul.mubr.bf16.gmra.mrb[0].mxu0 %v1121
        %v1711 = vpop.f32.mrb[0].mxu0
        %v1712 = vadd.f32 0.0, %v1711
        %v1713 = vpop.f32.mrb[0].mxu0
        %v1714 = vadd.f32 0.0, %v1713
        %v1715 = vpop.f32.mrb[0].mxu0
        %v1716 = vadd.f32 0.0, %v1715
        %v1717 = vpop.f32.mrb[0].mxu0
        %v1718 = vadd.f32 0.0, %v1717
        %1719 = vmatprep.mubr.bf16.mxu0 0
        %1720 = vmatmul.mubr.bf16.gmra.mrb[0].mxu0 %v1124
        %v1721 = vpop.f32.mrb[0].mxu0
        %v1722 = vadd.f32 0.0, %v1721
        %v1723 = vpop.f32.mrb[0].mxu0
        %v1724 = vadd.f32 0.0, %v1723
        %v1725 = vpop.f32.mrb[0].mxu0
        %v1726 = vadd.f32 0.0, %v1725
        %v1727 = vpop.f32.mrb[0].mxu0
        %v1728 = vadd.f32 0.0, %v1727
        %1729 = vdwg.mxu0
        %1730 = vmatprep.subr.bf16.mxu0 %v1149
        %1731 = vmatpush1.bf16.msra.mxu0 %v1146
        %1732 = vmatprep.subr.bf16.mxu0 0
        %1733 = vmatpush1.bf16.msra.mxu0 0
        %1734 = vmatprep.subr.bf16.mxu0 0
        %1735 = vmatpush1.bf16.msra.mxu0 0
        %1736 = vmatprep.subr.bf16.mxu0 0
        %1737 = vmatpush1.bf16.msra.mxu0 0
        %1738 = vmatprep.subr.bf16.mxu0 0
        %1739 = vmatpush1.bf16.msra.mxu0 0
        %1740 = vmatprep.subr.bf16.mxu0 0
        %1741 = vmatpush1.bf16.msra.mxu0 0
        %1742 = vmatprep.subr.bf16.mxu0 0
        %1743 = vmatpush1.bf16.msra.mxu0 0
        %1744 = vmatprep.subr.bf16.mxu0 0
        %1745 = vmatpush1.bf16.msra.mxu0 0
        %1746 = vmatprep.subr.bf16.mxu0 0
        %1747 = vmatpush1.bf16.msra.mxu0 0
        %1748 = vmatprep.subr.bf16.mxu0 0
        %1749 = vmatpush1.bf16.msra.mxu0 0
        %1750 = vmatprep.subr.bf16.mxu0 0
        %1751 = vmatpush1.bf16.msra.mxu0 0
        %1752 = vmatprep.subr.bf16.mxu0 0
        %1753 = vmatpush1.bf16.msra.mxu0 0
        %1754 = vmatprep.subr.bf16.mxu0 0
        %1755 = vmatpush1.bf16.msra.mxu0 0
        %1756 = vmatprep.subr.bf16.mxu0 0
        %1757 = vmatpush1.bf16.msra.mxu0 0
        %1758 = vmatprep.subr.bf16.mxu0 0
        %1759 = vmatpush1.bf16.msra.mxu0 0
        %1760 = vmatprep.subr.bf16.mxu0 0
        %1761 = vmatpush1.bf16.msra.mxu0 0
        %1762 = vmatprep.mubr.bf16.mxu0 0
        %1763 = vmatmul.mubr.bf16.gmra.mrb[0].mxu0 %v1079
        %v1764 = vpop.f32.mrb[0].mxu0
        %v1765 = vadd.f32 0.0, %v1764
        %v1766 = vpop.f32.mrb[0].mxu0
        %v1767 = vadd.f32 0.0, %v1766
        %v1768 = vpop.f32.mrb[0].mxu0
        %v1769 = vadd.f32 0.0, %v1768
        %v1770 = vpop.f32.mrb[0].mxu0
        %v1771 = vadd.f32 0.0, %v1770
        %1772 = vmatprep.mubr.bf16.mxu0 0
        %1773 = vmatmul.mubr.bf16.gmra.mrb[0].mxu0 %v1082
        %v1774 = vpop.f32.mrb[0].mxu0
        %v1775 = vadd.f32 0.0, %v1774
        %v1776 = vpop.f32.mrb[0].mxu0
        %v1777 = vadd.f32 0.0, %v1776
        %v1778 = vpop.f32.mrb[0].mxu0
        %v1779 = vadd.f32 0.0, %v1778
        %v1780 = vpop.f32.mrb[0].mxu0
        %v1781 = vadd.f32 0.0, %v1780
        %1782 = vmatprep.mubr.bf16.mxu0 0
        %1783 = vmatmul.mubr.bf16.gmra.mrb[0].mxu0 %v1085
        %v1784 = vpop.f32.mrb[0].mxu0
        %v1785 = vadd.f32 0.0, %v1784
        %v1786 = vpop.f32.mrb[0].mxu0
        %v1787 = vadd.f32 0.0, %v1786
        %v1788 = vpop.f32.mrb[0].mxu0
        %v1789 = vadd.f32 0.0, %v1788
        %v1790 = vpop.f32.mrb[0].mxu0
        %v1791 = vadd.f32 0.0, %v1790
        %1792 = vmatprep.mubr.bf16.mxu0 0
        %1793 = vmatmul.mubr.bf16.gmra.mrb[0].mxu0 %v1088
        %v1794 = vpop.f32.mrb[0].mxu0
        %v1795 = vadd.f32 0.0, %v1794
        %v1796 = vpop.f32.mrb[0].mxu0
        %v1797 = vadd.f32 0.0, %v1796
        %v1798 = vpop.f32.mrb[0].mxu0
        %v1799 = vadd.f32 0.0, %v1798
        %v1800 = vpop.f32.mrb[0].mxu0
        %v1801 = vadd.f32 0.0, %v1800
        %1802 = vmatprep.mubr.bf16.mxu0 0
        %1803 = vmatmul.mubr.bf16.gmra.mrb[0].mxu0 %v1091
        %v1804 = vpop.f32.mrb[0].mxu0
        %v1805 = vadd.f32 0.0, %v1804
        %v1806 = vpop.f32.mrb[0].mxu0
        %v1807 = vadd.f32 0.0, %v1806
        %v1808 = vpop.f32.mrb[0].mxu0
        %v1809 = vadd.f32 0.0, %v1808
        %v1810 = vpop.f32.mrb[0].mxu0
        %v1811 = vadd.f32 0.0, %v1810
        %1812 = vmatprep.mubr.bf16.mxu0 0
        %1813 = vmatmul.mubr.bf16.gmra.mrb[0].mxu0 %v1094
        %v1814 = vpop.f32.mrb[0].mxu0
        %v1815 = vadd.f32 0.0, %v1814
        %v1816 = vpop.f32.mrb[0].mxu0
        %v1817 = vadd.f32 0.0, %v1816
        %v1818 = vpop.f32.mrb[0].mxu0
        %v1819 = vadd.f32 0.0, %v1818
        %v1820 = vpop.f32.mrb[0].mxu0
        %v1821 = vadd.f32 0.0, %v1820
        %1822 = vmatprep.mubr.bf16.mxu0 0
        %1823 = vmatmul.mubr.bf16.gmra.mrb[0].mxu0 %v1097
        %v1824 = vpop.f32.mrb[0].mxu0
        %v1825 = vadd.f32 0.0, %v1824
        %v1826 = vpop.f32.mrb[0].mxu0
        %v1827 = vadd.f32 0.0, %v1826
        %v1828 = vpop.f32.mrb[0].mxu0
        %v1829 = vadd.f32 0.0, %v1828
        %v1830 = vpop.f32.mrb[0].mxu0
        %v1831 = vadd.f32 0.0, %v1830
        %1832 = vmatprep.mubr.bf16.mxu0 0
        %1833 = vmatmul.mubr.bf16.gmra.mrb[0].mxu0 %v1100
        %v1834 = vpop.f32.mrb[0].mxu0
        %v1835 = vadd.f32 0.0, %v1834
        %v1836 = vpop.f32.mrb[0].mxu0
        %v1837 = vadd.f32 0.0, %v1836
        %v1838 = vpop.f32.mrb[0].mxu0
        %v1839 = vadd.f32 0.0, %v1838
        %v1840 = vpop.f32.mrb[0].mxu0
        %v1841 = vadd.f32 0.0, %v1840
        %1842 = vmatprep.mubr.bf16.mxu0 0
        %1843 = vmatmul.mubr.bf16.gmra.mrb[0].mxu0 %v1103
        %v1844 = vpop.f32.mrb[0].mxu0
        %v1845 = vadd.f32 0.0, %v1844
        %v1846 = vpop.f32.mrb[0].mxu0
        %v1847 = vadd.f32 0.0, %v1846
        %v1848 = vpop.f32.mrb[0].mxu0
        %v1849 = vadd.f32 0.0, %v1848
        %v1850 = vpop.f32.mrb[0].mxu0
        %v1851 = vadd.f32 0.0, %v1850
        %1852 = vmatprep.mubr.bf16.mxu0 0
        %1853 = vmatmul.mubr.bf16.gmra.mrb[0].mxu0 %v1106
        %v1854 = vpop.f32.mrb[0].mxu0
        %v1855 = vadd.f32 0.0, %v1854
        %v1856 = vpop.f32.mrb[0].mxu0
        %v1857 = vadd.f32 0.0, %v1856
        %v1858 = vpop.f32.mrb[0].mxu0
        %v1859 = vadd.f32 0.0, %v1858
        %v1860 = vpop.f32.mrb[0].mxu0
        %v1861 = vadd.f32 0.0, %v1860
        %1862 = vmatprep.mubr.bf16.mxu0 0
        %1863 = vmatmul.mubr.bf16.gmra.mrb[0].mxu0 %v1109
        %v1864 = vpop.f32.mrb[0].mxu0
        %v1865 = vadd.f32 0.0, %v1864
        %v1866 = vpop.f32.mrb[0].mxu0
        %v1867 = vadd.f32 0.0, %v1866
        %v1868 = vpop.f32.mrb[0].mxu0
        %v1869 = vadd.f32 0.0, %v1868
        %v1870 = vpop.f32.mrb[0].mxu0
        %v1871 = vadd.f32 0.0, %v1870
        %1872 = vmatprep.mubr.bf16.mxu0 0
        %1873 = vmatmul.mubr.bf16.gmra.mrb[0].mxu0 %v1112
        %v1874 = vpop.f32.mrb[0].mxu0
        %v1875 = vadd.f32 0.0, %v1874
        %v1876 = vpop.f32.mrb[0].mxu0
        %v1877 = vadd.f32 0.0, %v1876
        %v1878 = vpop.f32.mrb[0].mxu0
        %v1879 = vadd.f32 0.0, %v1878
        %v1880 = vpop.f32.mrb[0].mxu0
        %v1881 = vadd.f32 0.0, %v1880
        %1882 = vmatprep.mubr.bf16.mxu0 0
        %1883 = vmatmul.mubr.bf16.gmra.mrb[0].mxu0 %v1115
        %v1884 = vpop.f32.mrb[0].mxu0
        %v1885 = vadd.f32 0.0, %v1884
        %v1886 = vpop.f32.mrb[0].mxu0
        %v1887 = vadd.f32 0.0, %v1886
        %v1888 = vpop.f32.mrb[0].mxu0
        %v1889 = vadd.f32 0.0, %v1888
        %v1890 = vpop.f32.mrb[0].mxu0
        %v1891 = vadd.f32 0.0, %v1890
        %1892 = vmatprep.mubr.bf16.mxu0 0
        %1893 = vmatmul.mubr.bf16.gmra.mrb[0].mxu0 %v1118
        %v1894 = vpop.f32.mrb[0].mxu0
        %v1895 = vadd.f32 0.0, %v1894
        %v1896 = vpop.f32.mrb[0].mxu0
        %v1897 = vadd.f32 0.0, %v1896
        %v1898 = vpop.f32.mrb[0].mxu0
        %v1899 = vadd.f32 0.0, %v1898
        %v1900 = vpop.f32.mrb[0].mxu0
        %v1901 = vadd.f32 0.0, %v1900
        %1902 = vmatprep.mubr.bf16.mxu0 0
        %1903 = vmatmul.mubr.bf16.gmra.mrb[0].mxu0 %v1121
        %v1904 = vpop.f32.mrb[0].mxu0
        %v1905 = vadd.f32 0.0, %v1904
        %v1906 = vpop.f32.mrb[0].mxu0
        %v1907 = vadd.f32 0.0, %v1906
        %v1908 = vpop.f32.mrb[0].mxu0
        %v1909 = vadd.f32 0.0, %v1908
        %v1910 = vpop.f32.mrb[0].mxu0
        %v1911 = vadd.f32 0.0, %v1910
        %1912 = vmatprep.mubr.bf16.mxu0 0
        %1913 = vmatmul.mubr.bf16.gmra.mrb[0].mxu0 %v1124
        %v1914 = vpop.f32.mrb[0].mxu0
        %v1915 = vadd.f32 0.0, %v1914
        %v1916 = vpop.f32.mrb[0].mxu0
        %v1917 = vadd.f32 0.0, %v1916
        %v1918 = vpop.f32.mrb[0].mxu0
        %v1919 = vadd.f32 0.0, %v1918
        %v1920 = vpop.f32.mrb[0].mxu0
        %v1921 = vadd.f32 0.0, %v1920
        %1922 = vdwg.mxu0
        %v1923 = vmax.f32 %v1186, %v1188
        %v1924 = vmax.f32 %v1923, %v1379
        %v1925 = vmax.f32 %v1924, %v1381
        %v1926 = vmax.f32 %v1925, %v1572
        %v1927 = vmax.f32 %v1926, %v1574
        %v1928 = vmax.f32 %v1927, %v1765
        %v1929 = vmax.f32 %v1928, %v1767
        %1930 = vmax.xlane.f32.xlu0 %v1929
        %v1931 = vpop.xlane.xlu0 %1930
        %v1932 = vmax.f32 %v1190, %v1192
        %v1933 = vmax.f32 %v1932, %v1383
        %v1934 = vmax.f32 %v1933, %v1385
        %v1935 = vmax.f32 %v1934, %v1576
        %v1936 = vmax.f32 %v1935, %v1578
        %v1937 = vmax.f32 %v1936, %v1769
        %v1938 = vmax.f32 %v1937, %v1771
        %1939 = vmax.xlane.f32.xlu0 %v1938
        %v1940 = vpop.xlane.xlu0 %1939
        %v1941 = vmax.f32 %v1196, %v1198
        %v1942 = vmax.f32 %v1941, %v1389
        %v1943 = vmax.f32 %v1942, %v1391
        %v1944 = vmax.f32 %v1943, %v1582
        %v1945 = vmax.f32 %v1944, %v1584
        %v1946 = vmax.f32 %v1945, %v1775
        %v1947 = vmax.f32 %v1946, %v1777
        %1948 = vmax.xlane.f32.xlu0 %v1947
        %v1949 = vpop.xlane.xlu0 %1948
        %v1950 = vmax.f32 %v1200, %v1202
        %v1951 = vmax.f32 %v1950, %v1393
        %v1952 = vmax.f32 %v1951, %v1395
        %v1953 = vmax.f32 %v1952, %v1586
        %v1954 = vmax.f32 %v1953, %v1588
        %v1955 = vmax.f32 %v1954, %v1779
        %v1956 = vmax.f32 %v1955, %v1781
        %1957 = vmax.xlane.f32.xlu0 %v1956
        %v1958 = vpop.xlane.xlu0 %1957
        %v1959 = vmax.f32 %v1206, %v1208
        %v1960 = vmax.f32 %v1959, %v1399
        %v1961 = vmax.f32 %v1960, %v1401
        %v1962 = vmax.f32 %v1961, %v1592
        %v1963 = vmax.f32 %v1962, %v1594
        %v1964 = vmax.f32 %v1963, %v1785
        %v1965 = vmax.f32 %v1964, %v1787
        %1966 = vmax.xlane.f32.xlu0 %v1965
        %v1967 = vpop.xlane.xlu0 %1966
        %v1968 = vmax.f32 %v1210, %v1212
        %v1969 = vmax.f32 %v1968, %v1403
        %v1970 = vmax.f32 %v1969, %v1405
        %v1971 = vmax.f32 %v1970, %v1596
        %v1972 = vmax.f32 %v1971, %v1598
        %v1973 = vmax.f32 %v1972, %v1789
        %v1974 = vmax.f32 %v1973, %v1791
        %1975 = vmax.xlane.f32.xlu0 %v1974
        %v1976 = vpop.xlane.xlu0 %1975
        %v1977 = vmax.f32 %v1216, %v1218
        %v1978 = vmax.f32 %v1977, %v1409
        %v1979 = vmax.f32 %v1978, %v1411
        %v1980 = vmax.f32 %v1979, %v1602
        %v1981 = vmax.f32 %v1980, %v1604
        %v1982 = vmax.f32 %v1981, %v1795
        %v1983 = vmax.f32 %v1982, %v1797
        %1984 = vmax.xlane.f32.xlu0 %v1983
        %v1985 = vpop.xlane.xlu0 %1984
        %v1986 = vmax.f32 %v1220, %v1222
        %v1987 = vmax.f32 %v1986, %v1413
        %v1988 = vmax.f32 %v1987, %v1415
        %v1989 = vmax.f32 %v1988, %v1606
        %v1990 = vmax.f32 %v1989, %v1608
        %v1991 = vmax.f32 %v1990, %v1799
        %v1992 = vmax.f32 %v1991, %v1801
        %1993 = vmax.xlane.f32.xlu0 %v1992
        %v1994 = vpop.xlane.xlu0 %1993
        %v1995 = vmax.f32 %v1226, %v1228
        %v1996 = vmax.f32 %v1995, %v1419
        %v1997 = vmax.f32 %v1996, %v1421
        %v1998 = vmax.f32 %v1997, %v1612
        %v1999 = vmax.f32 %v1998, %v1614
        %v2000 = vmax.f32 %v1999, %v1805
        %v2001 = vmax.f32 %v2000, %v1807
        %2002 = vmax.xlane.f32.xlu0 %v2001
        %v2003 = vpop.xlane.xlu0 %2002
        %v2004 = vmax.f32 %v1230, %v1232
        %v2005 = vmax.f32 %v2004, %v1423
        %v2006 = vmax.f32 %v2005, %v1425
        %v2007 = vmax.f32 %v2006, %v1616
        %v2008 = vmax.f32 %v2007, %v1618
        %v2009 = vmax.f32 %v2008, %v1809
        %v2010 = vmax.f32 %v2009, %v1811
        %2011 = vmax.xlane.f32.xlu0 %v2010
        %v2012 = vpop.xlane.xlu0 %2011
        %v2013 = vmax.f32 %v1236, %v1238
        %v2014 = vmax.f32 %v2013, %v1429
        %v2015 = vmax.f32 %v2014, %v1431
        %v2016 = vmax.f32 %v2015, %v1622
        %v2017 = vmax.f32 %v2016, %v1624
        %v2018 = vmax.f32 %v2017, %v1815
        %v2019 = vmax.f32 %v2018, %v1817
        %2020 = vmax.xlane.f32.xlu0 %v2019
        %v2021 = vpop.xlane.xlu0 %2020
        %v2022 = vmax.f32 %v1240, %v1242
        %v2023 = vmax.f32 %v2022, %v1433
        %v2024 = vmax.f32 %v2023, %v1435
        %v2025 = vmax.f32 %v2024, %v1626
        %v2026 = vmax.f32 %v2025, %v1628
        %v2027 = vmax.f32 %v2026, %v1819
        %v2028 = vmax.f32 %v2027, %v1821
        %2029 = vmax.xlane.f32.xlu0 %v2028
        %v2030 = vpop.xlane.xlu0 %2029
        %v2031 = vmax.f32 %v1246, %v1248
        %v2032 = vmax.f32 %v2031, %v1439
        %v2033 = vmax.f32 %v2032, %v1441
        %v2034 = vmax.f32 %v2033, %v1632
        %v2035 = vmax.f32 %v2034, %v1634
        %v2036 = vmax.f32 %v2035, %v1825
        %v2037 = vmax.f32 %v2036, %v1827
        %2038 = vmax.xlane.f32.xlu0 %v2037
        %v2039 = vpop.xlane.xlu0 %2038
        %v2040 = vmax.f32 %v1250, %v1252
        %v2041 = vmax.f32 %v2040, %v1443
        %v2042 = vmax.f32 %v2041, %v1445
        %v2043 = vmax.f32 %v2042, %v1636
        %v2044 = vmax.f32 %v2043, %v1638
        %v2045 = vmax.f32 %v2044, %v1829
        %v2046 = vmax.f32 %v2045, %v1831
        %2047 = vmax.xlane.f32.xlu0 %v2046
        %v2048 = vpop.xlane.xlu0 %2047
        %v2049 = vmax.f32 %v1256, %v1258
        %v2050 = vmax.f32 %v2049, %v1449
        %v2051 = vmax.f32 %v2050, %v1451
        %v2052 = vmax.f32 %v2051, %v1642
        %v2053 = vmax.f32 %v2052, %v1644
        %v2054 = vmax.f32 %v2053, %v1835
        %v2055 = vmax.f32 %v2054, %v1837
        %2056 = vmax.xlane.f32.xlu0 %v2055
        %v2057 = vpop.xlane.xlu0 %2056
        %v2058 = vmax.f32 %v1260, %v1262
        %v2059 = vmax.f32 %v2058, %v1453
        %v2060 = vmax.f32 %v2059, %v1455
        %v2061 = vmax.f32 %v2060, %v1646
        %v2062 = vmax.f32 %v2061, %v1648
        %v2063 = vmax.f32 %v2062, %v1839
        %v2064 = vmax.f32 %v2063, %v1841
        %2065 = vmax.xlane.f32.xlu0 %v2064
        %v2066 = vpop.xlane.xlu0 %2065
        %v2067 = vmax.f32 %v1266, %v1268
        %v2068 = vmax.f32 %v2067, %v1459
        %v2069 = vmax.f32 %v2068, %v1461
        %v2070 = vmax.f32 %v2069, %v1652
        %v2071 = vmax.f32 %v2070, %v1654
        %v2072 = vmax.f32 %v2071, %v1845
        %v2073 = vmax.f32 %v2072, %v1847
        %2074 = vmax.xlane.f32.xlu0 %v2073
        %v2075 = vpop.xlane.xlu0 %2074
        %v2076 = vmax.f32 %v1270, %v1272
        %v2077 = vmax.f32 %v2076, %v1463
        %v2078 = vmax.f32 %v2077, %v1465
        %v2079 = vmax.f32 %v2078, %v1656
        %v2080 = vmax.f32 %v2079, %v1658
        %v2081 = vmax.f32 %v2080, %v1849
        %v2082 = vmax.f32 %v2081, %v1851
        %2083 = vmax.xlane.f32.xlu0 %v2082
        %v2084 = vpop.xlane.xlu0 %2083
        %v2085 = vmax.f32 %v1276, %v1278
        %v2086 = vmax.f32 %v2085, %v1469
        %v2087 = vmax.f32 %v2086, %v1471
        %v2088 = vmax.f32 %v2087, %v1662
        %v2089 = vmax.f32 %v2088, %v1664
        %v2090 = vmax.f32 %v2089, %v1855
        %v2091 = vmax.f32 %v2090, %v1857
        %2092 = vmax.xlane.f32.xlu0 %v2091
        %v2093 = vpop.xlane.xlu0 %2092
        %v2094 = vmax.f32 %v1280, %v1282
        %v2095 = vmax.f32 %v2094, %v1473
        %v2096 = vmax.f32 %v2095, %v1475
        %v2097 = vmax.f32 %v2096, %v1666
        %v2098 = vmax.f32 %v2097, %v1668
        %v2099 = vmax.f32 %v2098, %v1859
        %v2100 = vmax.f32 %v2099, %v1861
        %2101 = vmax.xlane.f32.xlu0 %v2100
        %v2102 = vpop.xlane.xlu0 %2101
        %v2103 = vmax.f32 %v1286, %v1288
        %v2104 = vmax.f32 %v2103, %v1479
        %v2105 = vmax.f32 %v2104, %v1481
        %v2106 = vmax.f32 %v2105, %v1672
        %v2107 = vmax.f32 %v2106, %v1674
        %v2108 = vmax.f32 %v2107, %v1865
        %v2109 = vmax.f32 %v2108, %v1867
        %2110 = vmax.xlane.f32.xlu0 %v2109
        %v2111 = vpop.xlane.xlu0 %2110
        %v2112 = vmax.f32 %v1290, %v1292
        %v2113 = vmax.f32 %v2112, %v1483
        %v2114 = vmax.f32 %v2113, %v1485
        %v2115 = vmax.f32 %v2114, %v1676
        %v2116 = vmax.f32 %v2115, %v1678
        %v2117 = vmax.f32 %v2116, %v1869
        %v2118 = vmax.f32 %v2117, %v1871
        %2119 = vmax.xlane.f32.xlu0 %v2118
        %v2120 = vpop.xlane.xlu0 %2119
        %v2121 = vmax.f32 %v1296, %v1298
        %v2122 = vmax.f32 %v2121, %v1489
        %v2123 = vmax.f32 %v2122, %v1491
        %v2124 = vmax.f32 %v2123, %v1682
        %v2125 = vmax.f32 %v2124, %v1684
        %v2126 = vmax.f32 %v2125, %v1875
        %v2127 = vmax.f32 %v2126, %v1877
        %2128 = vmax.xlane.f32.xlu0 %v2127
        %v2129 = vpop.xlane.xlu0 %2128
        %v2130 = vmax.f32 %v1300, %v1302
        %v2131 = vmax.f32 %v2130, %v1493
        %v2132 = vmax.f32 %v2131, %v1495
        %v2133 = vmax.f32 %v2132, %v1686
        %v2134 = vmax.f32 %v2133, %v1688
        %v2135 = vmax.f32 %v2134, %v1879
        %v2136 = vmax.f32 %v2135, %v1881
        %2137 = vmax.xlane.f32.xlu0 %v2136
        %v2138 = vpop.xlane.xlu0 %2137
        %v2139 = vmax.f32 %v1306, %v1308
        %v2140 = vmax.f32 %v2139, %v1499
        %v2141 = vmax.f32 %v2140, %v1501
        %v2142 = vmax.f32 %v2141, %v1692
        %v2143 = vmax.f32 %v2142, %v1694
        %v2144 = vmax.f32 %v2143, %v1885
        %v2145 = vmax.f32 %v2144, %v1887
        %2146 = vmax.xlane.f32.xlu0 %v2145
        %v2147 = vpop.xlane.xlu0 %2146
        %v2148 = vmax.f32 %v1310, %v1312
        %v2149 = vmax.f32 %v2148, %v1503
        %v2150 = vmax.f32 %v2149, %v1505
        %v2151 = vmax.f32 %v2150, %v1696
        %v2152 = vmax.f32 %v2151, %v1698
        %v2153 = vmax.f32 %v2152, %v1889
        %v2154 = vmax.f32 %v2153, %v1891
        %2155 = vmax.xlane.f32.xlu0 %v2154
        %v2156 = vpop.xlane.xlu0 %2155
        %v2157 = vmax.f32 %v1316, %v1318
        %v2158 = vmax.f32 %v2157, %v1509
        %v2159 = vmax.f32 %v2158, %v1511
        %v2160 = vmax.f32 %v2159, %v1702
        %v2161 = vmax.f32 %v2160, %v1704
        %v2162 = vmax.f32 %v2161, %v1895
        %v2163 = vmax.f32 %v2162, %v1897
        %2164 = vmax.xlane.f32.xlu0 %v2163
        %v2165 = vpop.xlane.xlu0 %2164
        %v2166 = vmax.f32 %v1320, %v1322
        %v2167 = vmax.f32 %v2166, %v1513
        %v2168 = vmax.f32 %v2167, %v1515
        %v2169 = vmax.f32 %v2168, %v1706
        %v2170 = vmax.f32 %v2169, %v1708
        %v2171 = vmax.f32 %v2170, %v1899
        %v2172 = vmax.f32 %v2171, %v1901
        %2173 = vmax.xlane.f32.xlu0 %v2172
        %v2174 = vpop.xlane.xlu0 %2173
        %v2175 = vmax.f32 %v1326, %v1328
        %v2176 = vmax.f32 %v2175, %v1519
        %v2177 = vmax.f32 %v2176, %v1521
        %v2178 = vmax.f32 %v2177, %v1712
        %v2179 = vmax.f32 %v2178, %v1714
        %v2180 = vmax.f32 %v2179, %v1905
        %v2181 = vmax.f32 %v2180, %v1907
        %2182 = vmax.xlane.f32.xlu0 %v2181
        %v2183 = vpop.xlane.xlu0 %2182
        %v2184 = vmax.f32 %v1330, %v1332
        %v2185 = vmax.f32 %v2184, %v1523
        %v2186 = vmax.f32 %v2185, %v1525
        %v2187 = vmax.f32 %v2186, %v1716
        %v2188 = vmax.f32 %v2187, %v1718
        %v2189 = vmax.f32 %v2188, %v1909
        %v2190 = vmax.f32 %v2189, %v1911
        %2191 = vmax.xlane.f32.xlu0 %v2190
        %v2192 = vpop.xlane.xlu0 %2191
        %v2193 = vmax.f32 %v1336, %v1338
        %v2194 = vmax.f32 %v2193, %v1529
        %v2195 = vmax.f32 %v2194, %v1531
        %v2196 = vmax.f32 %v2195, %v1722
        %v2197 = vmax.f32 %v2196, %v1724
        %v2198 = vmax.f32 %v2197, %v1915
        %v2199 = vmax.f32 %v2198, %v1917
        %2200 = vmax.xlane.f32.xlu0 %v2199
        %v2201 = vpop.xlane.xlu0 %2200
        %v2202 = vmax.f32 %v1340, %v1342
        %v2203 = vmax.f32 %v2202, %v1533
        %v2204 = vmax.f32 %v2203, %v1535
        %v2205 = vmax.f32 %v2204, %v1726
        %v2206 = vmax.f32 %v2205, %v1728
        %v2207 = vmax.f32 %v2206, %v1919
        %v2208 = vmax.f32 %v2207, %v1921
        %2209 = vmax.xlane.f32.xlu0 %v2208
        %v2210 = vpop.xlane.xlu0 %2209
        %v2211 = vsub.f32 %v1186, %v1931
        %v2212 = vsub.f32 %v1188, %v1931
        %v2213 = vsub.f32 %v1379, %v1931
        %v2214 = vsub.f32 %v1381, %v1931
        %v2215 = vsub.f32 %v1572, %v1931
        %v2216 = vsub.f32 %v1574, %v1931
        %v2217 = vsub.f32 %v1765, %v1931
        %v2218 = vsub.f32 %v1767, %v1931
        %v2219 = vsub.f32 %v1190, %v1940
        %v2220 = vsub.f32 %v1192, %v1940
        %v2221 = vsub.f32 %v1383, %v1940
        %v2222 = vsub.f32 %v1385, %v1940
        %v2223 = vsub.f32 %v1576, %v1940
        %v2224 = vsub.f32 %v1578, %v1940
        %v2225 = vsub.f32 %v1769, %v1940
        %v2226 = vsub.f32 %v1771, %v1940
        %v2227 = vsub.f32 %v1196, %v1949
        %v2228 = vsub.f32 %v1198, %v1949
        %v2229 = vsub.f32 %v1389, %v1949
        %v2230 = vsub.f32 %v1391, %v1949
        %v2231 = vsub.f32 %v1582, %v1949
        %v2232 = vsub.f32 %v1584, %v1949
        %v2233 = vsub.f32 %v1775, %v1949
        %v2234 = vsub.f32 %v1777, %v1949
        %v2235 = vsub.f32 %v1200, %v1958
        %v2236 = vsub.f32 %v1202, %v1958
        %v2237 = vsub.f32 %v1393, %v1958
        %v2238 = vsub.f32 %v1395, %v1958
        %v2239 = vsub.f32 %v1586, %v1958
        %v2240 = vsub.f32 %v1588, %v1958
        %v2241 = vsub.f32 %v1779, %v1958
        %v2242 = vsub.f32 %v1781, %v1958
        %v2243 = vsub.f32 %v1206, %v1967
        %v2244 = vsub.f32 %v1208, %v1967
        %v2245 = vsub.f32 %v1399, %v1967
        %v2246 = vsub.f32 %v1401, %v1967
        %v2247 = vsub.f32 %v1592, %v1967
        %v2248 = vsub.f32 %v1594, %v1967
        %v2249 = vsub.f32 %v1785, %v1967
        %v2250 = vsub.f32 %v1787, %v1967
        %v2251 = vsub.f32 %v1210, %v1976
        %v2252 = vsub.f32 %v1212, %v1976
        %v2253 = vsub.f32 %v1403, %v1976
        %v2254 = vsub.f32 %v1405, %v1976
        %v2255 = vsub.f32 %v1596, %v1976
        %v2256 = vsub.f32 %v1598, %v1976
        %v2257 = vsub.f32 %v1789, %v1976
        %v2258 = vsub.f32 %v1791, %v1976
        %v2259 = vsub.f32 %v1216, %v1985
        %v2260 = vsub.f32 %v1218, %v1985
        %v2261 = vsub.f32 %v1409, %v1985
        %v2262 = vsub.f32 %v1411, %v1985
        %v2263 = vsub.f32 %v1602, %v1985
        %v2264 = vsub.f32 %v1604, %v1985
        %v2265 = vsub.f32 %v1795, %v1985
        %v2266 = vsub.f32 %v1797, %v1985
        %v2267 = vsub.f32 %v1220, %v1994
        %v2268 = vsub.f32 %v1222, %v1994
        %v2269 = vsub.f32 %v1413, %v1994
        %v2270 = vsub.f32 %v1415, %v1994
        %v2271 = vsub.f32 %v1606, %v1994
        %v2272 = vsub.f32 %v1608, %v1994
        %v2273 = vsub.f32 %v1799, %v1994
        %v2274 = vsub.f32 %v1801, %v1994
        %v2275 = vsub.f32 %v1226, %v2003
        %v2276 = vsub.f32 %v1228, %v2003
        %v2277 = vsub.f32 %v1419, %v2003
        %v2278 = vsub.f32 %v1421, %v2003
        %v2279 = vsub.f32 %v1612, %v2003
        %v2280 = vsub.f32 %v1614, %v2003
        %v2281 = vsub.f32 %v1805, %v2003
        %v2282 = vsub.f32 %v1807, %v2003
        %v2283 = vsub.f32 %v1230, %v2012
        %v2284 = vsub.f32 %v1232, %v2012
        %v2285 = vsub.f32 %v1423, %v2012
        %v2286 = vsub.f32 %v1425, %v2012
        %v2287 = vsub.f32 %v1616, %v2012
        %v2288 = vsub.f32 %v1618, %v2012
        %v2289 = vsub.f32 %v1809, %v2012
        %v2290 = vsub.f32 %v1811, %v2012
        %v2291 = vsub.f32 %v1236, %v2021
        %v2292 = vsub.f32 %v1238, %v2021
        %v2293 = vsub.f32 %v1429, %v2021
        %v2294 = vsub.f32 %v1431, %v2021
        %v2295 = vsub.f32 %v1622, %v2021
        %v2296 = vsub.f32 %v1624, %v2021
        %v2297 = vsub.f32 %v1815, %v2021
        %v2298 = vsub.f32 %v1817, %v2021
        %v2299 = vsub.f32 %v1240, %v2030
        %v2300 = vsub.f32 %v1242, %v2030
        %v2301 = vsub.f32 %v1433, %v2030
        %v2302 = vsub.f32 %v1435, %v2030
        %v2303 = vsub.f32 %v1626, %v2030
        %v2304 = vsub.f32 %v1628, %v2030
        %v2305 = vsub.f32 %v1819, %v2030
        %v2306 = vsub.f32 %v1821, %v2030
        %v2307 = vsub.f32 %v1246, %v2039
        %v2308 = vsub.f32 %v1248, %v2039
        %v2309 = vsub.f32 %v1439, %v2039
        %v2310 = vsub.f32 %v1441, %v2039
        %v2311 = vsub.f32 %v1632, %v2039
        %v2312 = vsub.f32 %v1634, %v2039
        %v2313 = vsub.f32 %v1825, %v2039
        %v2314 = vsub.f32 %v1827, %v2039
        %v2315 = vsub.f32 %v1250, %v2048
        %v2316 = vsub.f32 %v1252, %v2048
        %v2317 = vsub.f32 %v1443, %v2048
        %v2318 = vsub.f32 %v1445, %v2048
        %v2319 = vsub.f32 %v1636, %v2048
        %v2320 = vsub.f32 %v1638, %v2048
        %v2321 = vsub.f32 %v1829, %v2048
        %v2322 = vsub.f32 %v1831, %v2048
        %v2323 = vsub.f32 %v1256, %v2057
        %v2324 = vsub.f32 %v1258, %v2057
        %v2325 = vsub.f32 %v1449, %v2057
        %v2326 = vsub.f32 %v1451, %v2057
        %v2327 = vsub.f32 %v1642, %v2057
        %v2328 = vsub.f32 %v1644, %v2057
        %v2329 = vsub.f32 %v1835, %v2057
        %v2330 = vsub.f32 %v1837, %v2057
        %v2331 = vsub.f32 %v1260, %v2066
        %v2332 = vsub.f32 %v1262, %v2066
        %v2333 = vsub.f32 %v1453, %v2066
        %v2334 = vsub.f32 %v1455, %v2066
        %v2335 = vsub.f32 %v1646, %v2066
        %v2336 = vsub.f32 %v1648, %v2066
        %v2337 = vsub.f32 %v1839, %v2066
        %v2338 = vsub.f32 %v1841, %v2066
        %v2339 = vsub.f32 %v1266, %v2075
        %v2340 = vsub.f32 %v1268, %v2075
        %v2341 = vsub.f32 %v1459, %v2075
        %v2342 = vsub.f32 %v1461, %v2075
        %v2343 = vsub.f32 %v1652, %v2075
        %v2344 = vsub.f32 %v1654, %v2075
        %v2345 = vsub.f32 %v1845, %v2075
        %v2346 = vsub.f32 %v1847, %v2075
        %v2347 = vsub.f32 %v1270, %v2084
        %v2348 = vsub.f32 %v1272, %v2084
        %v2349 = vsub.f32 %v1463, %v2084
        %v2350 = vsub.f32 %v1465, %v2084
        %v2351 = vsub.f32 %v1656, %v2084
        %v2352 = vsub.f32 %v1658, %v2084
        %v2353 = vsub.f32 %v1849, %v2084
        %v2354 = vsub.f32 %v1851, %v2084
        %v2355 = vsub.f32 %v1276, %v2093
        %v2356 = vsub.f32 %v1278, %v2093
        %v2357 = vsub.f32 %v1469, %v2093
        %v2358 = vsub.f32 %v1471, %v2093
        %v2359 = vsub.f32 %v1662, %v2093
        %v2360 = vsub.f32 %v1664, %v2093
        %v2361 = vsub.f32 %v1855, %v2093
        %v2362 = vsub.f32 %v1857, %v2093
        %v2363 = vsub.f32 %v1280, %v2102
        %v2364 = vsub.f32 %v1282, %v2102
        %v2365 = vsub.f32 %v1473, %v2102
        %v2366 = vsub.f32 %v1475, %v2102
        %v2367 = vsub.f32 %v1666, %v2102
        %v2368 = vsub.f32 %v1668, %v2102
        %v2369 = vsub.f32 %v1859, %v2102
        %v2370 = vsub.f32 %v1861, %v2102
        %v2371 = vsub.f32 %v1286, %v2111
        %v2372 = vsub.f32 %v1288, %v2111
        %v2373 = vsub.f32 %v1479, %v2111
        %v2374 = vsub.f32 %v1481, %v2111
        %v2375 = vsub.f32 %v1672, %v2111
        %v2376 = vsub.f32 %v1674, %v2111
        %v2377 = vsub.f32 %v1865, %v2111
        %v2378 = vsub.f32 %v1867, %v2111
        %v2379 = vsub.f32 %v1290, %v2120
        %v2380 = vsub.f32 %v1292, %v2120
        %v2381 = vsub.f32 %v1483, %v2120
        %v2382 = vsub.f32 %v1485, %v2120
        %v2383 = vsub.f32 %v1676, %v2120
        %v2384 = vsub.f32 %v1678, %v2120
        %v2385 = vsub.f32 %v1869, %v2120
        %v2386 = vsub.f32 %v1871, %v2120
        %v2387 = vsub.f32 %v1296, %v2129
        %v2388 = vsub.f32 %v1298, %v2129
        %v2389 = vsub.f32 %v1489, %v2129
        %v2390 = vsub.f32 %v1491, %v2129
        %v2391 = vsub.f32 %v1682, %v2129
        %v2392 = vsub.f32 %v1684, %v2129
        %v2393 = vsub.f32 %v1875, %v2129
        %v2394 = vsub.f32 %v1877, %v2129
        %v2395 = vsub.f32 %v1300, %v2138
        %v2396 = vsub.f32 %v1302, %v2138
        %v2397 = vsub.f32 %v1493, %v2138
        %v2398 = vsub.f32 %v1495, %v2138
        %v2399 = vsub.f32 %v1686, %v2138
        %v2400 = vsub.f32 %v1688, %v2138
        %v2401 = vsub.f32 %v1879, %v2138
        %v2402 = vsub.f32 %v1881, %v2138
        %v2403 = vsub.f32 %v1306, %v2147
        %v2404 = vsub.f32 %v1308, %v2147
        %v2405 = vsub.f32 %v1499, %v2147
        %v2406 = vsub.f32 %v1501, %v2147
        %v2407 = vsub.f32 %v1692, %v2147
        %v2408 = vsub.f32 %v1694, %v2147
        %v2409 = vsub.f32 %v1885, %v2147
        %v2410 = vsub.f32 %v1887, %v2147
        %v2411 = vsub.f32 %v1310, %v2156
        %v2412 = vsub.f32 %v1312, %v2156
        %v2413 = vsub.f32 %v1503, %v2156
        %v2414 = vsub.f32 %v1505, %v2156
        %v2415 = vsub.f32 %v1696, %v2156
        %v2416 = vsub.f32 %v1698, %v2156
        %v2417 = vsub.f32 %v1889, %v2156
        %v2418 = vsub.f32 %v1891, %v2156
        %v2419 = vsub.f32 %v1316, %v2165
        %v2420 = vsub.f32 %v1318, %v2165
        %v2421 = vsub.f32 %v1509, %v2165
        %v2422 = vsub.f32 %v1511, %v2165
        %v2423 = vsub.f32 %v1702, %v2165
        %v2424 = vsub.f32 %v1704, %v2165
        %v2425 = vsub.f32 %v1895, %v2165
        %v2426 = vsub.f32 %v1897, %v2165
        %v2427 = vsub.f32 %v1320, %v2174
        %v2428 = vsub.f32 %v1322, %v2174
        %v2429 = vsub.f32 %v1513, %v2174
        %v2430 = vsub.f32 %v1515, %v2174
        %v2431 = vsub.f32 %v1706, %v2174
        %v2432 = vsub.f32 %v1708, %v2174
        %v2433 = vsub.f32 %v1899, %v2174
        %v2434 = vsub.f32 %v1901, %v2174
        %v2435 = vsub.f32 %v1326, %v2183
        %v2436 = vsub.f32 %v1328, %v2183
        %v2437 = vsub.f32 %v1519, %v2183
        %v2438 = vsub.f32 %v1521, %v2183
        %v2439 = vsub.f32 %v1712, %v2183
        %v2440 = vsub.f32 %v1714, %v2183
        %v2441 = vsub.f32 %v1905, %v2183
        %v2442 = vsub.f32 %v1907, %v2183
        %v2443 = vsub.f32 %v1330, %v2192
        %v2444 = vsub.f32 %v1332, %v2192
        %v2445 = vsub.f32 %v1523, %v2192
        %v2446 = vsub.f32 %v1525, %v2192
        %v2447 = vsub.f32 %v1716, %v2192
        %v2448 = vsub.f32 %v1718, %v2192
        %v2449 = vsub.f32 %v1909, %v2192
        %v2450 = vsub.f32 %v1911, %v2192
        %v2451 = vsub.f32 %v1336, %v2201
        %v2452 = vsub.f32 %v1338, %v2201
        %v2453 = vsub.f32 %v1529, %v2201
        %v2454 = vsub.f32 %v1531, %v2201
        %v2455 = vsub.f32 %v1722, %v2201
        %v2456 = vsub.f32 %v1724, %v2201
        %v2457 = vsub.f32 %v1915, %v2201
        %v2458 = vsub.f32 %v1917, %v2201
        %v2459 = vsub.f32 %v1340, %v2210
        %v2460 = vsub.f32 %v1342, %v2210
        %v2461 = vsub.f32 %v1533, %v2210
        %v2462 = vsub.f32 %v1535, %v2210
        %v2463 = vsub.f32 %v1726, %v2210
        %v2464 = vsub.f32 %v1728, %v2210
        %v2465 = vsub.f32 %v1919, %v2210
        %v2466 = vsub.f32 %v1921, %v2210
        %v2467 = vmul.f32 %v2211, 1.442695
        %v2468 = vpow.pop %v2467
        %v2469 = vmul.f32 %v2212, 1.442695
        %v2470 = vpow.pop %v2469
        %v2471 = vmul.f32 %v2213, 1.442695
        %v2472 = vpow.pop %v2471
        %v2473 = vmul.f32 %v2214, 1.442695
        %v2474 = vpow.pop %v2473
        %v2475 = vmul.f32 %v2215, 1.442695
        %v2476 = vpow.pop %v2475
        %v2477 = vmul.f32 %v2216, 1.442695
        %v2478 = vpow.pop %v2477
        %v2479 = vmul.f32 %v2217, 1.442695
        %v2480 = vpow.pop %v2479
        %v2481 = vmul.f32 %v2218, 1.442695
        %v2482 = vpow.pop %v2481
        %v2483 = vmul.f32 %v2219, 1.442695
        %v2484 = vpow.pop %v2483
        %v2485 = vmul.f32 %v2220, 1.442695
        %v2486 = vpow.pop %v2485
        %v2487 = vmul.f32 %v2221, 1.442695
        %v2488 = vpow.pop %v2487
        %v2489 = vmul.f32 %v2222, 1.442695
        %v2490 = vpow.pop %v2489
        %v2491 = vmul.f32 %v2223, 1.442695
        %v2492 = vpow.pop %v2491
        %v2493 = vmul.f32 %v2224, 1.442695
        %v2494 = vpow.pop %v2493
        %v2495 = vmul.f32 %v2225, 1.442695
        %v2496 = vpow.pop %v2495
        %v2497 = vmul.f32 %v2226, 1.442695
        %v2498 = vpow.pop %v2497
        %v2499 = vmul.f32 %v2227, 1.442695
        %v2500 = vpow.pop %v2499
        %v2501 = vmul.f32 %v2228, 1.442695
        %v2502 = vpow.pop %v2501
        %v2503 = vmul.f32 %v2229, 1.442695
        %v2504 = vpow.pop %v2503
        %v2505 = vmul.f32 %v2230, 1.442695
        %v2506 = vpow.pop %v2505
        %v2507 = vmul.f32 %v2231, 1.442695
        %v2508 = vpow.pop %v2507
        %v2509 = vmul.f32 %v2232, 1.442695
        %v2510 = vpow.pop %v2509
        %v2511 = vmul.f32 %v2233, 1.442695
        %v2512 = vpow.pop %v2511
        %v2513 = vmul.f32 %v2234, 1.442695
        %v2514 = vpow.pop %v2513
        %v2515 = vmul.f32 %v2235, 1.442695
        %v2516 = vpow.pop %v2515
        %v2517 = vmul.f32 %v2236, 1.442695
        %v2518 = vpow.pop %v2517
        %v2519 = vmul.f32 %v2237, 1.442695
        %v2520 = vpow.pop %v2519
        %v2521 = vmul.f32 %v2238, 1.442695
        %v2522 = vpow.pop %v2521
        %v2523 = vmul.f32 %v2239, 1.442695
        %v2524 = vpow.pop %v2523
        %v2525 = vmul.f32 %v2240, 1.442695
        %v2526 = vpow.pop %v2525
        %v2527 = vmul.f32 %v2241, 1.442695
        %v2528 = vpow.pop %v2527
        %v2529 = vmul.f32 %v2242, 1.442695
        %v2530 = vpow.pop %v2529
        %v2531 = vmul.f32 %v2243, 1.442695
        %v2532 = vpow.pop %v2531
        %v2533 = vmul.f32 %v2244, 1.442695
        %v2534 = vpow.pop %v2533
        %v2535 = vmul.f32 %v2245, 1.442695
        %v2536 = vpow.pop %v2535
        %v2537 = vmul.f32 %v2246, 1.442695
        %v2538 = vpow.pop %v2537
        %v2539 = vmul.f32 %v2247, 1.442695
        %v2540 = vpow.pop %v2539
        %v2541 = vmul.f32 %v2248, 1.442695
        %v2542 = vpow.pop %v2541
        %v2543 = vmul.f32 %v2249, 1.442695
        %v2544 = vpow.pop %v2543
        %v2545 = vmul.f32 %v2250, 1.442695
        %v2546 = vpow.pop %v2545
        %v2547 = vmul.f32 %v2251, 1.442695
        %v2548 = vpow.pop %v2547
        %v2549 = vmul.f32 %v2252, 1.442695
        %v2550 = vpow.pop %v2549
        %v2551 = vmul.f32 %v2253, 1.442695
        %v2552 = vpow.pop %v2551
        %v2553 = vmul.f32 %v2254, 1.442695
        %v2554 = vpow.pop %v2553
        %v2555 = vmul.f32 %v2255, 1.442695
        %v2556 = vpow.pop %v2555
        %v2557 = vmul.f32 %v2256, 1.442695
        %v2558 = vpow.pop %v2557
        %v2559 = vmul.f32 %v2257, 1.442695
        %v2560 = vpow.pop %v2559
        %v2561 = vmul.f32 %v2258, 1.442695
        %v2562 = vpow.pop %v2561
        %v2563 = vmul.f32 %v2259, 1.442695
        %v2564 = vpow.pop %v2563
        %v2565 = vmul.f32 %v2260, 1.442695
        %v2566 = vpow.pop %v2565
        %v2567 = vmul.f32 %v2261, 1.442695
        %v2568 = vpow.pop %v2567
        %v2569 = vmul.f32 %v2262, 1.442695
        %v2570 = vpow.pop %v2569
        %v2571 = vmul.f32 %v2263, 1.442695
        %v2572 = vpow.pop %v2571
        %v2573 = vmul.f32 %v2264, 1.442695
        %v2574 = vpow.pop %v2573
        %v2575 = vmul.f32 %v2265, 1.442695
        %v2576 = vpow.pop %v2575
        %v2577 = vmul.f32 %v2266, 1.442695
        %v2578 = vpow.pop %v2577
        %v2579 = vmul.f32 %v2267, 1.442695
        %v2580 = vpow.pop %v2579
        %v2581 = vmul.f32 %v2268, 1.442695
        %v2582 = vpow.pop %v2581
        %v2583 = vmul.f32 %v2269, 1.442695
        %v2584 = vpow.pop %v2583
        %v2585 = vmul.f32 %v2270, 1.442695
        %v2586 = vpow.pop %v2585
        %v2587 = vmul.f32 %v2271, 1.442695
        %v2588 = vpow.pop %v2587
        %v2589 = vmul.f32 %v2272, 1.442695
        %v2590 = vpow.pop %v2589
        %v2591 = vmul.f32 %v2273, 1.442695
        %v2592 = vpow.pop %v2591
        %v2593 = vmul.f32 %v2274, 1.442695
        %v2594 = vpow.pop %v2593
        %v2595 = vmul.f32 %v2275, 1.442695
        %v2596 = vpow.pop %v2595
        %v2597 = vmul.f32 %v2276, 1.442695
        %v2598 = vpow.pop %v2597
        %v2599 = vmul.f32 %v2277, 1.442695
        %v2600 = vpow.pop %v2599
        %v2601 = vmul.f32 %v2278, 1.442695
        %v2602 = vpow.pop %v2601
        %v2603 = vmul.f32 %v2279, 1.442695
        %v2604 = vpow.pop %v2603
        %v2605 = vmul.f32 %v2280, 1.442695
        %v2606 = vpow.pop %v2605
        %v2607 = vmul.f32 %v2281, 1.442695
        %v2608 = vpow.pop %v2607
        %v2609 = vmul.f32 %v2282, 1.442695
        %v2610 = vpow.pop %v2609
        %v2611 = vmul.f32 %v2283, 1.442695
        %v2612 = vpow.pop %v2611
        %v2613 = vmul.f32 %v2284, 1.442695
        %v2614 = vpow.pop %v2613
        %v2615 = vmul.f32 %v2285, 1.442695
        %v2616 = vpow.pop %v2615
        %v2617 = vmul.f32 %v2286, 1.442695
        %v2618 = vpow.pop %v2617
        %v2619 = vmul.f32 %v2287, 1.442695
        %v2620 = vpow.pop %v2619
        %v2621 = vmul.f32 %v2288, 1.442695
        %v2622 = vpow.pop %v2621
        %v2623 = vmul.f32 %v2289, 1.442695
        %v2624 = vpow.pop %v2623
        %v2625 = vmul.f32 %v2290, 1.442695
        %v2626 = vpow.pop %v2625
        %v2627 = vmul.f32 %v2291, 1.442695
        %v2628 = vpow.pop %v2627
        %v2629 = vmul.f32 %v2292, 1.442695
        %v2630 = vpow.pop %v2629
        %v2631 = vmul.f32 %v2293, 1.442695
        %v2632 = vpow.pop %v2631
        %v2633 = vmul.f32 %v2294, 1.442695
        %v2634 = vpow.pop %v2633
        %v2635 = vmul.f32 %v2295, 1.442695
        %v2636 = vpow.pop %v2635
        %v2637 = vmul.f32 %v2296, 1.442695
        %v2638 = vpow.pop %v2637
        %v2639 = vmul.f32 %v2297, 1.442695
        %v2640 = vpow.pop %v2639
        %v2641 = vmul.f32 %v2298, 1.442695
        %v2642 = vpow.pop %v2641
        %v2643 = vmul.f32 %v2299, 1.442695
        %v2644 = vpow.pop %v2643
        %v2645 = vmul.f32 %v2300, 1.442695
        %v2646 = vpow.pop %v2645
        %v2647 = vmul.f32 %v2301, 1.442695
        %v2648 = vpow.pop %v2647
        %v2649 = vmul.f32 %v2302, 1.442695
        %v2650 = vpow.pop %v2649
        %v2651 = vmul.f32 %v2303, 1.442695
        %v2652 = vpow.pop %v2651
        %v2653 = vmul.f32 %v2304, 1.442695
        %v2654 = vpow.pop %v2653
        %v2655 = vmul.f32 %v2305, 1.442695
        %v2656 = vpow.pop %v2655
        %v2657 = vmul.f32 %v2306, 1.442695
        %v2658 = vpow.pop %v2657
        %v2659 = vmul.f32 %v2307, 1.442695
        %v2660 = vpow.pop %v2659
        %v2661 = vmul.f32 %v2308, 1.442695
        %v2662 = vpow.pop %v2661
        %v2663 = vmul.f32 %v2309, 1.442695
        %v2664 = vpow.pop %v2663
        %v2665 = vmul.f32 %v2310, 1.442695
        %v2666 = vpow.pop %v2665
        %v2667 = vmul.f32 %v2311, 1.442695
        %v2668 = vpow.pop %v2667
        %v2669 = vmul.f32 %v2312, 1.442695
        %v2670 = vpow.pop %v2669
        %v2671 = vmul.f32 %v2313, 1.442695
        %v2672 = vpow.pop %v2671
        %v2673 = vmul.f32 %v2314, 1.442695
        %v2674 = vpow.pop %v2673
        %v2675 = vmul.f32 %v2315, 1.442695
        %v2676 = vpow.pop %v2675
        %v2677 = vmul.f32 %v2316, 1.442695
        %v2678 = vpow.pop %v2677
        %v2679 = vmul.f32 %v2317, 1.442695
        %v2680 = vpow.pop %v2679
        %v2681 = vmul.f32 %v2318, 1.442695
        %v2682 = vpow.pop %v2681
        %v2683 = vmul.f32 %v2319, 1.442695
        %v2684 = vpow.pop %v2683
        %v2685 = vmul.f32 %v2320, 1.442695
        %v2686 = vpow.pop %v2685
        %v2687 = vmul.f32 %v2321, 1.442695
        %v2688 = vpow.pop %v2687
        %v2689 = vmul.f32 %v2322, 1.442695
        %v2690 = vpow.pop %v2689
        %v2691 = vmul.f32 %v2323, 1.442695
        %v2692 = vpow.pop %v2691
        %v2693 = vmul.f32 %v2324, 1.442695
        %v2694 = vpow.pop %v2693
        %v2695 = vmul.f32 %v2325, 1.442695
        %v2696 = vpow.pop %v2695
        %v2697 = vmul.f32 %v2326, 1.442695
        %v2698 = vpow.pop %v2697
        %v2699 = vmul.f32 %v2327, 1.442695
        %v2700 = vpow.pop %v2699
        %v2701 = vmul.f32 %v2328, 1.442695
        %v2702 = vpow.pop %v2701
        %v2703 = vmul.f32 %v2329, 1.442695
        %v2704 = vpow.pop %v2703
        %v2705 = vmul.f32 %v2330, 1.442695
        %v2706 = vpow.pop %v2705
        %v2707 = vmul.f32 %v2331, 1.442695
        %v2708 = vpow.pop %v2707
        %v2709 = vmul.f32 %v2332, 1.442695
        %v2710 = vpow.pop %v2709
        %v2711 = vmul.f32 %v2333, 1.442695
        %v2712 = vpow.pop %v2711
        %v2713 = vmul.f32 %v2334, 1.442695
        %v2714 = vpow.pop %v2713
        %v2715 = vmul.f32 %v2335, 1.442695
        %v2716 = vpow.pop %v2715
        %v2717 = vmul.f32 %v2336, 1.442695
        %v2718 = vpow.pop %v2717
        %v2719 = vmul.f32 %v2337, 1.442695
        %v2720 = vpow.pop %v2719
        %v2721 = vmul.f32 %v2338, 1.442695
        %v2722 = vpow.pop %v2721
        %v2723 = vmul.f32 %v2339, 1.442695
        %v2724 = vpow.pop %v2723
        %v2725 = vmul.f32 %v2340, 1.442695
        %v2726 = vpow.pop %v2725
        %v2727 = vmul.f32 %v2341, 1.442695
        %v2728 = vpow.pop %v2727
        %v2729 = vmul.f32 %v2342, 1.442695
        %v2730 = vpow.pop %v2729
        %v2731 = vmul.f32 %v2343, 1.442695
        %v2732 = vpow.pop %v2731
        %v2733 = vmul.f32 %v2344, 1.442695
        %v2734 = vpow.pop %v2733
        %v2735 = vmul.f32 %v2345, 1.442695
        %v2736 = vpow.pop %v2735
        %v2737 = vmul.f32 %v2346, 1.442695
        %v2738 = vpow.pop %v2737
        %v2739 = vmul.f32 %v2347, 1.442695
        %v2740 = vpow.pop %v2739
        %v2741 = vmul.f32 %v2348, 1.442695
        %v2742 = vpow.pop %v2741
        %v2743 = vmul.f32 %v2349, 1.442695
        %v2744 = vpow.pop %v2743
        %v2745 = vmul.f32 %v2350, 1.442695
        %v2746 = vpow.pop %v2745
        %v2747 = vmul.f32 %v2351, 1.442695
        %v2748 = vpow.pop %v2747
        %v2749 = vmul.f32 %v2352, 1.442695
        %v2750 = vpow.pop %v2749
        %v2751 = vmul.f32 %v2353, 1.442695
        %v2752 = vpow.pop %v2751
        %v2753 = vmul.f32 %v2354, 1.442695
        %v2754 = vpow.pop %v2753
        %v2755 = vmul.f32 %v2355, 1.442695
        %v2756 = vpow.pop %v2755
        %v2757 = vmul.f32 %v2356, 1.442695
        %v2758 = vpow.pop %v2757
        %v2759 = vmul.f32 %v2357, 1.442695
        %v2760 = vpow.pop %v2759
        %v2761 = vmul.f32 %v2358, 1.442695
        %v2762 = vpow.pop %v2761
        %v2763 = vmul.f32 %v2359, 1.442695
        %v2764 = vpow.pop %v2763
        %v2765 = vmul.f32 %v2360, 1.442695
        %v2766 = vpow.pop %v2765
        %v2767 = vmul.f32 %v2361, 1.442695
        %v2768 = vpow.pop %v2767
        %v2769 = vmul.f32 %v2362, 1.442695
        %v2770 = vpow.pop %v2769
        %v2771 = vmul.f32 %v2363, 1.442695
        %v2772 = vpow.pop %v2771
        %v2773 = vmul.f32 %v2364, 1.442695
        %v2774 = vpow.pop %v2773
        %v2775 = vmul.f32 %v2365, 1.442695
        %v2776 = vpow.pop %v2775
        %v2777 = vmul.f32 %v2366, 1.442695
        %v2778 = vpow.pop %v2777
        %v2779 = vmul.f32 %v2367, 1.442695
        %v2780 = vpow.pop %v2779
        %v2781 = vmul.f32 %v2368, 1.442695
        %v2782 = vpow.pop %v2781
        %v2783 = vmul.f32 %v2369, 1.442695
        %v2784 = vpow.pop %v2783
        %v2785 = vmul.f32 %v2370, 1.442695
        %v2786 = vpow.pop %v2785
        %v2787 = vmul.f32 %v2371, 1.442695
        %v2788 = vpow.pop %v2787
        %v2789 = vmul.f32 %v2372, 1.442695
        %v2790 = vpow.pop %v2789
        %v2791 = vmul.f32 %v2373, 1.442695
        %v2792 = vpow.pop %v2791
        %v2793 = vmul.f32 %v2374, 1.442695
        %v2794 = vpow.pop %v2793
        %v2795 = vmul.f32 %v2375, 1.442695
        %v2796 = vpow.pop %v2795
        %v2797 = vmul.f32 %v2376, 1.442695
        %v2798 = vpow.pop %v2797
        %v2799 = vmul.f32 %v2377, 1.442695
        %v2800 = vpow.pop %v2799
        %v2801 = vmul.f32 %v2378, 1.442695
        %v2802 = vpow.pop %v2801
        %v2803 = vmul.f32 %v2379, 1.442695
        %v2804 = vpow.pop %v2803
        %v2805 = vmul.f32 %v2380, 1.442695
        %v2806 = vpow.pop %v2805
        %v2807 = vmul.f32 %v2381, 1.442695
        %v2808 = vpow.pop %v2807
        %v2809 = vmul.f32 %v2382, 1.442695
        %v2810 = vpow.pop %v2809
        %v2811 = vmul.f32 %v2383, 1.442695
        %v2812 = vpow.pop %v2811
        %v2813 = vmul.f32 %v2384, 1.442695
        %v2814 = vpow.pop %v2813
        %v2815 = vmul.f32 %v2385, 1.442695
        %v2816 = vpow.pop %v2815
        %v2817 = vmul.f32 %v2386, 1.442695
        %v2818 = vpow.pop %v2817
        %v2819 = vmul.f32 %v2387, 1.442695
        %v2820 = vpow.pop %v2819
        %v2821 = vmul.f32 %v2388, 1.442695
        %v2822 = vpow.pop %v2821
        %v2823 = vmul.f32 %v2389, 1.442695
        %v2824 = vpow.pop %v2823
        %v2825 = vmul.f32 %v2390, 1.442695
        %v2826 = vpow.pop %v2825
        %v2827 = vmul.f32 %v2391, 1.442695
        %v2828 = vpow.pop %v2827
        %v2829 = vmul.f32 %v2392, 1.442695
        %v2830 = vpow.pop %v2829
        %v2831 = vmul.f32 %v2393, 1.442695
        %v2832 = vpow.pop %v2831
        %v2833 = vmul.f32 %v2394, 1.442695
        %v2834 = vpow.pop %v2833
        %v2835 = vmul.f32 %v2395, 1.442695
        %v2836 = vpow.pop %v2835
        %v2837 = vmul.f32 %v2396, 1.442695
        %v2838 = vpow.pop %v2837
        %v2839 = vmul.f32 %v2397, 1.442695
        %v2840 = vpow.pop %v2839
        %v2841 = vmul.f32 %v2398, 1.442695
        %v2842 = vpow.pop %v2841
        %v2843 = vmul.f32 %v2399, 1.442695
        %v2844 = vpow.pop %v2843
        %v2845 = vmul.f32 %v2400, 1.442695
        %v2846 = vpow.pop %v2845
        %v2847 = vmul.f32 %v2401, 1.442695
        %v2848 = vpow.pop %v2847
        %v2849 = vmul.f32 %v2402, 1.442695
        %v2850 = vpow.pop %v2849
        %v2851 = vmul.f32 %v2403, 1.442695
        %v2852 = vpow.pop %v2851
        %v2853 = vmul.f32 %v2404, 1.442695
        %v2854 = vpow.pop %v2853
        %v2855 = vmul.f32 %v2405, 1.442695
        %v2856 = vpow.pop %v2855
        %v2857 = vmul.f32 %v2406, 1.442695
        %v2858 = vpow.pop %v2857
        %v2859 = vmul.f32 %v2407, 1.442695
        %v2860 = vpow.pop %v2859
        %v2861 = vmul.f32 %v2408, 1.442695
        %v2862 = vpow.pop %v2861
        %v2863 = vmul.f32 %v2409, 1.442695
        %v2864 = vpow.pop %v2863
        %v2865 = vmul.f32 %v2410, 1.442695
        %v2866 = vpow.pop %v2865
        %v2867 = vmul.f32 %v2411, 1.442695
        %v2868 = vpow.pop %v2867
        %v2869 = vmul.f32 %v2412, 1.442695
        %v2870 = vpow.pop %v2869
        %v2871 = vmul.f32 %v2413, 1.442695
        %v2872 = vpow.pop %v2871
        %v2873 = vmul.f32 %v2414, 1.442695
        %v2874 = vpow.pop %v2873
        %v2875 = vmul.f32 %v2415, 1.442695
        %v2876 = vpow.pop %v2875
        %v2877 = vmul.f32 %v2416, 1.442695
        %v2878 = vpow.pop %v2877
        %v2879 = vmul.f32 %v2417, 1.442695
        %v2880 = vpow.pop %v2879
        %v2881 = vmul.f32 %v2418, 1.442695
        %v2882 = vpow.pop %v2881
        %v2883 = vmul.f32 %v2419, 1.442695
        %v2884 = vpow.pop %v2883
        %v2885 = vmul.f32 %v2420, 1.442695
        %v2886 = vpow.pop %v2885
        %v2887 = vmul.f32 %v2421, 1.442695
        %v2888 = vpow.pop %v2887
        %v2889 = vmul.f32 %v2422, 1.442695
        %v2890 = vpow.pop %v2889
        %v2891 = vmul.f32 %v2423, 1.442695
        %v2892 = vpow.pop %v2891
        %v2893 = vmul.f32 %v2424, 1.442695
        %v2894 = vpow.pop %v2893
        %v2895 = vmul.f32 %v2425, 1.442695
        %v2896 = vpow.pop %v2895
        %v2897 = vmul.f32 %v2426, 1.442695
        %v2898 = vpow.pop %v2897
        %v2899 = vmul.f32 %v2427, 1.442695
        %v2900 = vpow.pop %v2899
        %v2901 = vmul.f32 %v2428, 1.442695
        %v2902 = vpow.pop %v2901
        %v2903 = vmul.f32 %v2429, 1.442695
        %v2904 = vpow.pop %v2903
        %v2905 = vmul.f32 %v2430, 1.442695
        %v2906 = vpow.pop %v2905
        %v2907 = vmul.f32 %v2431, 1.442695
        %v2908 = vpow.pop %v2907
        %v2909 = vmul.f32 %v2432, 1.442695
        %v2910 = vpow.pop %v2909
        %v2911 = vmul.f32 %v2433, 1.442695
        %v2912 = vpow.pop %v2911
        %v2913 = vmul.f32 %v2434, 1.442695
        %v2914 = vpow.pop %v2913
        %v2915 = vmul.f32 %v2435, 1.442695
        %v2916 = vpow.pop %v2915
        %v2917 = vmul.f32 %v2436, 1.442695
        %v2918 = vpow.pop %v2917
        %v2919 = vmul.f32 %v2437, 1.442695
        %v2920 = vpow.pop %v2919
        %v2921 = vmul.f32 %v2438, 1.442695
        %v2922 = vpow.pop %v2921
        %v2923 = vmul.f32 %v2439, 1.442695
        %v2924 = vpow.pop %v2923
        %v2925 = vmul.f32 %v2440, 1.442695
        %v2926 = vpow.pop %v2925
        %v2927 = vmul.f32 %v2441, 1.442695
        %v2928 = vpow.pop %v2927
        %v2929 = vmul.f32 %v2442, 1.442695
        %v2930 = vpow.pop %v2929
        %v2931 = vmul.f32 %v2443, 1.442695
        %v2932 = vpow.pop %v2931
        %v2933 = vmul.f32 %v2444, 1.442695
        %v2934 = vpow.pop %v2933
        %v2935 = vmul.f32 %v2445, 1.442695
        %v2936 = vpow.pop %v2935
        %v2937 = vmul.f32 %v2446, 1.442695
        %v2938 = vpow.pop %v2937
        %v2939 = vmul.f32 %v2447, 1.442695
        %v2940 = vpow.pop %v2939
        %v2941 = vmul.f32 %v2448, 1.442695
        %v2942 = vpow.pop %v2941
        %v2943 = vmul.f32 %v2449, 1.442695
        %v2944 = vpow.pop %v2943
        %v2945 = vmul.f32 %v2450, 1.442695
        %v2946 = vpow.pop %v2945
        %v2947 = vmul.f32 %v2451, 1.442695
        %v2948 = vpow.pop %v2947
        %v2949 = vmul.f32 %v2452, 1.442695
        %v2950 = vpow.pop %v2949
        %v2951 = vmul.f32 %v2453, 1.442695
        %v2952 = vpow.pop %v2951
        %v2953 = vmul.f32 %v2454, 1.442695
        %v2954 = vpow.pop %v2953
        %v2955 = vmul.f32 %v2455, 1.442695
        %v2956 = vpow.pop %v2955
        %v2957 = vmul.f32 %v2456, 1.442695
        %v2958 = vpow.pop %v2957
        %v2959 = vmul.f32 %v2457, 1.442695
        %v2960 = vpow.pop %v2959
        %v2961 = vmul.f32 %v2458, 1.442695
        %v2962 = vpow.pop %v2961
        %v2963 = vmul.f32 %v2459, 1.442695
        %v2964 = vpow.pop %v2963
        %v2965 = vmul.f32 %v2460, 1.442695
        %v2966 = vpow.pop %v2965
        %v2967 = vmul.f32 %v2461, 1.442695
        %v2968 = vpow.pop %v2967
        %v2969 = vmul.f32 %v2462, 1.442695
        %v2970 = vpow.pop %v2969
        %v2971 = vmul.f32 %v2463, 1.442695
        %v2972 = vpow.pop %v2971
        %v2973 = vmul.f32 %v2464, 1.442695
        %v2974 = vpow.pop %v2973
        %v2975 = vmul.f32 %v2465, 1.442695
        %v2976 = vpow.pop %v2975
        %v2977 = vmul.f32 %v2466, 1.442695
        %v2978 = vpow.pop %v2977
        %v2979 = vadd.f32 %v2468, %v2470
        %v2980 = vadd.f32 %v2979, %v2472
        %v2981 = vadd.f32 %v2980, %v2474
        %v2982 = vadd.f32 %v2981, %v2476
        %v2983 = vadd.f32 %v2982, %v2478
        %v2984 = vadd.f32 %v2983, %v2480
        %v2985 = vadd.f32 %v2984, %v2482
        %2986 = vadd.xlane.f32.xlu0 %v2985
        %v2987 = vpop.xlane.xlu0 %2986
        %v2988 = vadd.f32 %v2484, %v2486
        %v2989 = vadd.f32 %v2988, %v2488
        %v2990 = vadd.f32 %v2989, %v2490
        %v2991 = vadd.f32 %v2990, %v2492
        %v2992 = vadd.f32 %v2991, %v2494
        %v2993 = vadd.f32 %v2992, %v2496
        %v2994 = vadd.f32 %v2993, %v2498
        %2995 = vadd.xlane.f32.xlu0 %v2994
        %v2996 = vpop.xlane.xlu0 %2995
        %v2997 = vadd.f32 %v2500, %v2502
        %v2998 = vadd.f32 %v2997, %v2504
        %v2999 = vadd.f32 %v2998, %v2506
        %v3000 = vadd.f32 %v2999, %v2508
        %v3001 = vadd.f32 %v3000, %v2510
        %v3002 = vadd.f32 %v3001, %v2512
        %v3003 = vadd.f32 %v3002, %v2514
        %3004 = vadd.xlane.f32.xlu0 %v3003
        %v3005 = vpop.xlane.xlu0 %3004
        %v3006 = vadd.f32 %v2516, %v2518
        %v3007 = vadd.f32 %v3006, %v2520
        %v3008 = vadd.f32 %v3007, %v2522
        %v3009 = vadd.f32 %v3008, %v2524
        %v3010 = vadd.f32 %v3009, %v2526
        %v3011 = vadd.f32 %v3010, %v2528
        %v3012 = vadd.f32 %v3011, %v2530
        %3013 = vadd.xlane.f32.xlu0 %v3012
        %v3014 = vpop.xlane.xlu0 %3013
        %v3015 = vadd.f32 %v2532, %v2534
        %v3016 = vadd.f32 %v3015, %v2536
        %v3017 = vadd.f32 %v3016, %v2538
        %v3018 = vadd.f32 %v3017, %v2540
        %v3019 = vadd.f32 %v3018, %v2542
        %v3020 = vadd.f32 %v3019, %v2544
        %v3021 = vadd.f32 %v3020, %v2546
        %3022 = vadd.xlane.f32.xlu0 %v3021
        %v3023 = vpop.xlane.xlu0 %3022
        %v3024 = vadd.f32 %v2548, %v2550
        %v3025 = vadd.f32 %v3024, %v2552
        %v3026 = vadd.f32 %v3025, %v2554
        %v3027 = vadd.f32 %v3026, %v2556
        %v3028 = vadd.f32 %v3027, %v2558
        %v3029 = vadd.f32 %v3028, %v2560
        %v3030 = vadd.f32 %v3029, %v2562
        %3031 = vadd.xlane.f32.xlu0 %v3030
        %v3032 = vpop.xlane.xlu0 %3031
        %v3033 = vadd.f32 %v2564, %v2566
        %v3034 = vadd.f32 %v3033, %v2568
        %v3035 = vadd.f32 %v3034, %v2570
        %v3036 = vadd.f32 %v3035, %v2572
        %v3037 = vadd.f32 %v3036, %v2574
        %v3038 = vadd.f32 %v3037, %v2576
        %v3039 = vadd.f32 %v3038, %v2578
        %3040 = vadd.xlane.f32.xlu0 %v3039
        %v3041 = vpop.xlane.xlu0 %3040
        %v3042 = vadd.f32 %v2580, %v2582
        %v3043 = vadd.f32 %v3042, %v2584
        %v3044 = vadd.f32 %v3043, %v2586
        %v3045 = vadd.f32 %v3044, %v2588
        %v3046 = vadd.f32 %v3045, %v2590
        %v3047 = vadd.f32 %v3046, %v2592
        %v3048 = vadd.f32 %v3047, %v2594
        %3049 = vadd.xlane.f32.xlu0 %v3048
        %v3050 = vpop.xlane.xlu0 %3049
        %v3051 = vadd.f32 %v2596, %v2598
        %v3052 = vadd.f32 %v3051, %v2600
        %v3053 = vadd.f32 %v3052, %v2602
        %v3054 = vadd.f32 %v3053, %v2604
        %v3055 = vadd.f32 %v3054, %v2606
        %v3056 = vadd.f32 %v3055, %v2608
        %v3057 = vadd.f32 %v3056, %v2610
        %3058 = vadd.xlane.f32.xlu0 %v3057
        %v3059 = vpop.xlane.xlu0 %3058
        %v3060 = vadd.f32 %v2612, %v2614
        %v3061 = vadd.f32 %v3060, %v2616
        %v3062 = vadd.f32 %v3061, %v2618
        %v3063 = vadd.f32 %v3062, %v2620
        %v3064 = vadd.f32 %v3063, %v2622
        %v3065 = vadd.f32 %v3064, %v2624
        %v3066 = vadd.f32 %v3065, %v2626
        %3067 = vadd.xlane.f32.xlu0 %v3066
        %v3068 = vpop.xlane.xlu0 %3067
        %v3069 = vadd.f32 %v2628, %v2630
        %v3070 = vadd.f32 %v3069, %v2632
        %v3071 = vadd.f32 %v3070, %v2634
        %v3072 = vadd.f32 %v3071, %v2636
        %v3073 = vadd.f32 %v3072, %v2638
        %v3074 = vadd.f32 %v3073, %v2640
        %v3075 = vadd.f32 %v3074, %v2642
        %3076 = vadd.xlane.f32.xlu0 %v3075
        %v3077 = vpop.xlane.xlu0 %3076
        %v3078 = vadd.f32 %v2644, %v2646
        %v3079 = vadd.f32 %v3078, %v2648
        %v3080 = vadd.f32 %v3079, %v2650
        %v3081 = vadd.f32 %v3080, %v2652
        %v3082 = vadd.f32 %v3081, %v2654
        %v3083 = vadd.f32 %v3082, %v2656
        %v3084 = vadd.f32 %v3083, %v2658
        %3085 = vadd.xlane.f32.xlu0 %v3084
        %v3086 = vpop.xlane.xlu0 %3085
        %v3087 = vadd.f32 %v2660, %v2662
        %v3088 = vadd.f32 %v3087, %v2664
        %v3089 = vadd.f32 %v3088, %v2666
        %v3090 = vadd.f32 %v3089, %v2668
        %v3091 = vadd.f32 %v3090, %v2670
        %v3092 = vadd.f32 %v3091, %v2672
        %v3093 = vadd.f32 %v3092, %v2674
        %3094 = vadd.xlane.f32.xlu0 %v3093
        %v3095 = vpop.xlane.xlu0 %3094
        %v3096 = vadd.f32 %v2676, %v2678
        %v3097 = vadd.f32 %v3096, %v2680
        %v3098 = vadd.f32 %v3097, %v2682
        %v3099 = vadd.f32 %v3098, %v2684
        %v3100 = vadd.f32 %v3099, %v2686
        %v3101 = vadd.f32 %v3100, %v2688
        %v3102 = vadd.f32 %v3101, %v2690
        %3103 = vadd.xlane.f32.xlu0 %v3102
        %v3104 = vpop.xlane.xlu0 %3103
        %v3105 = vadd.f32 %v2692, %v2694
        %v3106 = vadd.f32 %v3105, %v2696
        %v3107 = vadd.f32 %v3106, %v2698
        %v3108 = vadd.f32 %v3107, %v2700
        %v3109 = vadd.f32 %v3108, %v2702
        %v3110 = vadd.f32 %v3109, %v2704
        %v3111 = vadd.f32 %v3110, %v2706
        %3112 = vadd.xlane.f32.xlu0 %v3111
        %v3113 = vpop.xlane.xlu0 %3112
        %v3114 = vadd.f32 %v2708, %v2710
        %v3115 = vadd.f32 %v3114, %v2712
        %v3116 = vadd.f32 %v3115, %v2714
        %v3117 = vadd.f32 %v3116, %v2716
        %v3118 = vadd.f32 %v3117, %v2718
        %v3119 = vadd.f32 %v3118, %v2720
        %v3120 = vadd.f32 %v3119, %v2722
        %3121 = vadd.xlane.f32.xlu0 %v3120
        %v3122 = vpop.xlane.xlu0 %3121
        %v3123 = vadd.f32 %v2724, %v2726
        %v3124 = vadd.f32 %v3123, %v2728
        %v3125 = vadd.f32 %v3124, %v2730
        %v3126 = vadd.f32 %v3125, %v2732
        %v3127 = vadd.f32 %v3126, %v2734
        %v3128 = vadd.f32 %v3127, %v2736
        %v3129 = vadd.f32 %v3128, %v2738
        %3130 = vadd.xlane.f32.xlu0 %v3129
        %v3131 = vpop.xlane.xlu0 %3130
        %v3132 = vadd.f32 %v2740, %v2742
        %v3133 = vadd.f32 %v3132, %v2744
        %v3134 = vadd.f32 %v3133, %v2746
        %v3135 = vadd.f32 %v3134, %v2748
        %v3136 = vadd.f32 %v3135, %v2750
        %v3137 = vadd.f32 %v3136, %v2752
        %v3138 = vadd.f32 %v3137, %v2754
        %3139 = vadd.xlane.f32.xlu0 %v3138
        %v3140 = vpop.xlane.xlu0 %3139
        %v3141 = vadd.f32 %v2756, %v2758
        %v3142 = vadd.f32 %v3141, %v2760
        %v3143 = vadd.f32 %v3142, %v2762
        %v3144 = vadd.f32 %v3143, %v2764
        %v3145 = vadd.f32 %v3144, %v2766
        %v3146 = vadd.f32 %v3145, %v2768
        %v3147 = vadd.f32 %v3146, %v2770
        %3148 = vadd.xlane.f32.xlu0 %v3147
        %v3149 = vpop.xlane.xlu0 %3148
        %v3150 = vadd.f32 %v2772, %v2774
        %v3151 = vadd.f32 %v3150, %v2776
        %v3152 = vadd.f32 %v3151, %v2778
        %v3153 = vadd.f32 %v3152, %v2780
        %v3154 = vadd.f32 %v3153, %v2782
        %v3155 = vadd.f32 %v3154, %v2784
        %v3156 = vadd.f32 %v3155, %v2786
        %3157 = vadd.xlane.f32.xlu0 %v3156
        %v3158 = vpop.xlane.xlu0 %3157
        %v3159 = vadd.f32 %v2788, %v2790
        %v3160 = vadd.f32 %v3159, %v2792
        %v3161 = vadd.f32 %v3160, %v2794
        %v3162 = vadd.f32 %v3161, %v2796
        %v3163 = vadd.f32 %v3162, %v2798
        %v3164 = vadd.f32 %v3163, %v2800
        %v3165 = vadd.f32 %v3164, %v2802
        %3166 = vadd.xlane.f32.xlu0 %v3165
        %v3167 = vpop.xlane.xlu0 %3166
        %v3168 = vadd.f32 %v2804, %v2806
        %v3169 = vadd.f32 %v3168, %v2808
        %v3170 = vadd.f32 %v3169, %v2810
        %v3171 = vadd.f32 %v3170, %v2812
        %v3172 = vadd.f32 %v3171, %v2814
        %v3173 = vadd.f32 %v3172, %v2816
        %v3174 = vadd.f32 %v3173, %v2818
        %3175 = vadd.xlane.f32.xlu0 %v3174
        %v3176 = vpop.xlane.xlu0 %3175
        %v3177 = vadd.f32 %v2820, %v2822
        %v3178 = vadd.f32 %v3177, %v2824
        %v3179 = vadd.f32 %v3178, %v2826
        %v3180 = vadd.f32 %v3179, %v2828
        %v3181 = vadd.f32 %v3180, %v2830
        %v3182 = vadd.f32 %v3181, %v2832
        %v3183 = vadd.f32 %v3182, %v2834
        %3184 = vadd.xlane.f32.xlu0 %v3183
        %v3185 = vpop.xlane.xlu0 %3184
        %v3186 = vadd.f32 %v2836, %v2838
        %v3187 = vadd.f32 %v3186, %v2840
        %v3188 = vadd.f32 %v3187, %v2842
        %v3189 = vadd.f32 %v3188, %v2844
        %v3190 = vadd.f32 %v3189, %v2846
        %v3191 = vadd.f32 %v3190, %v2848
        %v3192 = vadd.f32 %v3191, %v2850
        %3193 = vadd.xlane.f32.xlu0 %v3192
        %v3194 = vpop.xlane.xlu0 %3193
        %v3195 = vadd.f32 %v2852, %v2854
        %v3196 = vadd.f32 %v3195, %v2856
        %v3197 = vadd.f32 %v3196, %v2858
        %v3198 = vadd.f32 %v3197, %v2860
        %v3199 = vadd.f32 %v3198, %v2862
        %v3200 = vadd.f32 %v3199, %v2864
        %v3201 = vadd.f32 %v3200, %v2866
        %3202 = vadd.xlane.f32.xlu0 %v3201
        %v3203 = vpop.xlane.xlu0 %3202
        %v3204 = vadd.f32 %v2868, %v2870
        %v3205 = vadd.f32 %v3204, %v2872
        %v3206 = vadd.f32 %v3205, %v2874
        %v3207 = vadd.f32 %v3206, %v2876
        %v3208 = vadd.f32 %v3207, %v2878
        %v3209 = vadd.f32 %v3208, %v2880
        %v3210 = vadd.f32 %v3209, %v2882
        %3211 = vadd.xlane.f32.xlu0 %v3210
        %v3212 = vpop.xlane.xlu0 %3211
        %v3213 = vadd.f32 %v2884, %v2886
        %v3214 = vadd.f32 %v3213, %v2888
        %v3215 = vadd.f32 %v3214, %v2890
        %v3216 = vadd.f32 %v3215, %v2892
        %v3217 = vadd.f32 %v3216, %v2894
        %v3218 = vadd.f32 %v3217, %v2896
        %v3219 = vadd.f32 %v3218, %v2898
        %3220 = vadd.xlane.f32.xlu0 %v3219
        %v3221 = vpop.xlane.xlu0 %3220
        %v3222 = vadd.f32 %v2900, %v2902
        %v3223 = vadd.f32 %v3222, %v2904
        %v3224 = vadd.f32 %v3223, %v2906
        %v3225 = vadd.f32 %v3224, %v2908
        %v3226 = vadd.f32 %v3225, %v2910
        %v3227 = vadd.f32 %v3226, %v2912
        %v3228 = vadd.f32 %v3227, %v2914
        %3229 = vadd.xlane.f32.xlu0 %v3228
        %v3230 = vpop.xlane.xlu0 %3229
        %v3231 = vadd.f32 %v2916, %v2918
        %v3232 = vadd.f32 %v3231, %v2920
        %v3233 = vadd.f32 %v3232, %v2922
        %v3234 = vadd.f32 %v3233, %v2924
        %v3235 = vadd.f32 %v3234, %v2926
        %v3236 = vadd.f32 %v3235, %v2928
        %v3237 = vadd.f32 %v3236, %v2930
        %3238 = vadd.xlane.f32.xlu0 %v3237
        %v3239 = vpop.xlane.xlu0 %3238
        %v3240 = vadd.f32 %v2932, %v2934
        %v3241 = vadd.f32 %v3240, %v2936
        %v3242 = vadd.f32 %v3241, %v2938
        %v3243 = vadd.f32 %v3242, %v2940
        %v3244 = vadd.f32 %v3243, %v2942
        %v3245 = vadd.f32 %v3244, %v2944
        %v3246 = vadd.f32 %v3245, %v2946
        %3247 = vadd.xlane.f32.xlu0 %v3246
        %v3248 = vpop.xlane.xlu0 %3247
        %v3249 = vadd.f32 %v2948, %v2950
        %v3250 = vadd.f32 %v3249, %v2952
        %v3251 = vadd.f32 %v3250, %v2954
        %v3252 = vadd.f32 %v3251, %v2956
        %v3253 = vadd.f32 %v3252, %v2958
        %v3254 = vadd.f32 %v3253, %v2960
        %v3255 = vadd.f32 %v3254, %v2962
        %3256 = vadd.xlane.f32.xlu0 %v3255
        %v3257 = vpop.xlane.xlu0 %3256
        %v3258 = vadd.f32 %v2964, %v2966
        %v3259 = vadd.f32 %v3258, %v2968
        %v3260 = vadd.f32 %v3259, %v2970
        %v3261 = vadd.f32 %v3260, %v2972
        %v3262 = vadd.f32 %v3261, %v2974
        %v3263 = vadd.f32 %v3262, %v2976
        %v3264 = vadd.f32 %v3263, %v2978
        %3265 = vadd.xlane.f32.xlu0 %v3264
        %v3266 = vpop.xlane.xlu0 %3265
        %v3267 = vrcp.pop %v2987
        %v3268 = vrcp.pop %v2996
        %v3269 = vrcp.pop %v3005
        %v3270 = vrcp.pop %v3014
        %v3271 = vrcp.pop %v3023
        %v3272 = vrcp.pop %v3032
        %v3273 = vrcp.pop %v3041
        %v3274 = vrcp.pop %v3050
        %v3275 = vrcp.pop %v3059
        %v3276 = vrcp.pop %v3068
        %v3277 = vrcp.pop %v3077
        %v3278 = vrcp.pop %v3086
        %v3279 = vrcp.pop %v3095
        %v3280 = vrcp.pop %v3104
        %v3281 = vrcp.pop %v3113
        %v3282 = vrcp.pop %v3122
        %v3283 = vrcp.pop %v3131
        %v3284 = vrcp.pop %v3140
        %v3285 = vrcp.pop %v3149
        %v3286 = vrcp.pop %v3158
        %v3287 = vrcp.pop %v3167
        %v3288 = vrcp.pop %v3176
        %v3289 = vrcp.pop %v3185
        %v3290 = vrcp.pop %v3194
        %v3291 = vrcp.pop %v3203
        %v3292 = vrcp.pop %v3212
        %v3293 = vrcp.pop %v3221
        %v3294 = vrcp.pop %v3230
        %v3295 = vrcp.pop %v3239
        %v3296 = vrcp.pop %v3248
        %v3297 = vrcp.pop %v3257
        %v3298 = vrcp.pop %v3266
        %v3299 = vmul.f32 %v2468, %v3267
        %v3300 = vmul.f32 %v2470, %v3267
        %v3301 = vmul.f32 %v2472, %v3267
        %v3302 = vmul.f32 %v2474, %v3267
        %v3303 = vmul.f32 %v2476, %v3267
        %v3304 = vmul.f32 %v2478, %v3267
        %v3305 = vmul.f32 %v2480, %v3267
        %v3306 = vmul.f32 %v2482, %v3267
        %v3307 = vmul.f32 %v2484, %v3268
        %v3308 = vmul.f32 %v2486, %v3268
        %v3309 = vmul.f32 %v2488, %v3268
        %v3310 = vmul.f32 %v2490, %v3268
        %v3311 = vmul.f32 %v2492, %v3268
        %v3312 = vmul.f32 %v2494, %v3268
        %v3313 = vmul.f32 %v2496, %v3268
        %v3314 = vmul.f32 %v2498, %v3268
        %v3315 = vmul.f32 %v2500, %v3269
        %v3316 = vmul.f32 %v2502, %v3269
        %v3317 = vmul.f32 %v2504, %v3269
        %v3318 = vmul.f32 %v2506, %v3269
        %v3319 = vmul.f32 %v2508, %v3269
        %v3320 = vmul.f32 %v2510, %v3269
        %v3321 = vmul.f32 %v2512, %v3269
        %v3322 = vmul.f32 %v2514, %v3269
        %v3323 = vmul.f32 %v2516, %v3270
        %v3324 = vmul.f32 %v2518, %v3270
        %v3325 = vmul.f32 %v2520, %v3270
        %v3326 = vmul.f32 %v2522, %v3270
        %v3327 = vmul.f32 %v2524, %v3270
        %v3328 = vmul.f32 %v2526, %v3270
        %v3329 = vmul.f32 %v2528, %v3270
        %v3330 = vmul.f32 %v2530, %v3270
        %v3331 = vmul.f32 %v2532, %v3271
        %v3332 = vmul.f32 %v2534, %v3271
        %v3333 = vmul.f32 %v2536, %v3271
        %v3334 = vmul.f32 %v2538, %v3271
        %v3335 = vmul.f32 %v2540, %v3271
        %v3336 = vmul.f32 %v2542, %v3271
        %v3337 = vmul.f32 %v2544, %v3271
        %v3338 = vmul.f32 %v2546, %v3271
        %v3339 = vmul.f32 %v2548, %v3272
        %v3340 = vmul.f32 %v2550, %v3272
        %v3341 = vmul.f32 %v2552, %v3272
        %v3342 = vmul.f32 %v2554, %v3272
        %v3343 = vmul.f32 %v2556, %v3272
        %v3344 = vmul.f32 %v2558, %v3272
        %v3345 = vmul.f32 %v2560, %v3272
        %v3346 = vmul.f32 %v2562, %v3272
        %v3347 = vmul.f32 %v2564, %v3273
        %v3348 = vmul.f32 %v2566, %v3273
        %v3349 = vmul.f32 %v2568, %v3273
        %v3350 = vmul.f32 %v2570, %v3273
        %v3351 = vmul.f32 %v2572, %v3273
        %v3352 = vmul.f32 %v2574, %v3273
        %v3353 = vmul.f32 %v2576, %v3273
        %v3354 = vmul.f32 %v2578, %v3273
        %v3355 = vmul.f32 %v2580, %v3274
        %v3356 = vmul.f32 %v2582, %v3274
        %v3357 = vmul.f32 %v2584, %v3274
        %v3358 = vmul.f32 %v2586, %v3274
        %v3359 = vmul.f32 %v2588, %v3274
        %v3360 = vmul.f32 %v2590, %v3274
        %v3361 = vmul.f32 %v2592, %v3274
        %v3362 = vmul.f32 %v2594, %v3274
        %v3363 = vmul.f32 %v2596, %v3275
        %v3364 = vmul.f32 %v2598, %v3275
        %v3365 = vmul.f32 %v2600, %v3275
        %v3366 = vmul.f32 %v2602, %v3275
        %v3367 = vmul.f32 %v2604, %v3275
        %v3368 = vmul.f32 %v2606, %v3275
        %v3369 = vmul.f32 %v2608, %v3275
        %v3370 = vmul.f32 %v2610, %v3275
        %v3371 = vmul.f32 %v2612, %v3276
        %v3372 = vmul.f32 %v2614, %v3276
        %v3373 = vmul.f32 %v2616, %v3276
        %v3374 = vmul.f32 %v2618, %v3276
        %v3375 = vmul.f32 %v2620, %v3276
        %v3376 = vmul.f32 %v2622, %v3276
        %v3377 = vmul.f32 %v2624, %v3276
        %v3378 = vmul.f32 %v2626, %v3276
        %v3379 = vmul.f32 %v2628, %v3277
        %v3380 = vmul.f32 %v2630, %v3277
        %v3381 = vmul.f32 %v2632, %v3277
        %v3382 = vmul.f32 %v2634, %v3277
        %v3383 = vmul.f32 %v2636, %v3277
        %v3384 = vmul.f32 %v2638, %v3277
        %v3385 = vmul.f32 %v2640, %v3277
        %v3386 = vmul.f32 %v2642, %v3277
        %v3387 = vmul.f32 %v2644, %v3278
        %v3388 = vmul.f32 %v2646, %v3278
        %v3389 = vmul.f32 %v2648, %v3278
        %v3390 = vmul.f32 %v2650, %v3278
        %v3391 = vmul.f32 %v2652, %v3278
        %v3392 = vmul.f32 %v2654, %v3278
        %v3393 = vmul.f32 %v2656, %v3278
        %v3394 = vmul.f32 %v2658, %v3278
        %v3395 = vmul.f32 %v2660, %v3279
        %v3396 = vmul.f32 %v2662, %v3279
        %v3397 = vmul.f32 %v2664, %v3279
        %v3398 = vmul.f32 %v2666, %v3279
        %v3399 = vmul.f32 %v2668, %v3279
        %v3400 = vmul.f32 %v2670, %v3279
        %v3401 = vmul.f32 %v2672, %v3279
        %v3402 = vmul.f32 %v2674, %v3279
        %v3403 = vmul.f32 %v2676, %v3280
        %v3404 = vmul.f32 %v2678, %v3280
        %v3405 = vmul.f32 %v2680, %v3280
        %v3406 = vmul.f32 %v2682, %v3280
        %v3407 = vmul.f32 %v2684, %v3280
        %v3408 = vmul.f32 %v2686, %v3280
        %v3409 = vmul.f32 %v2688, %v3280
        %v3410 = vmul.f32 %v2690, %v3280
        %v3411 = vmul.f32 %v2692, %v3281
        %v3412 = vmul.f32 %v2694, %v3281
        %v3413 = vmul.f32 %v2696, %v3281
        %v3414 = vmul.f32 %v2698, %v3281
        %v3415 = vmul.f32 %v2700, %v3281
        %v3416 = vmul.f32 %v2702, %v3281
        %v3417 = vmul.f32 %v2704, %v3281
        %v3418 = vmul.f32 %v2706, %v3281
        %v3419 = vmul.f32 %v2708, %v3282
        %v3420 = vmul.f32 %v2710, %v3282
        %v3421 = vmul.f32 %v2712, %v3282
        %v3422 = vmul.f32 %v2714, %v3282
        %v3423 = vmul.f32 %v2716, %v3282
        %v3424 = vmul.f32 %v2718, %v3282
        %v3425 = vmul.f32 %v2720, %v3282
        %v3426 = vmul.f32 %v2722, %v3282
        %v3427 = vmul.f32 %v2724, %v3283
        %v3428 = vmul.f32 %v2726, %v3283
        %v3429 = vmul.f32 %v2728, %v3283
        %v3430 = vmul.f32 %v2730, %v3283
        %v3431 = vmul.f32 %v2732, %v3283
        %v3432 = vmul.f32 %v2734, %v3283
        %v3433 = vmul.f32 %v2736, %v3283
        %v3434 = vmul.f32 %v2738, %v3283
        %v3435 = vmul.f32 %v2740, %v3284
        %v3436 = vmul.f32 %v2742, %v3284
        %v3437 = vmul.f32 %v2744, %v3284
        %v3438 = vmul.f32 %v2746, %v3284
        %v3439 = vmul.f32 %v2748, %v3284
        %v3440 = vmul.f32 %v2750, %v3284
        %v3441 = vmul.f32 %v2752, %v3284
        %v3442 = vmul.f32 %v2754, %v3284
        %v3443 = vmul.f32 %v2756, %v3285
        %v3444 = vmul.f32 %v2758, %v3285
        %v3445 = vmul.f32 %v2760, %v3285
        %v3446 = vmul.f32 %v2762, %v3285
        %v3447 = vmul.f32 %v2764, %v3285
        %v3448 = vmul.f32 %v2766, %v3285
        %v3449 = vmul.f32 %v2768, %v3285
        %v3450 = vmul.f32 %v2770, %v3285
        %v3451 = vmul.f32 %v2772, %v3286
        %v3452 = vmul.f32 %v2774, %v3286
        %v3453 = vmul.f32 %v2776, %v3286
        %v3454 = vmul.f32 %v2778, %v3286
        %v3455 = vmul.f32 %v2780, %v3286
        %v3456 = vmul.f32 %v2782, %v3286
        %v3457 = vmul.f32 %v2784, %v3286
        %v3458 = vmul.f32 %v2786, %v3286
        %v3459 = vmul.f32 %v2788, %v3287
        %v3460 = vmul.f32 %v2790, %v3287
        %v3461 = vmul.f32 %v2792, %v3287
        %v3462 = vmul.f32 %v2794, %v3287
        %v3463 = vmul.f32 %v2796, %v3287
        %v3464 = vmul.f32 %v2798, %v3287
        %v3465 = vmul.f32 %v2800, %v3287
        %v3466 = vmul.f32 %v2802, %v3287
        %v3467 = vmul.f32 %v2804, %v3288
        %v3468 = vmul.f32 %v2806, %v3288
        %v3469 = vmul.f32 %v2808, %v3288
        %v3470 = vmul.f32 %v2810, %v3288
        %v3471 = vmul.f32 %v2812, %v3288
        %v3472 = vmul.f32 %v2814, %v3288
        %v3473 = vmul.f32 %v2816, %v3288
        %v3474 = vmul.f32 %v2818, %v3288
        %v3475 = vmul.f32 %v2820, %v3289
        %v3476 = vmul.f32 %v2822, %v3289
        %v3477 = vmul.f32 %v2824, %v3289
        %v3478 = vmul.f32 %v2826, %v3289
        %v3479 = vmul.f32 %v2828, %v3289
        %v3480 = vmul.f32 %v2830, %v3289
        %v3481 = vmul.f32 %v2832, %v3289
        %v3482 = vmul.f32 %v2834, %v3289
        %v3483 = vmul.f32 %v2836, %v3290
        %v3484 = vmul.f32 %v2838, %v3290
        %v3485 = vmul.f32 %v2840, %v3290
        %v3486 = vmul.f32 %v2842, %v3290
        %v3487 = vmul.f32 %v2844, %v3290
        %v3488 = vmul.f32 %v2846, %v3290
        %v3489 = vmul.f32 %v2848, %v3290
        %v3490 = vmul.f32 %v2850, %v3290
        %v3491 = vmul.f32 %v2852, %v3291
        %v3492 = vmul.f32 %v2854, %v3291
        %v3493 = vmul.f32 %v2856, %v3291
        %v3494 = vmul.f32 %v2858, %v3291
        %v3495 = vmul.f32 %v2860, %v3291
        %v3496 = vmul.f32 %v2862, %v3291
        %v3497 = vmul.f32 %v2864, %v3291
        %v3498 = vmul.f32 %v2866, %v3291
        %v3499 = vmul.f32 %v2868, %v3292
        %v3500 = vmul.f32 %v2870, %v3292
        %v3501 = vmul.f32 %v2872, %v3292
        %v3502 = vmul.f32 %v2874, %v3292
        %v3503 = vmul.f32 %v2876, %v3292
        %v3504 = vmul.f32 %v2878, %v3292
        %v3505 = vmul.f32 %v2880, %v3292
        %v3506 = vmul.f32 %v2882, %v3292
        %v3507 = vmul.f32 %v2884, %v3293
        %v3508 = vmul.f32 %v2886, %v3293
        %v3509 = vmul.f32 %v2888, %v3293
        %v3510 = vmul.f32 %v2890, %v3293
        %v3511 = vmul.f32 %v2892, %v3293
        %v3512 = vmul.f32 %v2894, %v3293
        %v3513 = vmul.f32 %v2896, %v3293
        %v3514 = vmul.f32 %v2898, %v3293
        %v3515 = vmul.f32 %v2900, %v3294
        %v3516 = vmul.f32 %v2902, %v3294
        %v3517 = vmul.f32 %v2904, %v3294
        %v3518 = vmul.f32 %v2906, %v3294
        %v3519 = vmul.f32 %v2908, %v3294
        %v3520 = vmul.f32 %v2910, %v3294
        %v3521 = vmul.f32 %v2912, %v3294
        %v3522 = vmul.f32 %v2914, %v3294
        %v3523 = vmul.f32 %v2916, %v3295
        %v3524 = vmul.f32 %v2918, %v3295
        %v3525 = vmul.f32 %v2920, %v3295
        %v3526 = vmul.f32 %v2922, %v3295
        %v3527 = vmul.f32 %v2924, %v3295
        %v3528 = vmul.f32 %v2926, %v3295
        %v3529 = vmul.f32 %v2928, %v3295
        %v3530 = vmul.f32 %v2930, %v3295
        %v3531 = vmul.f32 %v2932, %v3296
        %v3532 = vmul.f32 %v2934, %v3296
        %v3533 = vmul.f32 %v2936, %v3296
        %v3534 = vmul.f32 %v2938, %v3296
        %v3535 = vmul.f32 %v2940, %v3296
        %v3536 = vmul.f32 %v2942, %v3296
        %v3537 = vmul.f32 %v2944, %v3296
        %v3538 = vmul.f32 %v2946, %v3296
        %v3539 = vmul.f32 %v2948, %v3297
        %v3540 = vmul.f32 %v2950, %v3297
        %v3541 = vmul.f32 %v2952, %v3297
        %v3542 = vmul.f32 %v2954, %v3297
        %v3543 = vmul.f32 %v2956, %v3297
        %v3544 = vmul.f32 %v2958, %v3297
        %v3545 = vmul.f32 %v2960, %v3297
        %v3546 = vmul.f32 %v2962, %v3297
        %v3547 = vmul.f32 %v2964, %v3298
        %v3548 = vmul.f32 %v2966, %v3298
        %v3549 = vmul.f32 %v2968, %v3298
        %v3550 = vmul.f32 %v2970, %v3298
        %v3551 = vmul.f32 %v2972, %v3298
        %v3552 = vmul.f32 %v2974, %v3298
        %v3553 = vmul.f32 %v2976, %v3298
        %v3554 = vmul.f32 %v2978, %v3298
        %v3555 = vpack.c.bf16 %v862, %v858
        %v3556 = vpack.c.bf16 %v864, %v860
        %v3557 = vpack.c.bf16 %v915, %v911
        %v3558 = vpack.c.bf16 %v917, %v913
        %v3559 = vpack.c.bf16 %v968, %v964
        %v3560 = vpack.c.bf16 %v970, %v966
        %v3561 = vpack.c.bf16 %v1021, %v1017
        %v3562 = vpack.c.bf16 %v1023, %v1019
        %v3563 = vpack.c.bf16 %v872, %v868
        %v3564 = vpack.c.bf16 %v874, %v870
        %v3565 = vpack.c.bf16 %v925, %v921
        %v3566 = vpack.c.bf16 %v927, %v923
        %v3567 = vpack.c.bf16 %v978, %v974
        %v3568 = vpack.c.bf16 %v980, %v976
        %v3569 = vpack.c.bf16 %v1031, %v1027
        %v3570 = vpack.c.bf16 %v1033, %v1029
        %v3571 = vpack.c.bf16 %v3307, %v3299
        %v3572 = vpack.c.bf16 %v3308, %v3300
        %v3573 = vpack.c.bf16 %v3309, %v3301
        %v3574 = vpack.c.bf16 %v3310, %v3302
        %v3575 = vpack.c.bf16 %v3311, %v3303
        %v3576 = vpack.c.bf16 %v3312, %v3304
        %v3577 = vpack.c.bf16 %v3313, %v3305
        %v3578 = vpack.c.bf16 %v3314, %v3306
        %v3579 = vpack.c.bf16 %v3323, %v3315
        %v3580 = vpack.c.bf16 %v3324, %v3316
        %v3581 = vpack.c.bf16 %v3325, %v3317
        %v3582 = vpack.c.bf16 %v3326, %v3318
        %v3583 = vpack.c.bf16 %v3327, %v3319
        %v3584 = vpack.c.bf16 %v3328, %v3320
        %v3585 = vpack.c.bf16 %v3329, %v3321
        %v3586 = vpack.c.bf16 %v3330, %v3322
        %v3587 = vpack.c.bf16 %v3339, %v3331
        %v3588 = vpack.c.bf16 %v3340, %v3332
        %v3589 = vpack.c.bf16 %v3341, %v3333
        %v3590 = vpack.c.bf16 %v3342, %v3334
        %v3591 = vpack.c.bf16 %v3343, %v3335
        %v3592 = vpack.c.bf16 %v3344, %v3336
        %v3593 = vpack.c.bf16 %v3345, %v3337
        %v3594 = vpack.c.bf16 %v3346, %v3338
        %v3595 = vpack.c.bf16 %v3355, %v3347
        %v3596 = vpack.c.bf16 %v3356, %v3348
        %v3597 = vpack.c.bf16 %v3357, %v3349
        %v3598 = vpack.c.bf16 %v3358, %v3350
        %v3599 = vpack.c.bf16 %v3359, %v3351
        %v3600 = vpack.c.bf16 %v3360, %v3352
        %v3601 = vpack.c.bf16 %v3361, %v3353
        %v3602 = vpack.c.bf16 %v3362, %v3354
        %v3603 = vpack.c.bf16 %v3371, %v3363
        %v3604 = vpack.c.bf16 %v3372, %v3364
        %v3605 = vpack.c.bf16 %v3373, %v3365
        %v3606 = vpack.c.bf16 %v3374, %v3366
        %v3607 = vpack.c.bf16 %v3375, %v3367
        %v3608 = vpack.c.bf16 %v3376, %v3368
        %v3609 = vpack.c.bf16 %v3377, %v3369
        %v3610 = vpack.c.bf16 %v3378, %v3370
        %v3611 = vpack.c.bf16 %v3387, %v3379
        %v3612 = vpack.c.bf16 %v3388, %v3380
        %v3613 = vpack.c.bf16 %v3389, %v3381
        %v3614 = vpack.c.bf16 %v3390, %v3382
        %v3615 = vpack.c.bf16 %v3391, %v3383
        %v3616 = vpack.c.bf16 %v3392, %v3384
        %v3617 = vpack.c.bf16 %v3393, %v3385
        %v3618 = vpack.c.bf16 %v3394, %v3386
        %v3619 = vpack.c.bf16 %v3403, %v3395
        %v3620 = vpack.c.bf16 %v3404, %v3396
        %v3621 = vpack.c.bf16 %v3405, %v3397
        %v3622 = vpack.c.bf16 %v3406, %v3398
        %v3623 = vpack.c.bf16 %v3407, %v3399
        %v3624 = vpack.c.bf16 %v3408, %v3400
        %v3625 = vpack.c.bf16 %v3409, %v3401
        %v3626 = vpack.c.bf16 %v3410, %v3402
        %v3627 = vpack.c.bf16 %v3419, %v3411
        %v3628 = vpack.c.bf16 %v3420, %v3412
        %v3629 = vpack.c.bf16 %v3421, %v3413
        %v3630 = vpack.c.bf16 %v3422, %v3414
        %v3631 = vpack.c.bf16 %v3423, %v3415
        %v3632 = vpack.c.bf16 %v3424, %v3416
        %v3633 = vpack.c.bf16 %v3425, %v3417
        %v3634 = vpack.c.bf16 %v3426, %v3418
        %v3635 = vpack.c.bf16 %v3435, %v3427
        %v3636 = vpack.c.bf16 %v3436, %v3428
        %v3637 = vpack.c.bf16 %v3437, %v3429
        %v3638 = vpack.c.bf16 %v3438, %v3430
        %v3639 = vpack.c.bf16 %v3439, %v3431
        %v3640 = vpack.c.bf16 %v3440, %v3432
        %v3641 = vpack.c.bf16 %v3441, %v3433
        %v3642 = vpack.c.bf16 %v3442, %v3434
        %v3643 = vpack.c.bf16 %v3451, %v3443
        %v3644 = vpack.c.bf16 %v3452, %v3444
        %v3645 = vpack.c.bf16 %v3453, %v3445
        %v3646 = vpack.c.bf16 %v3454, %v3446
        %v3647 = vpack.c.bf16 %v3455, %v3447
        %v3648 = vpack.c.bf16 %v3456, %v3448
        %v3649 = vpack.c.bf16 %v3457, %v3449
        %v3650 = vpack.c.bf16 %v3458, %v3450
        %v3651 = vpack.c.bf16 %v3467, %v3459
        %v3652 = vpack.c.bf16 %v3468, %v3460
        %v3653 = vpack.c.bf16 %v3469, %v3461
        %v3654 = vpack.c.bf16 %v3470, %v3462
        %v3655 = vpack.c.bf16 %v3471, %v3463
        %v3656 = vpack.c.bf16 %v3472, %v3464
        %v3657 = vpack.c.bf16 %v3473, %v3465
        %v3658 = vpack.c.bf16 %v3474, %v3466
        %v3659 = vpack.c.bf16 %v3483, %v3475
        %v3660 = vpack.c.bf16 %v3484, %v3476
        %v3661 = vpack.c.bf16 %v3485, %v3477
        %v3662 = vpack.c.bf16 %v3486, %v3478
        %v3663 = vpack.c.bf16 %v3487, %v3479
        %v3664 = vpack.c.bf16 %v3488, %v3480
        %v3665 = vpack.c.bf16 %v3489, %v3481
        %v3666 = vpack.c.bf16 %v3490, %v3482
        %v3667 = vpack.c.bf16 %v3499, %v3491
        %v3668 = vpack.c.bf16 %v3500, %v3492
        %v3669 = vpack.c.bf16 %v3501, %v3493
        %v3670 = vpack.c.bf16 %v3502, %v3494
        %v3671 = vpack.c.bf16 %v3503, %v3495
        %v3672 = vpack.c.bf16 %v3504, %v3496
        %v3673 = vpack.c.bf16 %v3505, %v3497
        %v3674 = vpack.c.bf16 %v3506, %v3498
        %v3675 = vpack.c.bf16 %v3515, %v3507
        %v3676 = vpack.c.bf16 %v3516, %v3508
        %v3677 = vpack.c.bf16 %v3517, %v3509
        %v3678 = vpack.c.bf16 %v3518, %v3510
        %v3679 = vpack.c.bf16 %v3519, %v3511
        %v3680 = vpack.c.bf16 %v3520, %v3512
        %v3681 = vpack.c.bf16 %v3521, %v3513
        %v3682 = vpack.c.bf16 %v3522, %v3514
        %v3683 = vpack.c.bf16 %v3531, %v3523
        %v3684 = vpack.c.bf16 %v3532, %v3524
        %v3685 = vpack.c.bf16 %v3533, %v3525
        %v3686 = vpack.c.bf16 %v3534, %v3526
        %v3687 = vpack.c.bf16 %v3535, %v3527
        %v3688 = vpack.c.bf16 %v3536, %v3528
        %v3689 = vpack.c.bf16 %v3537, %v3529
        %v3690 = vpack.c.bf16 %v3538, %v3530
        %v3691 = vpack.c.bf16 %v3547, %v3539
        %v3692 = vpack.c.bf16 %v3548, %v3540
        %v3693 = vpack.c.bf16 %v3549, %v3541
        %v3694 = vpack.c.bf16 %v3550, %v3542
        %v3695 = vpack.c.bf16 %v3551, %v3543
        %v3696 = vpack.c.bf16 %v3552, %v3544
        %v3697 = vpack.c.bf16 %v3553, %v3545
        %v3698 = vpack.c.bf16 %v3554, %v3546
        %3699 = vmatprep.subr.bf16.mxu0 %v3572
        %3700 = vmatpush1.bf16.xpose.msra.mxu0 %v3571
        %3701 = vmatprep.subr.bf16.mxu0 %v3580
        %3702 = vmatpush1.bf16.xpose.msra.mxu0 %v3579
        %3703 = vmatprep.subr.bf16.mxu0 %v3588
        %3704 = vmatpush1.bf16.xpose.msra.mxu0 %v3587
        %3705 = vmatprep.subr.bf16.mxu0 %v3596
        %3706 = vmatpush1.bf16.xpose.msra.mxu0 %v3595
        %3707 = vmatprep.subr.bf16.mxu0 %v3604
        %3708 = vmatpush1.bf16.xpose.msra.mxu0 %v3603
        %3709 = vmatprep.subr.bf16.mxu0 %v3612
        %3710 = vmatpush1.bf16.xpose.msra.mxu0 %v3611
        %3711 = vmatprep.subr.bf16.mxu0 %v3620
        %3712 = vmatpush1.bf16.xpose.msra.mxu0 %v3619
        %3713 = vmatprep.subr.bf16.mxu0 %v3628
        %3714 = vmatpush1.bf16.xpose.msra.mxu0 %v3627
        %3715 = vmatprep.subr.bf16.mxu0 %v3636
        %3716 = vmatpush1.bf16.xpose.msra.mxu0 %v3635
        %3717 = vmatprep.subr.bf16.mxu0 %v3644
        %3718 = vmatpush1.bf16.xpose.msra.mxu0 %v3643
        %3719 = vmatprep.subr.bf16.mxu0 %v3652
        %3720 = vmatpush1.bf16.xpose.msra.mxu0 %v3651
        %3721 = vmatprep.subr.bf16.mxu0 %v3660
        %3722 = vmatpush1.bf16.xpose.msra.mxu0 %v3659
        %3723 = vmatprep.subr.bf16.mxu0 %v3668
        %3724 = vmatpush1.bf16.xpose.msra.mxu0 %v3667
        %3725 = vmatprep.subr.bf16.mxu0 %v3676
        %3726 = vmatpush1.bf16.xpose.msra.mxu0 %v3675
        %3727 = vmatprep.subr.bf16.mxu0 %v3684
        %3728 = vmatpush1.bf16.xpose.msra.mxu0 %v3683
        %3729 = vmatprep.subr.bf16.mxu0 %v3692
        %3730 = vmatpush1.bf16.xpose.msra.mxu0 %v3691
        %3731 = vmatprep.mubr.bf16.mxu0 %v3556
        %3732 = vmatmul.mubr.bf16.gmra.mrb[0].mxu0 %v3555
        %v3733 = vpop.f32.mrb[0].mxu0
        %v3734 = vadd.f32 0.0, %v3733
        %v3735 = vpop.f32.mrb[0].mxu0
        %v3736 = vadd.f32 0.0, %v3735
        %v3737 = vpop.f32.mrb[0].mxu0
        %v3738 = vadd.f32 0.0, %v3737
        %v3739 = vpop.f32.mrb[0].mxu0
        %v3740 = vadd.f32 0.0, %v3739
        %3741 = vmatprep.mubr.bf16.mxu0 %v3564
        %3742 = vmatmul.mubr.bf16.gmra.mrb[0].mxu0 %v3563
        %v3743 = vpop.f32.mrb[0].mxu0
        %v3744 = vadd.f32 0.0, %v3743
        %v3745 = vpop.f32.mrb[0].mxu0
        %v3746 = vadd.f32 0.0, %v3745
        %v3747 = vpop.f32.mrb[0].mxu0
        %v3748 = vadd.f32 0.0, %v3747
        %v3749 = vpop.f32.mrb[0].mxu0
        %v3750 = vadd.f32 0.0, %v3749
        %3751 = vdwg.mxu0
        %3752 = vmatprep.subr.bf16.mxu0 %v3574
        %3753 = vmatpush1.bf16.xpose.msra.mxu0 %v3573
        %3754 = vmatprep.subr.bf16.mxu0 %v3582
        %3755 = vmatpush1.bf16.xpose.msra.mxu0 %v3581
        %3756 = vmatprep.subr.bf16.mxu0 %v3590
        %3757 = vmatpush1.bf16.xpose.msra.mxu0 %v3589
        %3758 = vmatprep.subr.bf16.mxu0 %v3598
        %3759 = vmatpush1.bf16.xpose.msra.mxu0 %v3597
        %3760 = vmatprep.subr.bf16.mxu0 %v3606
        %3761 = vmatpush1.bf16.xpose.msra.mxu0 %v3605
        %3762 = vmatprep.subr.bf16.mxu0 %v3614
        %3763 = vmatpush1.bf16.xpose.msra.mxu0 %v3613
        %3764 = vmatprep.subr.bf16.mxu0 %v3622
        %3765 = vmatpush1.bf16.xpose.msra.mxu0 %v3621
        %3766 = vmatprep.subr.bf16.mxu0 %v3630
        %3767 = vmatpush1.bf16.xpose.msra.mxu0 %v3629
        %3768 = vmatprep.subr.bf16.mxu0 %v3638
        %3769 = vmatpush1.bf16.xpose.msra.mxu0 %v3637
        %3770 = vmatprep.subr.bf16.mxu0 %v3646
        %3771 = vmatpush1.bf16.xpose.msra.mxu0 %v3645
        %3772 = vmatprep.subr.bf16.mxu0 %v3654
        %3773 = vmatpush1.bf16.xpose.msra.mxu0 %v3653
        %3774 = vmatprep.subr.bf16.mxu0 %v3662
        %3775 = vmatpush1.bf16.xpose.msra.mxu0 %v3661
        %3776 = vmatprep.subr.bf16.mxu0 %v3670
        %3777 = vmatpush1.bf16.xpose.msra.mxu0 %v3669
        %3778 = vmatprep.subr.bf16.mxu0 %v3678
        %3779 = vmatpush1.bf16.xpose.msra.mxu0 %v3677
        %3780 = vmatprep.subr.bf16.mxu0 %v3686
        %3781 = vmatpush1.bf16.xpose.msra.mxu0 %v3685
        %3782 = vmatprep.subr.bf16.mxu0 %v3694
        %3783 = vmatpush1.bf16.xpose.msra.mxu0 %v3693
        %3784 = vmatprep.mubr.bf16.mxu0 %v3558
        %3785 = vmatmul.mubr.bf16.gmra.mrb[0].mxu0 %v3557
        %v3786 = vpop.f32.mrb[0].mxu0
        %v3787 = vadd.f32 %v3734, %v3786
        %v3788 = vpop.f32.mrb[0].mxu0
        %v3789 = vadd.f32 %v3736, %v3788
        %v3790 = vpop.f32.mrb[0].mxu0
        %v3791 = vadd.f32 %v3738, %v3790
        %v3792 = vpop.f32.mrb[0].mxu0
        %v3793 = vadd.f32 %v3740, %v3792
        %3794 = vmatprep.mubr.bf16.mxu0 %v3566
        %3795 = vmatmul.mubr.bf16.gmra.mrb[0].mxu0 %v3565
        %v3796 = vpop.f32.mrb[0].mxu0
        %v3797 = vadd.f32 %v3744, %v3796
        %v3798 = vpop.f32.mrb[0].mxu0
        %v3799 = vadd.f32 %v3746, %v3798
        %v3800 = vpop.f32.mrb[0].mxu0
        %v3801 = vadd.f32 %v3748, %v3800
        %v3802 = vpop.f32.mrb[0].mxu0
        %v3803 = vadd.f32 %v3750, %v3802
        %3804 = vdwg.mxu0
        %3805 = vmatprep.subr.bf16.mxu0 %v3576
        %3806 = vmatpush1.bf16.xpose.msra.mxu0 %v3575
        %3807 = vmatprep.subr.bf16.mxu0 %v3584
        %3808 = vmatpush1.bf16.xpose.msra.mxu0 %v3583
        %3809 = vmatprep.subr.bf16.mxu0 %v3592
        %3810 = vmatpush1.bf16.xpose.msra.mxu0 %v3591
        %3811 = vmatprep.subr.bf16.mxu0 %v3600
        %3812 = vmatpush1.bf16.xpose.msra.mxu0 %v3599
        %3813 = vmatprep.subr.bf16.mxu0 %v3608
        %3814 = vmatpush1.bf16.xpose.msra.mxu0 %v3607
        %3815 = vmatprep.subr.bf16.mxu0 %v3616
        %3816 = vmatpush1.bf16.xpose.msra.mxu0 %v3615
        %3817 = vmatprep.subr.bf16.mxu0 %v3624
        %3818 = vmatpush1.bf16.xpose.msra.mxu0 %v3623
        %3819 = vmatprep.subr.bf16.mxu0 %v3632
        %3820 = vmatpush1.bf16.xpose.msra.mxu0 %v3631
        %3821 = vmatprep.subr.bf16.mxu0 %v3640
        %3822 = vmatpush1.bf16.xpose.msra.mxu0 %v3639
        %3823 = vmatprep.subr.bf16.mxu0 %v3648
        %3824 = vmatpush1.bf16.xpose.msra.mxu0 %v3647
        %3825 = vmatprep.subr.bf16.mxu0 %v3656
        %3826 = vmatpush1.bf16.xpose.msra.mxu0 %v3655
        %3827 = vmatprep.subr.bf16.mxu0 %v3664
        %3828 = vmatpush1.bf16.xpose.msra.mxu0 %v3663
        %3829 = vmatprep.subr.bf16.mxu0 %v3672
        %3830 = vmatpush1.bf16.xpose.msra.mxu0 %v3671
        %3831 = vmatprep.subr.bf16.mxu0 %v3680
        %3832 = vmatpush1.bf16.xpose.msra.mxu0 %v3679
        %3833 = vmatprep.subr.bf16.mxu0 %v3688
        %3834 = vmatpush1.bf16.xpose.msra.mxu0 %v3687
        %3835 = vmatprep.subr.bf16.mxu0 %v3696
        %3836 = vmatpush1.bf16.xpose.msra.mxu0 %v3695
        %3837 = vmatprep.mubr.bf16.mxu0 %v3560
        %3838 = vmatmul.mubr.bf16.gmra.mrb[0].mxu0 %v3559
        %v3839 = vpop.f32.mrb[0].mxu0
        %v3840 = vadd.f32 %v3787, %v3839
        %v3841 = vpop.f32.mrb[0].mxu0
        %v3842 = vadd.f32 %v3789, %v3841
        %v3843 = vpop.f32.mrb[0].mxu0
        %v3844 = vadd.f32 %v3791, %v3843
        %v3845 = vpop.f32.mrb[0].mxu0
        %v3846 = vadd.f32 %v3793, %v3845
        %3847 = vmatprep.mubr.bf16.mxu0 %v3568
        %3848 = vmatmul.mubr.bf16.gmra.mrb[0].mxu0 %v3567
        %v3849 = vpop.f32.mrb[0].mxu0
        %v3850 = vadd.f32 %v3797, %v3849
        %v3851 = vpop.f32.mrb[0].mxu0
        %v3852 = vadd.f32 %v3799, %v3851
        %v3853 = vpop.f32.mrb[0].mxu0
        %v3854 = vadd.f32 %v3801, %v3853
        %v3855 = vpop.f32.mrb[0].mxu0
        %v3856 = vadd.f32 %v3803, %v3855
        %3857 = vdwg.mxu0
        %3858 = vmatprep.subr.bf16.mxu0 %v3578
        %3859 = vmatpush1.bf16.xpose.msra.mxu0 %v3577
        %3860 = vmatprep.subr.bf16.mxu0 %v3586
        %3861 = vmatpush1.bf16.xpose.msra.mxu0 %v3585
        %3862 = vmatprep.subr.bf16.mxu0 %v3594
        %3863 = vmatpush1.bf16.xpose.msra.mxu0 %v3593
        %3864 = vmatprep.subr.bf16.mxu0 %v3602
        %3865 = vmatpush1.bf16.xpose.msra.mxu0 %v3601
        %3866 = vmatprep.subr.bf16.mxu0 %v3610
        %3867 = vmatpush1.bf16.xpose.msra.mxu0 %v3609
        %3868 = vmatprep.subr.bf16.mxu0 %v3618
        %3869 = vmatpush1.bf16.xpose.msra.mxu0 %v3617
        %3870 = vmatprep.subr.bf16.mxu0 %v3626
        %3871 = vmatpush1.bf16.xpose.msra.mxu0 %v3625
        %3872 = vmatprep.subr.bf16.mxu0 %v3634
        %3873 = vmatpush1.bf16.xpose.msra.mxu0 %v3633
        %3874 = vmatprep.subr.bf16.mxu0 %v3642
        %3875 = vmatpush1.bf16.xpose.msra.mxu0 %v3641
        %3876 = vmatprep.subr.bf16.mxu0 %v3650
        %3877 = vmatpush1.bf16.xpose.msra.mxu0 %v3649
        %3878 = vmatprep.subr.bf16.mxu0 %v3658
        %3879 = vmatpush1.bf16.xpose.msra.mxu0 %v3657
        %3880 = vmatprep.subr.bf16.mxu0 %v3666
        %3881 = vmatpush1.bf16.xpose.msra.mxu0 %v3665
        %3882 = vmatprep.subr.bf16.mxu0 %v3674
        %3883 = vmatpush1.bf16.xpose.msra.mxu0 %v3673
        %3884 = vmatprep.subr.bf16.mxu0 %v3682
        %3885 = vmatpush1.bf16.xpose.msra.mxu0 %v3681
        %3886 = vmatprep.subr.bf16.mxu0 %v3690
        %3887 = vmatpush1.bf16.xpose.msra.mxu0 %v3689
        %3888 = vmatprep.subr.bf16.mxu0 %v3698
        %3889 = vmatpush1.bf16.xpose.msra.mxu0 %v3697
        %3890 = vmatprep.mubr.bf16.mxu0 %v3562
        %3891 = vmatmul.mubr.bf16.gmra.mrb[0].mxu0 %v3561
        %v3892 = vpop.f32.mrb[0].mxu0
        %v3893 = vadd.f32 %v3840, %v3892
        %v3894 = vpop.f32.mrb[0].mxu0
        %v3895 = vadd.f32 %v3842, %v3894
        %v3896 = vpop.f32.mrb[0].mxu0
        %v3897 = vadd.f32 %v3844, %v3896
        %v3898 = vpop.f32.mrb[0].mxu0
        %v3899 = vadd.f32 %v3846, %v3898
        %3900 = vmatprep.mubr.bf16.mxu0 %v3570
        %3901 = vmatmul.mubr.bf16.gmra.mrb[0].mxu0 %v3569
        %v3902 = vpop.f32.mrb[0].mxu0
        %v3903 = vadd.f32 %v3850, %v3902
        %v3904 = vpop.f32.mrb[0].mxu0
        %v3905 = vadd.f32 %v3852, %v3904
        %v3906 = vpop.f32.mrb[0].mxu0
        %v3907 = vadd.f32 %v3854, %v3906
        %v3908 = vpop.f32.mrb[0].mxu0
        %v3909 = vadd.f32 %v3856, %v3908
        %3910 = vdwg.mxu0
        %s3911 = sld [smem:[#allocation2]]
        %v3912 = vstv %s3911
        %v3913 = vmul.f32 %v3912, %v3893
        %v3914 = vmul.f32 %v3912, %v3895
        %v3915 = vmul.f32 %v3912, %v3897
        %v3916 = vmul.f32 %v3912, %v3899
        %v3917 = vmul.f32 %v3912, %v3903
        %v3918 = vmul.f32 %v3912, %v3905
        %v3919 = vmul.f32 %v3912, %v3907
        %v3920 = vmul.f32 %v3912, %v3909
        %v3921 = vadd.f32 %v3913, %v413
        %v3922 = vadd.f32 %v3914, %v414
        %v3923 = vadd.f32 %v3915, %v415
        %v3924 = vadd.f32 %v3916, %v416
        %v3925 = vadd.f32 %v3917, %v417
        %v3926 = vadd.f32 %v3918, %v418
        %v3927 = vadd.f32 %v3919, %v419
        %v3928 = vadd.f32 %v3920, %v420
        %3929 = vst [vmem:[%s409] sm:$0xff] %v3921
        %3930 = vst [vmem:[%s409 + $0x8] sm:$0xff] %v3922
        %3931 = vst [vmem:[%s409 + $0x10] sm:$0xff] %v3923
        %3932 = vst [vmem:[%s409 + $0x18] sm:$0xff] %v3924
        %3933 = vst [vmem:[%s409 + $0x20] sm:$0xff] %v3925
        %3934 = vst [vmem:[%s409 + $0x28] sm:$0xff] %v3926
        %3935 = vst [vmem:[%s409 + $0x30] sm:$0xff] %v3927
        %3936 = vst [vmem:[%s409 + $0x38] sm:$0xff] %v3928
        %s3937 = sand.u32 %s253, 1
        %s3938 = scalar_lea.sflag [#allocation5], %s3937
        %s3939 = sand.u32 %s253, 1
        %s3940 = smul.addr %s3939, 64
        %s3941 = scalar_lea.vmem [#allocation8], %s3940
        // Predicated region
        $region65: #{tpu_custom_call.1} parent=55 // pred_check
          %p3942 = pneg %p263
        $region66: #{tpu_custom_call.1} parent=55 // pred_check_branch
          %3944 = sbr.rel (%p3942) target = $region68
        $region67: #{tpu_custom_call.1} parent=55 // pred_region
          %s3945 = smul.u32 2, %s35
          %s3947 = ssub.s32 1024, 1024
          %3948 = vsyncadd %s3938, %s3947
          %s3949 = smul.addr %s34, 32
          %s3950 = sadd.s32 %s3945, %s3949
          %s3951 = smul.addr %s3950, 128
          %s3952 = scalar_lea.hbm %s9, %s3951
          %s3953 = sshll.u32 %s3941, 4
          %s3954 = int_to_ptr.vmem [resolvable:$true] %s3953
          %3959 = dma.vmem_to_hbm [thread:$0]  %s3954, 1024, %s3952, %s3938, 256, 1024, 16
        $region68: #{tpu_custom_call.1} parent=55 // pred_fallthru
          _
      $region56: #{tpu_custom_call.1} parent=5 // pred_fallthru
        _
      %p3960 = scmp.le.s32.totalorder 2, %s25
      // Predicated region
      $region69: #{tpu_custom_call.1} parent=5 // pred_check
        %p3961 = pneg %p3960
      $region70: #{tpu_custom_call.1} parent=5 // pred_check_branch
        %3963 = sbr.rel (%p3961) target = $region72
      $region71: #{tpu_custom_call.1} parent=5 // pred_region
        %s3964 = ssub.s32 %s25, 2
        // Predicated region
        $region73: #{tpu_custom_call.1} parent=71 // pred_check
          %p3965 = pneg %p269
        $region74: #{tpu_custom_call.1} parent=71 // pred_check_branch
          %3967 = sbr.rel (%p3965) target = $region76
        $region75: #{tpu_custom_call.1} parent=71 // pred_region
          %s3968 = sand.u32 %s254, 1
          %s3969 = scalar_lea.sflag [#allocation5], %s3968
          %s3970 = sand.u32 %s254, 1
          %s3971 = smul.addr %s3970, 64
          %s3972 = scalar_lea.vmem [#allocation8], %s3971
          %3973 = dma.done %s3969, 1024
        $region76: #{tpu_custom_call.1} parent=71 // pred_fallthru
          _
      $region72: #{tpu_custom_call.1} parent=5 // pred_fallthru
        _
    $region6: #{tpu_custom_call.1} parent=1 // loop_footer
      %s29 = sadd.s32 1, %s25
    $region7: #{tpu_custom_call.1} parent=1 // loop_footer_branch
      %24 = sbr.rel target = $region3
    $region8: #{tpu_custom_call.1} parent=1 // loop_exit
      _
    %3974 = vsyncpa [#allocation4], 1
    %s3975 = scalar_lea.sflag [#allocation4], 1
    %3976 = vsyncpa %s3975, 1
    %3977 = vsyncpa [#allocation7], 1
    %s3978 = scalar_lea.sflag [#allocation7], 1
    %3979 = vsyncpa %s3978, 1
    %3980 = vsyncpa [#allocation5], 1
    %s3981 = scalar_lea.sflag [#allocation5], 1
    %3982 = vsyncpa %s3981, 1

</llo_original>
